<compile_context>
chip_gen: v7x
topology: tpu7x:2x2x1
jax: 0.10.0
libtpu: 0.0.40
codegen_flags: <defaults>
</compile_context>

<pallas_src>
import functools
import numpy as np
import jax
import jax.numpy as jnp
from jax import lax
from jax.experimental import pallas as pl
from jax.experimental.pallas import tpu as pltpu

HPN_FDIM = 4  # len(['H', 'I', 'M', 'S'])
LANE = 128
F32 = jnp.float32


def _rup(x, m):
    return (x + m - 1) // m * m


def _bytes(arrays):
    return sum(int(np.prod(a.shape)) * jnp.dtype(a.dtype).itemsize for a in arrays)


def _vmem_limit(arrays, out_bytes):
    need = 2 * (_bytes(arrays) + out_bytes) + (8 << 20)
    return int(min(max(need, 16 << 20), 64 << 20))


# ------------------------- fused encoder kernel -----------------------------
# prep (nucleotide gather-max) -> local message field -> GraphGRU -> node output
def encoder_kernel(depth,
                   label_ref, nuc_oh_ref, nuc_ref, cm_ref, msg_oh_ref,
                   cmsg_ref, cfn_ref, mask_ref,
                   wz_l_ref, wz_e_ref, wz_m_ref, bz_ref,
                   wr_l_ref, wr_e_ref, ur_ref, bur_ref,
                   wh_l_ref, wh_e_ref, wh_m_ref, bh_ref,
                   wo_l_ref, wo_e_ref, wo_m_ref, bo_ref,
                   hpn_ref):
    H = ur_ref.shape[0]
    NB = label_ref.shape[0]
    NM = mask_ref.shape[0]
    A = nuc_oh_ref.shape[0] // NB
    K = msg_oh_ref.shape[0] // NM
    dot = lambda a, b: jnp.dot(a, b, preferred_element_type=F32)

    # --- prep: per-branch nucleotide max-embedding (single stacked matmul) ---
    emb_all = dot(nuc_oh_ref[...], nuc_ref[...])              # (A*NB, H)
    emb = emb_all[0:NB]
    for a in range(1, A):                                     # aligned slices, VPU max
        emb = jnp.maximum(emb, emb_all[a * NB:(a + 1) * NB])
    label = label_ref[...]                                    # (NB, FDIM)

    # --- local message field, split label / embedding halves (no lane concat) ---
    cm = cm_ref[...]
    lf_l = dot(cm, label)                                     # (NM, FDIM)
    lf_e = dot(cm, emb)                                       # (NM, H)
    z_lf = dot(lf_l, wz_l_ref[...]) + dot(lf_e, wz_e_ref[...])
    r1 = dot(lf_l, wr_l_ref[...]) + dot(lf_e, wr_e_ref[...])
    h_lf = dot(lf_l, wh_l_ref[...]) + dot(lf_e, wh_e_ref[...])

    mask = mask_ref[...]
    msg_oh = msg_oh_ref[...]
    ur = ur_ref[...]
    bur = bur_ref[...]
    wz_m = wz_m_ref[...]
    bz = bz_ref[...]
    wh_m = wh_m_ref[...]
    bh = bh_ref[...]

    # --- GraphGRU: 2 stacked gather matmuls per depth step instead of 2K ---
    def gru_body(_, msgs):
        ur_msgs = dot(msgs, ur) + bur                         # U_r(messages)
        nei_all = dot(msg_oh, msgs)                           # (K*NM, H)
        r2_all = dot(msg_oh, ur_msgs)                         # (K*NM, H)
        sum_msg = jnp.zeros((NM, H), F32)
        sum_gated = jnp.zeros((NM, H), F32)
        for k in range(K):                                    # aligned slices, VPU work
            nei_k = nei_all[k * NM:(k + 1) * NM]
            r_k = jax.nn.sigmoid(r1 + r2_all[k * NM:(k + 1) * NM])
            sum_msg = sum_msg + nei_k
            sum_gated = sum_gated + r_k * nei_k
        z = jax.nn.sigmoid(z_lf + dot(sum_msg, wz_m) + bz)
        pre = jnp.tanh(h_lf + dot(sum_gated, wh_m) + bh)
        return ((1.0 - z) * sum_msg + z * pre) * mask

    msgs = lax.fori_loop(0, depth, gru_body, jnp.zeros((NM, H), F32),
                         unroll=bool(depth <= 8))

    # --- per-node embedding, lane-dense (128-wide) output slab ---
    fng_l = dot(cfn_ref[...], label)
    fng_e = dot(cfn_ref[...], emb)
    incoming = dot(cmsg_ref[...], msgs)
    pre_out = (dot(fng_l, wo_l_ref[...]) + dot(fng_e, wo_e_ref[...]) +
               dot(incoming, wo_m_ref[...]) + bo_ref[...])
    hpn_ref[...] = jnp.maximum(pre_out, 0.0)


# -------------------- fused bidirectional LSTM + tree max -------------------
def bilstm_max_kernel(x_ref, lens_ref, wih_ref, whh_ref, b_ref, out_ref):
    """One direction per grid step. x is time-major (T, B, 128); gates are packed
    (i, f, g, o) into a single 4*Hh-wide matmul per input; running max is
    length-masked (pack_padded_sequence semantics)."""
    T, B, _ = x_ref.shape
    Hh = whh_ref.shape[0]
    lens = lens_ref[...]                                      # (B, 1) int32
    wih = wih_ref[...]                                        # (128, 4*Hh)
    whh = whh_ref[...]                                        # (Hh, 4*Hh)
    bias = b_ref[...]                                         # (1, 4*Hh)

    def step(t, carry):
        h, c, m = carry
        x_t = x_ref[t]                                        # (B, 128)
        g = (jnp.dot(x_t, wih, preferred_element_type=F32) +
             jnp.dot(h, whh, preferred_element_type=F32) + bias)
        i_g = jax.nn.sigmoid(g[:, 0 * Hh:1 * Hh])
        f_g = jax.nn.sigmoid(g[:, 1 * Hh:2 * Hh])
        g_g = jnp.tanh(g[:, 2 * Hh:3 * Hh])
        o_g = jax.nn.sigmoid(g[:, 3 * Hh:4 * Hh])
        c = f_g * c + i_g * g_g
        h = o_g * jnp.tanh(c)
        valid = t < lens                                      # (B, 1)
        m = jnp.where(valid, jnp.maximum(m, h), m)
        return (h, c, m)

    init = (jnp.zeros((B, Hh), F32), jnp.zeros((B, Hh), F32),
            jnp.full((B, Hh), -jnp.inf, F32))
    _, _, m = lax.fori_loop(0, T, step, init, unroll=bool(T <= 16))
    out_ref[...] = jnp.where(lens > 0, m, 0.0)                # guard empty sequences


# ------------------------------- wrapper -------------------------------------
def init_params(key, H, FDIM):
    Hh = H // 2
    ks = jax.random.split(key, 19)
    w = lambda k, s: jax.random.normal(k, s, F32) * 0.1
    return dict(
        # GraphGRU, weights split into label / embedding / message halves
        wz_l=w(ks[0], (FDIM, H)), wz_e=w(ks[1], (H, H)),
        wz_m=w(ks[2], (H, H)), bz=w(ks[3], (1, H)),
        wr_l=w(ks[4], (FDIM, H)), wr_e=w(ks[5], (H, H)),
        ur=w(ks[6], (H, H)), bur=w(ks[7], (1, H)),
        wh_l=w(ks[8], (FDIM, H)), wh_e=w(ks[9], (H, H)),
        wh_m=w(ks[10], (H, H)), bh=w(ks[11], (1, H)),
        # output_w split
        wo_l=w(ks[12], (FDIM, H)), wo_e=w(ks[13], (H, H)),
        wo_m=w(ks[14], (H, H)), bo=w(ks[15], (1, H)),
        # BiLSTM: packed gates (i,f,g,o), direction-stacked, bias = b_ih + b_hh
        wih=w(ks[16], (2, H, 4 * Hh)), whh=w(ks[17], (2, Hh, 4 * Hh)),
        b=w(ks[18], (2, 1, 4 * Hh)),
    )


def branched_tree_encoder_forward(params, nuc_embedding, f_node_label,
                                  f_node_assignment, f_message, node_graph,
                                  message_graph, all_dfs_idx,
                                  hidden_size, depth):
    p = params
    H = hidden_size
    Hh = H // 2
    FDIM = f_node_label.shape[1]
    n_nuc = nuc_embedding.shape[0]
    n_branch = f_node_label.shape[0]
    n_msg = message_graph.shape[0]
    n_node = node_graph.shape[0]
    A = f_node_assignment.shape[1]
    K = message_graph.shape[1]

    # sublane-align row counts so all stacked-matmul slices are (8,128)-tile aligned
    NB = _rup(n_branch, 8)
    NM = _rup(n_msg, 8)
    NN = _rup(n_node, 8)
    NU = _rup(n_nuc + 1, 8)

    # nucleotide table (+ -99999 padding row at index n_nuc, zero rows beyond)
    nuc_emb = jnp.concatenate(
        [nuc_embedding, jnp.full((1, H), -99999.0, F32),
         jnp.zeros((NU - n_nuc - 1, H), F32)], axis=0)

    # gathers -> exact one-hot / count matrices (MXU matmuls in-kernel)
    assign_t = jnp.pad(jnp.transpose(f_node_assignment),
                       ((0, 0), (0, NB - n_branch)), constant_values=n_nuc)
    nuc_oh = jax.nn.one_hot(assign_t, NU, dtype=F32).reshape(A * NB, NU)

    cm = jax.nn.one_hot(f_message, n_branch + 1,
                        dtype=F32)[:, :, :n_branch].sum(axis=1)
    cm = jnp.pad(cm, ((0, NM - n_msg), (0, NB - n_branch)))

    mg_t = jnp.pad(jnp.transpose(message_graph), ((0, 0), (0, NM - n_msg)))
    msg_oh = jax.nn.one_hot(mg_t, NM, dtype=F32).reshape(K * NM, NM)

    c_msg = jax.nn.one_hot(node_graph, n_msg, dtype=F32).sum(axis=1)
    c_msg = jnp.pad(c_msg, ((0, NN - n_node), (0, NM - n_msg)))
    c_fn = jax.nn.one_hot(node_graph, n_branch, dtype=F32).sum(axis=1)
    c_fn = jnp.pad(c_fn, ((0, NN - n_node), (0, NB - n_branch)))

    label = jnp.pad(f_node_label, ((0, NB - n_branch), (0, 0)))
    mask = jnp.zeros((NM, 1), F32).at[1:n_msg, :].set(1.0)   # row 0 + pad rows masked

    # output weights padded to a lane-dense 128-wide slab (extra columns exactly 0)
    pad_n = lambda w_: jnp.pad(w_, ((0, 0), (0, LANE - H)))
    wo_l, wo_e, wo_m, bo = map(pad_n, (p['wo_l'], p['wo_e'], p['wo_m'], p['bo']))

    enc_inputs = (label, nuc_oh, nuc_emb, cm, msg_oh, c_msg, c_fn, mask,
                  p['wz_l'], p['wz_e'], p['wz_m'], p['bz'],
                  p['wr_l'], p['wr_e'], p['ur'], p['bur'],
                  p['wh_l'], p['wh_e'], p['wh_m'], p['bh'],
                  wo_l, wo_e, wo_m, bo)

    vmem = lambda: pl.BlockSpec(memory_space=pltpu.MemorySpace.VMEM)

    enc_flops = 2 * (A * NB * NU * H + NM * NB * (FDIM + H)
                     + 3 * NM * (FDIM + H) * H
                     + depth * (3 * NM * H * H + 2 * K * NM * NM * H)
                     + NN * NB * (FDIM + H) + NN * NM * H
                     + NN * (FDIM + 2 * H) * LANE)
    enc_trans = depth * NM * H * (K + 3)
    enc_out_bytes = NN * LANE * 4

    hpn = pl.pallas_call(
        functools.partial(encoder_kernel, depth),
        out_shape=jax.ShapeDtypeStruct((NN, LANE), F32),
        in_specs=[vmem() for _ in enc_inputs],
        out_specs=vmem(),
        compiler_params=pltpu.CompilerParams(
            vmem_limit_bytes=_vmem_limit(enc_inputs, enc_out_bytes)),
        cost_estimate=pl.CostEstimate(
            flops=int(enc_flops), transcendentals=int(enc_trans),
            bytes_accessed=int(_bytes(enc_inputs) + enc_out_bytes)),
    )(*enc_inputs)

    # ---- BiLSTM over DFS-ordered node embeddings + per-tree max ----
    all_len = [len(d) for d in all_dfs_idx]
    T = max(all_len)
    B = len(all_dfs_idx)
    # one static gather table (fwd + reversed-valid-prefix bwd), single XLA gather
    idx = np.zeros((2, B, T), np.int32)
    for i, dfs in enumerate(all_dfs_idx):
        L = len(dfs)
        idx[0, i, :L] = np.asarray(dfs, np.int32)
        idx[1, i, :L] = np.asarray(dfs[::-1], np.int32)      # packed-seq backward dir
    x = jnp.take(hpn, jnp.asarray(idx), axis=0)              # (2, B, T, 128)
    x = jnp.transpose(x, (0, 2, 1, 3))                       # (2, T, B, 128) time-major
    lens = jnp.asarray(all_len, jnp.int32).reshape(B, 1)

    wih = jnp.pad(p['wih'], ((0, 0), (0, LANE - H), (0, 0)))  # rows >= H are zero
    whh = p['whh']
    b = p['b']

    lstm_flops = 2 * 2 * T * B * (LANE * 4 * Hh + Hh * 4 * Hh)
    lstm_trans = 2 * T * B * 5 * Hh
    lstm_out_bytes = 2 * B * Hh * 4

    m = pl.pallas_call(
        bilstm_max_kernel,
        out_shape=jax.ShapeDtypeStruct((2, B, Hh), F32),
        grid=(2,),
        in_specs=[
            pl.BlockSpec((None, T, B, LANE), lambda d: (d, 0, 0, 0)),
            pl.BlockSpec((B, 1), lambda d: (0, 0)),
            pl.BlockSpec((None, LANE, 4 * Hh), lambda d: (d, 0, 0)),
            pl.BlockSpec((None, Hh, 4 * Hh), lambda d: (d, 0, 0)),
            pl.BlockSpec((None, 1, 4 * Hh), lambda d: (d, 0, 0)),
        ],
        out_specs=pl.BlockSpec((None, B, Hh), lambda d: (d, 0, 0)),
        compiler_params=pltpu.CompilerParams(
            dimension_semantics=("parallel",),   # 2 directions -> 2 TCs on v7x
            vmem_limit_bytes=_vmem_limit((x, lens, wih, whh, b), lstm_out_bytes)),
        cost_estimate=pl.CostEstimate(
            flops=int(lstm_flops), transcendentals=int(lstm_trans),
            bytes_accessed=int(_bytes((x, lens, wih, whh, b)) + lstm_out_bytes)),
    )(x, lens, wih, whh, b)

    # final per-tree representation: [max fwd hidden | max bwd hidden]
    return jnp.concatenate([m[0], m[1]], axis=-1)


# --------------------------------- main ---------------------------------------
if __name__ == "__main__":
    key = jax.random.PRNGKey(0)
    H, FDIM, depth = 32, HPN_FDIM, 3
    n_nuc, n_branch, n_msg, n_node = 12, 10, 9, 6
    A, Bm, K, Kn = 3, 3, 3, 2

    ks = jax.random.split(key, 8)
    nuc_embedding = jax.random.normal(ks[0], (n_nuc, H), jnp.float32)
    labels = jax.random.randint(ks[1], (n_branch,), 0, FDIM)
    f_node_label = jax.nn.one_hot(labels, FDIM, dtype=jnp.float32)
    f_node_assignment = jax.random.randint(ks[2], (n_branch, A), 0, n_nuc + 1)
    f_message = jax.random.randint(ks[3], (n_msg, Bm), 0, n_branch + 1)
    message_graph = jax.random.randint(ks[4], (n_msg, K), 0, n_msg)
    node_graph = jax.random.randint(ks[5], (n_node, Kn), 0, min(n_msg, n_branch))
    all_dfs_idx = [[0, 1, 2, 3], [4, 5, 3]]

    params = init_params(ks[6], H, FDIM)

    out = branched_tree_encoder_forward(
        params, nuc_embedding, f_node_label, f_node_assignment, f_message,
        node_graph, message_graph, all_dfs_idx, hidden_size=H, depth=depth)
    out = jax.block_until_ready(out)
    assert out.shape == (len(all_dfs_idx), H)
    print("KERNEL_OK")
</pallas_src>

<mosaic_0001>
module attributes {stable_mosaic.version = 11 : i64} {
  func.func @encoder_kernel(%arg0: memref<16x4xf32, #tpu.memory_space<vmem>>, %arg1: memref<48x16xf32, #tpu.memory_space<vmem>>, %arg2: memref<16x32xf32, #tpu.memory_space<vmem>>, %arg3: memref<16x16xf32, #tpu.memory_space<vmem>>, %arg4: memref<48x16xf32, #tpu.memory_space<vmem>>, %arg5: memref<8x16xf32, #tpu.memory_space<vmem>>, %arg6: memref<8x16xf32, #tpu.memory_space<vmem>>, %arg7: memref<16x1xf32, #tpu.memory_space<vmem>>, %arg8: memref<4x32xf32, #tpu.memory_space<vmem>>, %arg9: memref<32x32xf32, #tpu.memory_space<vmem>>, %arg10: memref<32x32xf32, #tpu.memory_space<vmem>>, %arg11: memref<1x32xf32, #tpu.memory_space<vmem>>, %arg12: memref<4x32xf32, #tpu.memory_space<vmem>>, %arg13: memref<32x32xf32, #tpu.memory_space<vmem>>, %arg14: memref<32x32xf32, #tpu.memory_space<vmem>>, %arg15: memref<1x32xf32, #tpu.memory_space<vmem>>, %arg16: memref<4x32xf32, #tpu.memory_space<vmem>>, %arg17: memref<32x32xf32, #tpu.memory_space<vmem>>, %arg18: memref<32x32xf32, #tpu.memory_space<vmem>>, %arg19: memref<1x32xf32, #tpu.memory_space<vmem>>, %arg20: memref<4x128xf32, #tpu.memory_space<vmem>>, %arg21: memref<32x128xf32, #tpu.memory_space<vmem>>, %arg22: memref<32x128xf32, #tpu.memory_space<vmem>>, %arg23: memref<1x128xf32, #tpu.memory_space<vmem>>, %arg24: memref<8x128xf32, #tpu.memory_space<vmem>>) attributes {dimension_semantics = [], scalar_prefetch = 0 : i64, scratch_operands = 0 : i64, tpu.core_type = #tpu.core_type<tc>} {
    %c0 = arith.constant 0 : index
    %c0_0 = arith.constant 0 : index
    %0 = vector.load %arg1[%c0, %c0_0] : memref<48x16xf32, #tpu.memory_space<vmem>>, vector<48x16xf32>
    %c0_1 = arith.constant 0 : index
    %c0_2 = arith.constant 0 : index
    %1 = vector.load %arg2[%c0_1, %c0_2] : memref<16x32xf32, #tpu.memory_space<vmem>>, vector<16x32xf32>
    %cst = arith.constant dense<0.000000e+00> : vector<48x32xf32>
    %2 = tpu.matmul %0, %1, %cst {dimension_numbers = #tpu.dot_dimension_numbers<[1], [0], [0], [1], [0, 0, 1, 1], [], []>} : vector<48x16xf32>, vector<16x32xf32>, vector<48x32xf32> -> vector<48x32xf32>
    %3 = vector.extract_strided_slice %2 {offsets = [0, 0], sizes = [16, 32], strides = [1, 1]} : vector<48x32xf32> to vector<16x32xf32>
    %4 = vector.extract_strided_slice %2 {offsets = [16, 0], sizes = [16, 32], strides = [1, 1]} : vector<48x32xf32> to vector<16x32xf32>
    %5 = arith.maximumf %3, %4 : vector<16x32xf32>
    %6 = vector.extract_strided_slice %2 {offsets = [32, 0], sizes = [16, 32], strides = [1, 1]} : vector<48x32xf32> to vector<16x32xf32>
    %7 = arith.maximumf %5, %6 : vector<16x32xf32>
    %c0_3 = arith.constant 0 : index
    %c0_4 = arith.constant 0 : index
    %8 = vector.load %arg0[%c0_3, %c0_4] : memref<16x4xf32, #tpu.memory_space<vmem>>, vector<16x4xf32>
    %c0_5 = arith.constant 0 : index
    %c0_6 = arith.constant 0 : index
    %9 = vector.load %arg3[%c0_5, %c0_6] : memref<16x16xf32, #tpu.memory_space<vmem>>, vector<16x16xf32>
    %cst_7 = arith.constant dense<0.000000e+00> : vector<16x4xf32>
    %10 = tpu.matmul %9, %8, %cst_7 {dimension_numbers = #tpu.dot_dimension_numbers<[1], [0], [0], [1], [0, 0, 1, 1], [], []>} : vector<16x16xf32>, vector<16x4xf32>, vector<16x4xf32> -> vector<16x4xf32>
    %cst_8 = arith.constant dense<0.000000e+00> : vector<16x32xf32>
    %11 = tpu.matmul %9, %7, %cst_8 {dimension_numbers = #tpu.dot_dimension_numbers<[1], [0], [0], [1], [0, 0, 1, 1], [], []>} : vector<16x16xf32>, vector<16x32xf32>, vector<16x32xf32> -> vector<16x32xf32>
    %c0_9 = arith.constant 0 : index
    %c0_10 = arith.constant 0 : index
    %12 = vector.load %arg8[%c0_9, %c0_10] : memref<4x32xf32, #tpu.memory_space<vmem>>, vector<4x32xf32>
    %cst_11 = arith.constant dense<0.000000e+00> : vector<16x32xf32>
    %13 = tpu.matmul %10, %12, %cst_11 {dimension_numbers = #tpu.dot_dimension_numbers<[1], [0], [0], [1], [0, 0, 1, 1], [], []>} : vector<16x4xf32>, vector<4x32xf32>, vector<16x32xf32> -> vector<16x32xf32>
    %c0_12 = arith.constant 0 : index
    %c0_13 = arith.constant 0 : index
    %14 = vector.load %arg9[%c0_12, %c0_13] : memref<32x32xf32, #tpu.memory_space<vmem>>, vector<32x32xf32>
    %cst_14 = arith.constant dense<0.000000e+00> : vector<16x32xf32>
    %15 = tpu.matmul %11, %14, %cst_14 {dimension_numbers = #tpu.dot_dimension_numbers<[1], [0], [0], [1], [0, 0, 1, 1], [], []>} : vector<16x32xf32>, vector<32x32xf32>, vector<16x32xf32> -> vector<16x32xf32>
    %16 = arith.addf %13, %15 : vector<16x32xf32>
    %c0_15 = arith.constant 0 : index
    %c0_16 = arith.constant 0 : index
    %17 = vector.load %arg12[%c0_15, %c0_16] : memref<4x32xf32, #tpu.memory_space<vmem>>, vector<4x32xf32>
    %cst_17 = arith.constant dense<0.000000e+00> : vector<16x32xf32>
    %18 = tpu.matmul %10, %17, %cst_17 {dimension_numbers = #tpu.dot_dimension_numbers<[1], [0], [0], [1], [0, 0, 1, 1], [], []>} : vector<16x4xf32>, vector<4x32xf32>, vector<16x32xf32> -> vector<16x32xf32>
    %c0_18 = arith.constant 0 : index
    %c0_19 = arith.constant 0 : index
    %19 = vector.load %arg13[%c0_18, %c0_19] : memref<32x32xf32, #tpu.memory_space<vmem>>, vector<32x32xf32>
    %cst_20 = arith.constant dense<0.000000e+00> : vector<16x32xf32>
    %20 = tpu.matmul %11, %19, %cst_20 {dimension_numbers = #tpu.dot_dimension_numbers<[1], [0], [0], [1], [0, 0, 1, 1], [], []>} : vector<16x32xf32>, vector<32x32xf32>, vector<16x32xf32> -> vector<16x32xf32>
    %21 = arith.addf %18, %20 : vector<16x32xf32>
    %c0_21 = arith.constant 0 : index
    %c0_22 = arith.constant 0 : index
    %22 = vector.load %arg16[%c0_21, %c0_22] : memref<4x32xf32, #tpu.memory_space<vmem>>, vector<4x32xf32>
    %cst_23 = arith.constant dense<0.000000e+00> : vector<16x32xf32>
    %23 = tpu.matmul %10, %22, %cst_23 {dimension_numbers = #tpu.dot_dimension_numbers<[1], [0], [0], [1], [0, 0, 1, 1], [], []>} : vector<16x4xf32>, vector<4x32xf32>, vector<16x32xf32> -> vector<16x32xf32>
    %c0_24 = arith.constant 0 : index
    %c0_25 = arith.constant 0 : index
    %24 = vector.load %arg17[%c0_24, %c0_25] : memref<32x32xf32, #tpu.memory_space<vmem>>, vector<32x32xf32>
    %cst_26 = arith.constant dense<0.000000e+00> : vector<16x32xf32>
    %25 = tpu.matmul %11, %24, %cst_26 {dimension_numbers = #tpu.dot_dimension_numbers<[1], [0], [0], [1], [0, 0, 1, 1], [], []>} : vector<16x32xf32>, vector<32x32xf32>, vector<16x32xf32> -> vector<16x32xf32>
    %26 = arith.addf %23, %25 : vector<16x32xf32>
    %c0_27 = arith.constant 0 : index
    %c0_28 = arith.constant 0 : index
    %27 = vector.load %arg7[%c0_27, %c0_28] : memref<16x1xf32, #tpu.memory_space<vmem>>, vector<16x1xf32>
    %c0_29 = arith.constant 0 : index
    %c0_30 = arith.constant 0 : index
    %28 = vector.load %arg4[%c0_29, %c0_30] : memref<48x16xf32, #tpu.memory_space<vmem>>, vector<48x16xf32>
    %c0_31 = arith.constant 0 : index
    %c0_32 = arith.constant 0 : index
    %29 = vector.load %arg14[%c0_31, %c0_32] : memref<32x32xf32, #tpu.memory_space<vmem>>, vector<32x32xf32>
    %c0_33 = arith.constant 0 : index
    %c0_34 = arith.constant 0 : index
    %30 = vector.load %arg15[%c0_33, %c0_34] : memref<1x32xf32, #tpu.memory_space<vmem>>, vector<1x32xf32>
    %c0_35 = arith.constant 0 : index
    %c0_36 = arith.constant 0 : index
    %31 = vector.load %arg10[%c0_35, %c0_36] : memref<32x32xf32, #tpu.memory_space<vmem>>, vector<32x32xf32>
    %c0_37 = arith.constant 0 : index
    %c0_38 = arith.constant 0 : index
    %32 = vector.load %arg11[%c0_37, %c0_38] : memref<1x32xf32, #tpu.memory_space<vmem>>, vector<1x32xf32>
    %c0_39 = arith.constant 0 : index
    %c0_40 = arith.constant 0 : index
    %33 = vector.load %arg18[%c0_39, %c0_40] : memref<32x32xf32, #tpu.memory_space<vmem>>, vector<32x32xf32>
    %c0_41 = arith.constant 0 : index
    %c0_42 = arith.constant 0 : index
    %34 = vector.load %arg19[%c0_41, %c0_42] : memref<1x32xf32, #tpu.memory_space<vmem>>, vector<1x32xf32>
    %cst_43 = arith.constant 0.000000e+00 : f32
    %35 = vector.broadcast %cst_43 : f32 to vector<16x32xf32>
    %c0_i32 = arith.constant 0 : i32
    %cst_44 = arith.constant dense<0.000000e+00> : vector<16x32xf32>
    %36 = tpu.matmul %35, %29, %cst_44 {dimension_numbers = #tpu.dot_dimension_numbers<[1], [0], [0], [1], [0, 0, 1, 1], [], []>} : vector<16x32xf32>, vector<32x32xf32>, vector<16x32xf32> -> vector<16x32xf32>
    %37 = vector.broadcast %30 : vector<1x32xf32> to vector<16x32xf32>
    %38 = arith.addf %36, %37 : vector<16x32xf32>
    %cst_45 = arith.constant dense<0.000000e+00> : vector<48x32xf32>
    %39 = tpu.matmul %28, %35, %cst_45 {dimension_numbers = #tpu.dot_dimension_numbers<[1], [0], [0], [1], [0, 0, 1, 1], [], []>} : vector<48x16xf32>, vector<16x32xf32>, vector<48x32xf32> -> vector<48x32xf32>
    %cst_46 = arith.constant dense<0.000000e+00> : vector<48x32xf32>
    %40 = tpu.matmul %28, %38, %cst_46 {dimension_numbers = #tpu.dot_dimension_numbers<[1], [0], [0], [1], [0, 0, 1, 1], [], []>} : vector<48x16xf32>, vector<16x32xf32>, vector<48x32xf32> -> vector<48x32xf32>
    %cst_47 = arith.constant 0.000000e+00 : f32
    %41 = vector.broadcast %cst_47 : f32 to vector<16x32xf32>
    %cst_48 = arith.constant 0.000000e+00 : f32
    %42 = vector.broadcast %cst_48 : f32 to vector<16x32xf32>
    %43 = vector.extract_strided_slice %39 {offsets = [0, 0], sizes = [16, 32], strides = [1, 1]} : vector<48x32xf32> to vector<16x32xf32>
    %44 = vector.extract_strided_slice %40 {offsets = [0, 0], sizes = [16, 32], strides = [1, 1]} : vector<48x32xf32> to vector<16x32xf32>
    %45 = arith.addf %21, %44 : vector<16x32xf32>
    %46 = arith.negf %45 : vector<16x32xf32>
    %47 = math.exp %46 : vector<16x32xf32>
    %cst_49 = arith.constant 1.000000e+00 : f32
    %48 = vector.broadcast %cst_49 : f32 to vector<16x32xf32>
    %49 = arith.addf %48, %47 : vector<16x32xf32>
    %50 = arith.divf %48, %49 : vector<16x32xf32>
    %51 = arith.addf %41, %43 : vector<16x32xf32>
    %52 = arith.mulf %50, %43 : vector<16x32xf32>
    %53 = arith.addf %42, %52 : vector<16x32xf32>
    %54 = vector.extract_strided_slice %39 {offsets = [16, 0], sizes = [16, 32], strides = [1, 1]} : vector<48x32xf32> to vector<16x32xf32>
    %55 = vector.extract_strided_slice %40 {offsets = [16, 0], sizes = [16, 32], strides = [1, 1]} : vector<48x32xf32> to vector<16x32xf32>
    %56 = arith.addf %21, %55 : vector<16x32xf32>
    %57 = arith.negf %56 : vector<16x32xf32>
    %58 = math.exp %57 : vector<16x32xf32>
    %cst_50 = arith.constant 1.000000e+00 : f32
    %59 = vector.broadcast %cst_50 : f32 to vector<16x32xf32>
    %60 = arith.addf %59, %58 : vector<16x32xf32>
    %61 = arith.divf %59, %60 : vector<16x32xf32>
    %62 = arith.addf %51, %54 : vector<16x32xf32>
    %63 = arith.mulf %61, %54 : vector<16x32xf32>
    %64 = arith.addf %53, %63 : vector<16x32xf32>
    %65 = vector.extract_strided_slice %39 {offsets = [32, 0], sizes = [16, 32], strides = [1, 1]} : vector<48x32xf32> to vector<16x32xf32>
    %66 = vector.extract_strided_slice %40 {offsets = [32, 0], sizes = [16, 32], strides = [1, 1]} : vector<48x32xf32> to vector<16x32xf32>
    %67 = arith.addf %21, %66 : vector<16x32xf32>
    %68 = arith.negf %67 : vector<16x32xf32>
    %69 = math.exp %68 : vector<16x32xf32>
    %cst_51 = arith.constant 1.000000e+00 : f32
    %70 = vector.broadcast %cst_51 : f32 to vector<16x32xf32>
    %71 = arith.addf %70, %69 : vector<16x32xf32>
    %72 = arith.divf %70, %71 : vector<16x32xf32>
    %73 = arith.addf %62, %65 : vector<16x32xf32>
    %74 = arith.mulf %72, %65 : vector<16x32xf32>
    %75 = arith.addf %64, %74 : vector<16x32xf32>
    %cst_52 = arith.constant dense<0.000000e+00> : vector<16x32xf32>
    %76 = tpu.matmul %73, %31, %cst_52 {dimension_numbers = #tpu.dot_dimension_numbers<[1], [0], [0], [1], [0, 0, 1, 1], [], []>} : vector<16x32xf32>, vector<32x32xf32>, vector<16x32xf32> -> vector<16x32xf32>
    %77 = arith.addf %16, %76 : vector<16x32xf32>
    %78 = vector.broadcast %32 : vector<1x32xf32> to vector<16x32xf32>
    %79 = arith.addf %77, %78 : vector<16x32xf32>
    %80 = arith.negf %79 : vector<16x32xf32>
    %81 = math.exp %80 : vector<16x32xf32>
    %cst_53 = arith.constant 1.000000e+00 : f32
    %82 = vector.broadcast %cst_53 : f32 to vector<16x32xf32>
    %83 = arith.addf %82, %81 : vector<16x32xf32>
    %84 = arith.divf %82, %83 : vector<16x32xf32>
    %cst_54 = arith.constant dense<0.000000e+00> : vector<16x32xf32>
    %85 = tpu.matmul %75, %33, %cst_54 {dimension_numbers = #tpu.dot_dimension_numbers<[1], [0], [0], [1], [0, 0, 1, 1], [], []>} : vector<16x32xf32>, vector<32x32xf32>, vector<16x32xf32> -> vector<16x32xf32>
    %86 = arith.addf %26, %85 : vector<16x32xf32>
    %87 = vector.broadcast %34 : vector<1x32xf32> to vector<16x32xf32>
    %88 = arith.addf %86, %87 : vector<16x32xf32>
    %89 = math.tanh %88 : vector<16x32xf32>
    %cst_55 = arith.constant 1.000000e+00 : f32
    %90 = vector.broadcast %cst_55 : f32 to vector<16x32xf32>
    %91 = arith.subf %90, %84 : vector<16x32xf32>
    %92 = arith.mulf %91, %73 : vector<16x32xf32>
    %93 = arith.mulf %84, %89 : vector<16x32xf32>
    %94 = arith.addf %92, %93 : vector<16x32xf32>
    %95 = vector.broadcast %27 : vector<16x1xf32> to vector<16x32xf32>
    %96 = arith.mulf %94, %95 : vector<16x32xf32>
    %c1_i32 = arith.constant 1 : i32
    %cst_56 = arith.constant dense<0.000000e+00> : vector<16x32xf32>
    %97 = tpu.matmul %96, %29, %cst_56 {dimension_numbers = #tpu.dot_dimension_numbers<[1], [0], [0], [1], [0, 0, 1, 1], [], []>} : vector<16x32xf32>, vector<32x32xf32>, vector<16x32xf32> -> vector<16x32xf32>
    %98 = vector.broadcast %30 : vector<1x32xf32> to vector<16x32xf32>
    %99 = arith.addf %97, %98 : vector<16x32xf32>
    %cst_57 = arith.constant dense<0.000000e+00> : vector<48x32xf32>
    %100 = tpu.matmul %28, %96, %cst_57 {dimension_numbers = #tpu.dot_dimension_numbers<[1], [0], [0], [1], [0, 0, 1, 1], [], []>} : vector<48x16xf32>, vector<16x32xf32>, vector<48x32xf32> -> vector<48x32xf32>
    %cst_58 = arith.constant dense<0.000000e+00> : vector<48x32xf32>
    %101 = tpu.matmul %28, %99, %cst_58 {dimension_numbers = #tpu.dot_dimension_numbers<[1], [0], [0], [1], [0, 0, 1, 1], [], []>} : vector<48x16xf32>, vector<16x32xf32>, vector<48x32xf32> -> vector<48x32xf32>
    %cst_59 = arith.constant 0.000000e+00 : f32
    %102 = vector.broadcast %cst_59 : f32 to vector<16x32xf32>
    %cst_60 = arith.constant 0.000000e+00 : f32
    %103 = vector.broadcast %cst_60 : f32 to vector<16x32xf32>
    %104 = vector.extract_strided_slice %100 {offsets = [0, 0], sizes = [16, 32], strides = [1, 1]} : vector<48x32xf32> to vector<16x32xf32>
    %105 = vector.extract_strided_slice %101 {offsets = [0, 0], sizes = [16, 32], strides = [1, 1]} : vector<48x32xf32> to vector<16x32xf32>
    %106 = arith.addf %21, %105 : vector<16x32xf32>
    %107 = arith.negf %106 : vector<16x32xf32>
    %108 = math.exp %107 : vector<16x32xf32>
    %cst_61 = arith.constant 1.000000e+00 : f32
    %109 = vector.broadcast %cst_61 : f32 to vector<16x32xf32>
    %110 = arith.addf %109, %108 : vector<16x32xf32>
    %111 = arith.divf %109, %110 : vector<16x32xf32>
    %112 = arith.addf %102, %104 : vector<16x32xf32>
    %113 = arith.mulf %111, %104 : vector<16x32xf32>
    %114 = arith.addf %103, %113 : vector<16x32xf32>
    %115 = vector.extract_strided_slice %100 {offsets = [16, 0], sizes = [16, 32], strides = [1, 1]} : vector<48x32xf32> to vector<16x32xf32>
    %116 = vector.extract_strided_slice %101 {offsets = [16, 0], sizes = [16, 32], strides = [1, 1]} : vector<48x32xf32> to vector<16x32xf32>
    %117 = arith.addf %21, %116 : vector<16x32xf32>
    %118 = arith.negf %117 : vector<16x32xf32>
    %119 = math.exp %118 : vector<16x32xf32>
    %cst_62 = arith.constant 1.000000e+00 : f32
    %120 = vector.broadcast %cst_62 : f32 to vector<16x32xf32>
    %121 = arith.addf %120, %119 : vector<16x32xf32>
    %122 = arith.divf %120, %121 : vector<16x32xf32>
    %123 = arith.addf %112, %115 : vector<16x32xf32>
    %124 = arith.mulf %122, %115 : vector<16x32xf32>
    %125 = arith.addf %114, %124 : vector<16x32xf32>
    %126 = vector.extract_strided_slice %100 {offsets = [32, 0], sizes = [16, 32], strides = [1, 1]} : vector<48x32xf32> to vector<16x32xf32>
    %127 = vector.extract_strided_slice %101 {offsets = [32, 0], sizes = [16, 32], strides = [1, 1]} : vector<48x32xf32> to vector<16x32xf32>
    %128 = arith.addf %21, %127 : vector<16x32xf32>
    %129 = arith.negf %128 : vector<16x32xf32>
    %130 = math.exp %129 : vector<16x32xf32>
    %cst_63 = arith.constant 1.000000e+00 : f32
    %131 = vector.broadcast %cst_63 : f32 to vector<16x32xf32>
    %132 = arith.addf %131, %130 : vector<16x32xf32>
    %133 = arith.divf %131, %132 : vector<16x32xf32>
    %134 = arith.addf %123, %126 : vector<16x32xf32>
    %135 = arith.mulf %133, %126 : vector<16x32xf32>
    %136 = arith.addf %125, %135 : vector<16x32xf32>
    %cst_64 = arith.constant dense<0.000000e+00> : vector<16x32xf32>
    %137 = tpu.matmul %134, %31, %cst_64 {dimension_numbers = #tpu.dot_dimension_numbers<[1], [0], [0], [1], [0, 0, 1, 1], [], []>} : vector<16x32xf32>, vector<32x32xf32>, vector<16x32xf32> -> vector<16x32xf32>
    %138 = arith.addf %16, %137 : vector<16x32xf32>
    %139 = vector.broadcast %32 : vector<1x32xf32> to vector<16x32xf32>
    %140 = arith.addf %138, %139 : vector<16x32xf32>
    %141 = arith.negf %140 : vector<16x32xf32>
    %142 = math.exp %141 : vector<16x32xf32>
    %cst_65 = arith.constant 1.000000e+00 : f32
    %143 = vector.broadcast %cst_65 : f32 to vector<16x32xf32>
    %144 = arith.addf %143, %142 : vector<16x32xf32>
    %145 = arith.divf %143, %144 : vector<16x32xf32>
    %cst_66 = arith.constant dense<0.000000e+00> : vector<16x32xf32>
    %146 = tpu.matmul %136, %33, %cst_66 {dimension_numbers = #tpu.dot_dimension_numbers<[1], [0], [0], [1], [0, 0, 1, 1], [], []>} : vector<16x32xf32>, vector<32x32xf32>, vector<16x32xf32> -> vector<16x32xf32>
    %147 = arith.addf %26, %146 : vector<16x32xf32>
    %148 = vector.broadcast %34 : vector<1x32xf32> to vector<16x32xf32>
    %149 = arith.addf %147, %148 : vector<16x32xf32>
    %150 = math.tanh %149 : vector<16x32xf32>
    %cst_67 = arith.constant 1.000000e+00 : f32
    %151 = vector.broadcast %cst_67 : f32 to vector<16x32xf32>
    %152 = arith.subf %151, %145 : vector<16x32xf32>
    %153 = arith.mulf %152, %134 : vector<16x32xf32>
    %154 = arith.mulf %145, %150 : vector<16x32xf32>
    %155 = arith.addf %153, %154 : vector<16x32xf32>
    %156 = vector.broadcast %27 : vector<16x1xf32> to vector<16x32xf32>
    %157 = arith.mulf %155, %156 : vector<16x32xf32>
    %c2_i32 = arith.constant 2 : i32
    %cst_68 = arith.constant dense<0.000000e+00> : vector<16x32xf32>
    %158 = tpu.matmul %157, %29, %cst_68 {dimension_numbers = #tpu.dot_dimension_numbers<[1], [0], [0], [1], [0, 0, 1, 1], [], []>} : vector<16x32xf32>, vector<32x32xf32>, vector<16x32xf32> -> vector<16x32xf32>
    %159 = vector.broadcast %30 : vector<1x32xf32> to vector<16x32xf32>
    %160 = arith.addf %158, %159 : vector<16x32xf32>
    %cst_69 = arith.constant dense<0.000000e+00> : vector<48x32xf32>
    %161 = tpu.matmul %28, %157, %cst_69 {dimension_numbers = #tpu.dot_dimension_numbers<[1], [0], [0], [1], [0, 0, 1, 1], [], []>} : vector<48x16xf32>, vector<16x32xf32>, vector<48x32xf32> -> vector<48x32xf32>
    %cst_70 = arith.constant dense<0.000000e+00> : vector<48x32xf32>
    %162 = tpu.matmul %28, %160, %cst_70 {dimension_numbers = #tpu.dot_dimension_numbers<[1], [0], [0], [1], [0, 0, 1, 1], [], []>} : vector<48x16xf32>, vector<16x32xf32>, vector<48x32xf32> -> vector<48x32xf32>
    %cst_71 = arith.constant 0.000000e+00 : f32
    %163 = vector.broadcast %cst_71 : f32 to vector<16x32xf32>
    %cst_72 = arith.constant 0.000000e+00 : f32
    %164 = vector.broadcast %cst_72 : f32 to vector<16x32xf32>
    %165 = vector.extract_strided_slice %161 {offsets = [0, 0], sizes = [16, 32], strides = [1, 1]} : vector<48x32xf32> to vector<16x32xf32>
    %166 = vector.extract_strided_slice %162 {offsets = [0, 0], sizes = [16, 32], strides = [1, 1]} : vector<48x32xf32> to vector<16x32xf32>
    %167 = arith.addf %21, %166 : vector<16x32xf32>
    %168 = arith.negf %167 : vector<16x32xf32>
    %169 = math.exp %168 : vector<16x32xf32>
    %cst_73 = arith.constant 1.000000e+00 : f32
    %170 = vector.broadcast %cst_73 : f32 to vector<16x32xf32>
    %171 = arith.addf %170, %169 : vector<16x32xf32>
    %172 = arith.divf %170, %171 : vector<16x32xf32>
    %173 = arith.addf %163, %165 : vector<16x32xf32>
    %174 = arith.mulf %172, %165 : vector<16x32xf32>
    %175 = arith.addf %164, %174 : vector<16x32xf32>
    %176 = vector.extract_strided_slice %161 {offsets = [16, 0], sizes = [16, 32], strides = [1, 1]} : vector<48x32xf32> to vector<16x32xf32>
    %177 = vector.extract_strided_slice %162 {offsets = [16, 0], sizes = [16, 32], strides = [1, 1]} : vector<48x32xf32> to vector<16x32xf32>
    %178 = arith.addf %21, %177 : vector<16x32xf32>
    %179 = arith.negf %178 : vector<16x32xf32>
    %180 = math.exp %179 : vector<16x32xf32>
    %cst_74 = arith.constant 1.000000e+00 : f32
    %181 = vector.broadcast %cst_74 : f32 to vector<16x32xf32>
    %182 = arith.addf %181, %180 : vector<16x32xf32>
    %183 = arith.divf %181, %182 : vector<16x32xf32>
    %184 = arith.addf %173, %176 : vector<16x32xf32>
    %185 = arith.mulf %183, %176 : vector<16x32xf32>
    %186 = arith.addf %175, %185 : vector<16x32xf32>
    %187 = vector.extract_strided_slice %161 {offsets = [32, 0], sizes = [16, 32], strides = [1, 1]} : vector<48x32xf32> to vector<16x32xf32>
    %188 = vector.extract_strided_slice %162 {offsets = [32, 0], sizes = [16, 32], strides = [1, 1]} : vector<48x32xf32> to vector<16x32xf32>
    %189 = arith.addf %21, %188 : vector<16x32xf32>
    %190 = arith.negf %189 : vector<16x32xf32>
    %191 = math.exp %190 : vector<16x32xf32>
    %cst_75 = arith.constant 1.000000e+00 : f32
    %192 = vector.broadcast %cst_75 : f32 to vector<16x32xf32>
    %193 = arith.addf %192, %191 : vector<16x32xf32>
    %194 = arith.divf %192, %193 : vector<16x32xf32>
    %195 = arith.addf %184, %187 : vector<16x32xf32>
    %196 = arith.mulf %194, %187 : vector<16x32xf32>
    %197 = arith.addf %186, %196 : vector<16x32xf32>
    %cst_76 = arith.constant dense<0.000000e+00> : vector<16x32xf32>
    %198 = tpu.matmul %195, %31, %cst_76 {dimension_numbers = #tpu.dot_dimension_numbers<[1], [0], [0], [1], [0, 0, 1, 1], [], []>} : vector<16x32xf32>, vector<32x32xf32>, vector<16x32xf32> -> vector<16x32xf32>
    %199 = arith.addf %16, %198 : vector<16x32xf32>
    %200 = vector.broadcast %32 : vector<1x32xf32> to vector<16x32xf32>
    %201 = arith.addf %199, %200 : vector<16x32xf32>
    %202 = arith.negf %201 : vector<16x32xf32>
    %203 = math.exp %202 : vector<16x32xf32>
    %cst_77 = arith.constant 1.000000e+00 : f32
    %204 = vector.broadcast %cst_77 : f32 to vector<16x32xf32>
    %205 = arith.addf %204, %203 : vector<16x32xf32>
    %206 = arith.divf %204, %205 : vector<16x32xf32>
    %cst_78 = arith.constant dense<0.000000e+00> : vector<16x32xf32>
    %207 = tpu.matmul %197, %33, %cst_78 {dimension_numbers = #tpu.dot_dimension_numbers<[1], [0], [0], [1], [0, 0, 1, 1], [], []>} : vector<16x32xf32>, vector<32x32xf32>, vector<16x32xf32> -> vector<16x32xf32>
    %208 = arith.addf %26, %207 : vector<16x32xf32>
    %209 = vector.broadcast %34 : vector<1x32xf32> to vector<16x32xf32>
    %210 = arith.addf %208, %209 : vector<16x32xf32>
    %211 = math.tanh %210 : vector<16x32xf32>
    %cst_79 = arith.constant 1.000000e+00 : f32
    %212 = vector.broadcast %cst_79 : f32 to vector<16x32xf32>
    %213 = arith.subf %212, %206 : vector<16x32xf32>
    %214 = arith.mulf %213, %195 : vector<16x32xf32>
    %215 = arith.mulf %206, %211 : vector<16x32xf32>
    %216 = arith.addf %214, %215 : vector<16x32xf32>
    %217 = vector.broadcast %27 : vector<16x1xf32> to vector<16x32xf32>
    %218 = arith.mulf %216, %217 : vector<16x32xf32>
    %c0_80 = arith.constant 0 : index
    %c0_81 = arith.constant 0 : index
    %219 = vector.load %arg6[%c0_80, %c0_81] : memref<8x16xf32, #tpu.memory_space<vmem>>, vector<8x16xf32>
    %cst_82 = arith.constant dense<0.000000e+00> : vector<8x4xf32>
    %220 = tpu.matmul %219, %8, %cst_82 {dimension_numbers = #tpu.dot_dimension_numbers<[1], [0], [0], [1], [0, 0, 1, 1], [], []>} : vector<8x16xf32>, vector<16x4xf32>, vector<8x4xf32> -> vector<8x4xf32>
    %c0_83 = arith.constant 0 : index
    %c0_84 = arith.constant 0 : index
    %221 = vector.load %arg6[%c0_83, %c0_84] : memref<8x16xf32, #tpu.memory_space<vmem>>, vector<8x16xf32>
    %cst_85 = arith.constant dense<0.000000e+00> : vector<8x32xf32>
    %222 = tpu.matmul %221, %7, %cst_85 {dimension_numbers = #tpu.dot_dimension_numbers<[1], [0], [0], [1], [0, 0, 1, 1], [], []>} : vector<8x16xf32>, vector<16x32xf32>, vector<8x32xf32> -> vector<8x32xf32>
    %c0_86 = arith.constant 0 : index
    %c0_87 = arith.constant 0 : index
    %223 = vector.load %arg5[%c0_86, %c0_87] : memref<8x16xf32, #tpu.memory_space<vmem>>, vector<8x16xf32>
    %cst_88 = arith.constant dense<0.000000e+00> : vector<8x32xf32>
    %224 = tpu.matmul %223, %218, %cst_88 {dimension_numbers = #tpu.dot_dimension_numbers<[1], [0], [0], [1], [0, 0, 1, 1], [], []>} : vector<8x16xf32>, vector<16x32xf32>, vector<8x32xf32> -> vector<8x32xf32>
    %c0_89 = arith.constant 0 : index
    %c0_90 = arith.constant 0 : index
    %225 = vector.load %arg20[%c0_89, %c0_90] : memref<4x128xf32, #tpu.memory_space<vmem>>, vector<4x128xf32>
    %cst_91 = arith.constant dense<0.000000e+00> : vector<8x128xf32>
    %226 = tpu.matmul %220, %225, %cst_91 {dimension_numbers = #tpu.dot_dimension_numbers<[1], [0], [0], [1], [0, 0, 1, 1], [], []>} : vector<8x4xf32>, vector<4x128xf32>, vector<8x128xf32> -> vector<8x128xf32>
    %c0_92 = arith.constant 0 : index
    %c0_93 = arith.constant 0 : index
    %227 = vector.load %arg21[%c0_92, %c0_93] : memref<32x128xf32, #tpu.memory_space<vmem>>, vector<32x128xf32>
    %cst_94 = arith.constant dense<0.000000e+00> : vector<8x128xf32>
    %228 = tpu.matmul %222, %227, %cst_94 {dimension_numbers = #tpu.dot_dimension_numbers<[1], [0], [0], [1], [0, 0, 1, 1], [], []>} : vector<8x32xf32>, vector<32x128xf32>, vector<8x128xf32> -> vector<8x128xf32>
    %229 = arith.addf %226, %228 : vector<8x128xf32>
    %c0_95 = arith.constant 0 : index
    %c0_96 = arith.constant 0 : index
    %230 = vector.load %arg22[%c0_95, %c0_96] : memref<32x128xf32, #tpu.memory_space<vmem>>, vector<32x128xf32>
    %cst_97 = arith.constant dense<0.000000e+00> : vector<8x128xf32>
    %231 = tpu.matmul %224, %230, %cst_97 {dimension_numbers = #tpu.dot_dimension_numbers<[1], [0], [0], [1], [0, 0, 1, 1], [], []>} : vector<8x32xf32>, vector<32x128xf32>, vector<8x128xf32> -> vector<8x128xf32>
    %232 = arith.addf %229, %231 : vector<8x128xf32>
    %c0_98 = arith.constant 0 : index
    %c0_99 = arith.constant 0 : index
    %233 = vector.load %arg23[%c0_98, %c0_99] : memref<1x128xf32, #tpu.memory_space<vmem>>, vector<1x128xf32>
    %234 = vector.broadcast %233 : vector<1x128xf32> to vector<8x128xf32>
    %235 = arith.addf %232, %234 : vector<8x128xf32>
    %cst_100 = arith.constant 0.000000e+00 : f32
    %236 = vector.broadcast %cst_100 : f32 to vector<8x128xf32>
    %237 = arith.maximumf %235, %236 : vector<8x128xf32>
    %c0_101 = arith.constant 0 : index
    %c0_102 = arith.constant 0 : index
    %238 = vector.load %arg24[%c0_101, %c0_102] : memref<8x128xf32, #tpu.memory_space<vmem>>, vector<8x128xf32>
    tpu.vector_store %arg24[%c0_101, %c0_102], %237 {strides = array<i32>} : memref<8x128xf32, #tpu.memory_space<vmem>>, vector<8x128xf32>,
    return
  }
}

</mosaic_0001>

<llo_original>
// kernel: tpu_custom_call.1
$region0: #{tpu_custom_call.1}
  #allocation0 [shape = 'u32[]', space=smem, size = 0x4, offset = 0x4, fixed_abs, tag = 'smem constant byte address 0x4 - core index']
  #allocation1 [shape = 'u32[144,128]{1,0:T(1,128)}', space=vmem, size = 0x12000, scoped, tag = 'internal scratch']
  %s0 = inlined_call_operand.vmem [shape: f32[16,4], index: 0, kind: input, shape index: {}]
  %s1 = inlined_call_operand.vmem [shape: f32[48,16], index: 1, kind: input, shape index: {}]
  %s2 = inlined_call_operand.hbm [shape: f32[16,32], index: 2, kind: input, shape index: {}]
  %s3 = inlined_call_operand.hbm [shape: f32[16,16], index: 3, kind: input, shape index: {}]
  %s4 = inlined_call_operand.vmem [shape: f32[48,16], index: 4, kind: input, shape index: {}]
  %s5 = inlined_call_operand.hbm [shape: f32[8,16], index: 5, kind: input, shape index: {}]
  %s6 = inlined_call_operand.hbm [shape: f32[8,16], index: 6, kind: input, shape index: {}]
  %s7 = inlined_call_operand.vmem [shape: f32[16,1], index: 7, kind: input, shape index: {}]
  %s8 = inlined_call_operand.hbm [shape: f32[4,32], index: 8, kind: input, shape index: {}]
  %s9 = inlined_call_operand.vmem [shape: f32[32,32], index: 9, kind: input, shape index: {}]
  %s10 = inlined_call_operand.vmem [shape: f32[32,32], index: 10, kind: input, shape index: {}]
  %s11 = inlined_call_operand.vmem [shape: f32[1,32], index: 11, kind: input, shape index: {}]
  %s12 = inlined_call_operand.hbm [shape: f32[4,32], index: 12, kind: input, shape index: {}]
  %s13 = inlined_call_operand.vmem [shape: f32[32,32], index: 13, kind: input, shape index: {}]
  %s14 = inlined_call_operand.vmem [shape: f32[32,32], index: 14, kind: input, shape index: {}]
  %s15 = inlined_call_operand.hbm [shape: f32[1,32], index: 15, kind: input, shape index: {}]
  %s16 = inlined_call_operand.hbm [shape: f32[4,32], index: 16, kind: input, shape index: {}]
  %s17 = inlined_call_operand.vmem [shape: f32[32,32], index: 17, kind: input, shape index: {}]
  %s18 = inlined_call_operand.vmem [shape: f32[32,32], index: 18, kind: input, shape index: {}]
  %s19 = inlined_call_operand.vmem [shape: f32[1,32], index: 19, kind: input, shape index: {}]
  %s20 = inlined_call_operand.vmem [shape: f32[4,128], index: 20, kind: input, shape index: {}]
  %s21 = inlined_call_operand.vmem [shape: f32[32,128], index: 21, kind: input, shape index: {}]
  %s22 = inlined_call_operand.hbm [shape: f32[32,128], index: 22, kind: input, shape index: {}]
  %s23 = inlined_call_operand.vmem [shape: f32[1,128], index: 23, kind: input, shape index: {}]
  %s24 = inlined_call_operand.hbm [shape: f32[8,128], index: 24, kind: output, shape index: {}]
  %s25 = sld [smem:[#allocation0]]
  $region142: #{tpu_custom_call.1} parent=0
    _
  %s27 = ssub.s32 1, %s25
  %s28 = scalar_select 0, %s27, %s25
  $region1: #{tpu_custom_call.1} parent=0
    #allocation2 [shape = 'u8[8192]{0}', space=vmem, size = 0x2000, scoped, tag = 'input window, operand 2, single buffered']
    #allocation3 [shape = 's32[1]{0}', space=sflag, size = 0x4, scoped, tag = 'scoped memory for tpu_custom_call.1']
    #allocation4 [shape = 's32[1]{0}', space=sflag, size = 0x4, scoped, tag = 'scoped memory for tpu_custom_call.1']
    #allocation5 [shape = 'u8[8192]{0}', space=vmem, size = 0x2000, scoped, tag = 'input window, operand 3, single buffered']
    #allocation6 [shape = 's32[1]{0}', space=sflag, size = 0x4, scoped, tag = 'scoped memory for tpu_custom_call.1']
    #allocation7 [shape = 'u8[4096]{0}', space=vmem, size = 0x1000, scoped, tag = 'input window, operand 5, single buffered']
    #allocation8 [shape = 'u8[4096]{0}', space=vmem, size = 0x1000, scoped, tag = 'input window, operand 6, single buffered']
    #allocation9 [shape = 's32[1]{0}', space=sflag, size = 0x4, scoped, tag = 'scoped memory for tpu_custom_call.1']
    #allocation10 [shape = 'u8[2048]{0}', space=vmem, size = 0x800, scoped, tag = 'input window, operand 8, single buffered']
    #allocation11 [shape = 'u8[2048]{0}', space=vmem, size = 0x800, scoped, tag = 'input window, operand 12, single buffered']
    #allocation12 [shape = 's32[1]{0}', space=sflag, size = 0x4, scoped, tag = 'scoped memory for tpu_custom_call.1']
    #allocation13 [shape = 'u8[512]{0}', space=vmem, size = 0x400, scoped, tag = 'input window, operand 15, single buffered']
    #allocation14 [shape = 'u8[2048]{0}', space=vmem, size = 0x800, scoped, tag = 'input window, operand 16, single buffered']
    #allocation15 [shape = 's32[1]{0}', space=sflag, size = 0x4, scoped, tag = 'scoped memory for tpu_custom_call.1']
    #allocation16 [shape = 'u8[16384]{0}', space=vmem, size = 0x4000, scoped, tag = 'input window, operand 22, single buffered']
    #allocation17 [shape = 'u8[4096]{0}', space=vmem, size = 0x1000, scoped, tag = 'output window, operand 0, single buffered']
    %29 = vsyncpa [#allocation3], 0
    %30 = vsyncpa [#allocation6], 0
    %31 = vsyncpa [#allocation9], 0
    %32 = vsyncpa [#allocation12], 0
    %33 = vsyncpa [#allocation15], 0
    %34 = vsyncpa [#allocation4], 0
    // Predicated region
    $region2: #{tpu_custom_call.1} parent=1 // pred_check
      _
    $region3: #{tpu_custom_call.1} parent=1 // pred_check_branch
      %36 = sbr.rel (0) target = $region5
    $region4: #{tpu_custom_call.1} parent=1 // pred_region
      _
    $region5: #{tpu_custom_call.1} parent=1 // pred_fallthru
      _
    // Predicated region
    $region6: #{tpu_custom_call.1} parent=1 // pred_check
      _
    $region7: #{tpu_custom_call.1} parent=1 // pred_check_branch
      %38 = sbr.rel (0) target = $region9
    $region8: #{tpu_custom_call.1} parent=1 // pred_region
      _
    $region9: #{tpu_custom_call.1} parent=1 // pred_fallthru
      _
    // Predicated region
    $region10: #{tpu_custom_call.1} parent=1 // pred_check
      _
    $region11: #{tpu_custom_call.1} parent=1 // pred_check_branch
      %40 = sbr.rel (0) target = $region13
    $region12: #{tpu_custom_call.1} parent=1 // pred_region
      %s42 = ssub.s32 256, 256
      %43 = vsyncadd [#allocation3], %s42
      %s44 = sshll.u32 [#allocation2], 4
      %s45 = int_to_ptr.vmem [resolvable:$true] %s44
      %50 = dma.hbm_to_vmem [thread:$0]  %s2, 256, %s45, [#allocation3], 128, 128, 8
    $region13: #{tpu_custom_call.1} parent=1 // pred_fallthru
      _
    // Predicated region
    $region14: #{tpu_custom_call.1} parent=1 // pred_check
      _
    $region15: #{tpu_custom_call.1} parent=1 // pred_check_branch
      %52 = sbr.rel (0) target = $region17
    $region16: #{tpu_custom_call.1} parent=1 // pred_region
      %s54 = ssub.s32 256, 256
      %55 = vsyncadd [#allocation6], %s54
      %s56 = sshll.u32 [#allocation5], 4
      %s57 = int_to_ptr.vmem [resolvable:$true] %s56
      %62 = dma.hbm_to_vmem [thread:$0]  %s3, 256, %s57, [#allocation6], 128, 128, 8
    $region17: #{tpu_custom_call.1} parent=1 // pred_fallthru
      _
    // Predicated region
    $region18: #{tpu_custom_call.1} parent=1 // pred_check
      _
    $region19: #{tpu_custom_call.1} parent=1 // pred_check_branch
      %64 = sbr.rel (0) target = $region21
    $region20: #{tpu_custom_call.1} parent=1 // pred_region
      _
    $region21: #{tpu_custom_call.1} parent=1 // pred_fallthru
      _
    // Predicated region
    $region22: #{tpu_custom_call.1} parent=1 // pred_check
      _
    $region23: #{tpu_custom_call.1} parent=1 // pred_check_branch
      %66 = sbr.rel (0) target = $region25
    $region24: #{tpu_custom_call.1} parent=1 // pred_region
      %s68 = ssub.s32 128, 128
      %69 = vsyncadd [#allocation6], %s68
      %s71 = sshll.u32 [#allocation7], 4
      %s72 = int_to_ptr.vmem [resolvable:$true] %s71
      %74 = dma.hbm_to_vmem [thread:$0]  %s5, 128, %s72, [#allocation6]
    $region25: #{tpu_custom_call.1} parent=1 // pred_fallthru
      _
    // Predicated region
    $region26: #{tpu_custom_call.1} parent=1 // pred_check
      _
    $region27: #{tpu_custom_call.1} parent=1 // pred_check_branch
      %76 = sbr.rel (0) target = $region29
    $region28: #{tpu_custom_call.1} parent=1 // pred_region
      %s78 = ssub.s32 128, 128
      %79 = vsyncadd [#allocation9], %s78
      %s81 = sshll.u32 [#allocation8], 4
      %s82 = int_to_ptr.vmem [resolvable:$true] %s81
      %84 = dma.hbm_to_vmem [thread:$0]  %s6, 128, %s82, [#allocation9]
    $region29: #{tpu_custom_call.1} parent=1 // pred_fallthru
      _
    // Predicated region
    $region30: #{tpu_custom_call.1} parent=1 // pred_check
      _
    $region31: #{tpu_custom_call.1} parent=1 // pred_check_branch
      %86 = sbr.rel (0) target = $region33
    $region32: #{tpu_custom_call.1} parent=1 // pred_region
      _
    $region33: #{tpu_custom_call.1} parent=1 // pred_fallthru
      _
    // Predicated region
    $region34: #{tpu_custom_call.1} parent=1 // pred_check
      _
    $region35: #{tpu_custom_call.1} parent=1 // pred_check_branch
      %88 = sbr.rel (0) target = $region37
    $region36: #{tpu_custom_call.1} parent=1 // pred_region
      %s90 = ssub.s32 64, 64
      %91 = vsyncadd [#allocation9], %s90
      %s93 = sshll.u32 [#allocation10], 4
      %s94 = int_to_ptr.vmem [resolvable:$true] %s93
      %96 = dma.hbm_to_vmem [thread:$0]  %s8, 64, %s94, [#allocation9]
    $region37: #{tpu_custom_call.1} parent=1 // pred_fallthru
      _
    // Predicated region
    $region38: #{tpu_custom_call.1} parent=1 // pred_check
      _
    $region39: #{tpu_custom_call.1} parent=1 // pred_check_branch
      %98 = sbr.rel (0) target = $region41
    $region40: #{tpu_custom_call.1} parent=1 // pred_region
      _
    $region41: #{tpu_custom_call.1} parent=1 // pred_fallthru
      _
    // Predicated region
    $region42: #{tpu_custom_call.1} parent=1 // pred_check
      _
    $region43: #{tpu_custom_call.1} parent=1 // pred_check_branch
      %100 = sbr.rel (0) target = $region45
    $region44: #{tpu_custom_call.1} parent=1 // pred_region
      _
    $region45: #{tpu_custom_call.1} parent=1 // pred_fallthru
      _
    // Predicated region
    $region46: #{tpu_custom_call.1} parent=1 // pred_check
      _
    $region47: #{tpu_custom_call.1} parent=1 // pred_check_branch
      %102 = sbr.rel (0) target = $region49
    $region48: #{tpu_custom_call.1} parent=1 // pred_region
      _
    $region49: #{tpu_custom_call.1} parent=1 // pred_fallthru
      _
    // Predicated region
    $region50: #{tpu_custom_call.1} parent=1 // pred_check
      _
    $region51: #{tpu_custom_call.1} parent=1 // pred_check_branch
      %104 = sbr.rel (0) target = $region53
    $region52: #{tpu_custom_call.1} parent=1 // pred_region
      %s106 = ssub.s32 64, 64
      %107 = vsyncadd [#allocation12], %s106
      %s109 = sshll.u32 [#allocation11], 4
      %s110 = int_to_ptr.vmem [resolvable:$true] %s109
      %112 = dma.hbm_to_vmem [thread:$0]  %s12, 64, %s110, [#allocation12]
    $region53: #{tpu_custom_call.1} parent=1 // pred_fallthru
      _
    // Predicated region
    $region54: #{tpu_custom_call.1} parent=1 // pred_check
      _
    $region55: #{tpu_custom_call.1} parent=1 // pred_check_branch
      %114 = sbr.rel (0) target = $region57
    $region56: #{tpu_custom_call.1} parent=1 // pred_region
      _
    $region57: #{tpu_custom_call.1} parent=1 // pred_fallthru
      _
    // Predicated region
    $region58: #{tpu_custom_call.1} parent=1 // pred_check
      _
    $region59: #{tpu_custom_call.1} parent=1 // pred_check_branch
      %116 = sbr.rel (0) target = $region61
    $region60: #{tpu_custom_call.1} parent=1 // pred_region
      _
    $region61: #{tpu_custom_call.1} parent=1 // pred_fallthru
      _
    // Predicated region
    $region62: #{tpu_custom_call.1} parent=1 // pred_check
      _
    $region63: #{tpu_custom_call.1} parent=1 // pred_check_branch
      %118 = sbr.rel (0) target = $region65
    $region64: #{tpu_custom_call.1} parent=1 // pred_region
      %s120 = ssub.s32 16, 16
      %121 = vsyncadd [#allocation12], %s120
      %s123 = sshll.u32 [#allocation13], 4
      %s124 = int_to_ptr.vmem [resolvable:$true] %s123
      %126 = dma.hbm_to_vmem [thread:$0]  %s15, 16, %s124, [#allocation12]
    $region65: #{tpu_custom_call.1} parent=1 // pred_fallthru
      _
    // Predicated region
    $region66: #{tpu_custom_call.1} parent=1 // pred_check
      _
    $region67: #{tpu_custom_call.1} parent=1 // pred_check_branch
      %128 = sbr.rel (0) target = $region69
    $region68: #{tpu_custom_call.1} parent=1 // pred_region
      %s130 = ssub.s32 64, 64
      %131 = vsyncadd [#allocation15], %s130
      %s133 = sshll.u32 [#allocation14], 4
      %s134 = int_to_ptr.vmem [resolvable:$true] %s133
      %136 = dma.hbm_to_vmem [thread:$0]  %s16, 64, %s134, [#allocation15]
    $region69: #{tpu_custom_call.1} parent=1 // pred_fallthru
      _
    // Predicated region
    $region70: #{tpu_custom_call.1} parent=1 // pred_check
      _
    $region71: #{tpu_custom_call.1} parent=1 // pred_check_branch
      %138 = sbr.rel (0) target = $region73
    $region72: #{tpu_custom_call.1} parent=1 // pred_region
      _
    $region73: #{tpu_custom_call.1} parent=1 // pred_fallthru
      _
    // Predicated region
    $region74: #{tpu_custom_call.1} parent=1 // pred_check
      _
    $region75: #{tpu_custom_call.1} parent=1 // pred_check_branch
      %140 = sbr.rel (0) target = $region77
    $region76: #{tpu_custom_call.1} parent=1 // pred_region
      _
    $region77: #{tpu_custom_call.1} parent=1 // pred_fallthru
      _
    // Predicated region
    $region78: #{tpu_custom_call.1} parent=1 // pred_check
      _
    $region79: #{tpu_custom_call.1} parent=1 // pred_check_branch
      %142 = sbr.rel (0) target = $region81
    $region80: #{tpu_custom_call.1} parent=1 // pred_region
      _
    $region81: #{tpu_custom_call.1} parent=1 // pred_fallthru
      _
    // Predicated region
    $region82: #{tpu_custom_call.1} parent=1 // pred_check
      _
    $region83: #{tpu_custom_call.1} parent=1 // pred_check_branch
      %144 = sbr.rel (0) target = $region85
    $region84: #{tpu_custom_call.1} parent=1 // pred_region
      _
    $region85: #{tpu_custom_call.1} parent=1 // pred_fallthru
      _
    // Predicated region
    $region86: #{tpu_custom_call.1} parent=1 // pred_check
      _
    $region87: #{tpu_custom_call.1} parent=1 // pred_check_branch
      %146 = sbr.rel (0) target = $region89
    $region88: #{tpu_custom_call.1} parent=1 // pred_region
      _
    $region89: #{tpu_custom_call.1} parent=1 // pred_fallthru
      _
    // Predicated region
    $region90: #{tpu_custom_call.1} parent=1 // pred_check
      _
    $region91: #{tpu_custom_call.1} parent=1 // pred_check_branch
      %148 = sbr.rel (0) target = $region93
    $region92: #{tpu_custom_call.1} parent=1 // pred_region
      %s150 = ssub.s32 512, 512
      %151 = vsyncadd [#allocation15], %s150
      %s152 = sshll.u32 [#allocation16], 4
      %s153 = int_to_ptr.vmem [resolvable:$true] %s152
      %158 = dma.hbm_to_vmem [thread:$0]  %s22, 512, %s153, [#allocation15], 128, 128, 8
    $region93: #{tpu_custom_call.1} parent=1 // pred_fallthru
      _
    // Predicated region
    $region94: #{tpu_custom_call.1} parent=1 // pred_check
      _
    $region95: #{tpu_custom_call.1} parent=1 // pred_check_branch
      %160 = sbr.rel (0) target = $region97
    $region96: #{tpu_custom_call.1} parent=1 // pred_region
      _
    $region97: #{tpu_custom_call.1} parent=1 // pred_fallthru
      _
    // Predicated region
    $region98: #{tpu_custom_call.1} parent=1 // pred_check
      _
    $region99: #{tpu_custom_call.1} parent=1 // pred_check_branch
      %162 = sbr.rel (0) target = $region101
    $region100: #{tpu_custom_call.1} parent=1 // pred_region
      %163 = dma.done [#allocation3], 256
    $region101: #{tpu_custom_call.1} parent=1 // pred_fallthru
      _
    // Predicated region
    $region102: #{tpu_custom_call.1} parent=1 // pred_check
      _
    $region103: #{tpu_custom_call.1} parent=1 // pred_check_branch
      %165 = sbr.rel (0) target = $region105
    $region104: #{tpu_custom_call.1} parent=1 // pred_region
      %166 = dma.done [#allocation6], 256
    $region105: #{tpu_custom_call.1} parent=1 // pred_fallthru
      _
    // Predicated region
    $region106: #{tpu_custom_call.1} parent=1 // pred_check
      _
    $region107: #{tpu_custom_call.1} parent=1 // pred_check_branch
      %168 = sbr.rel (0) target = $region109
    $region108: #{tpu_custom_call.1} parent=1 // pred_region
      %169 = dma.done [#allocation6], 128
    $region109: #{tpu_custom_call.1} parent=1 // pred_fallthru
      _
    // Predicated region
    $region110: #{tpu_custom_call.1} parent=1 // pred_check
      _
    $region111: #{tpu_custom_call.1} parent=1 // pred_check_branch
      %171 = sbr.rel (0) target = $region113
    $region112: #{tpu_custom_call.1} parent=1 // pred_region
      %172 = dma.done [#allocation9], 128
    $region113: #{tpu_custom_call.1} parent=1 // pred_fallthru
      _
    // Predicated region
    $region114: #{tpu_custom_call.1} parent=1 // pred_check
      _
    $region115: #{tpu_custom_call.1} parent=1 // pred_check_branch
      %174 = sbr.rel (0) target = $region117
    $region116: #{tpu_custom_call.1} parent=1 // pred_region
      %175 = dma.done [#allocation9], 64
    $region117: #{tpu_custom_call.1} parent=1 // pred_fallthru
      _
    // Predicated region
    $region118: #{tpu_custom_call.1} parent=1 // pred_check
      _
    $region119: #{tpu_custom_call.1} parent=1 // pred_check_branch
      %177 = sbr.rel (0) target = $region121
    $region120: #{tpu_custom_call.1} parent=1 // pred_region
      %178 = dma.done [#allocation12], 64
    $region121: #{tpu_custom_call.1} parent=1 // pred_fallthru
      _
    // Predicated region
    $region122: #{tpu_custom_call.1} parent=1 // pred_check
      _
    $region123: #{tpu_custom_call.1} parent=1 // pred_check_branch
      %180 = sbr.rel (0) target = $region125
    $region124: #{tpu_custom_call.1} parent=1 // pred_region
      %181 = dma.done [#allocation12], 16
    $region125: #{tpu_custom_call.1} parent=1 // pred_fallthru
      _
    // Predicated region
    $region126: #{tpu_custom_call.1} parent=1 // pred_check
      _
    $region127: #{tpu_custom_call.1} parent=1 // pred_check_branch
      %183 = sbr.rel (0) target = $region129
    $region128: #{tpu_custom_call.1} parent=1 // pred_region
      %184 = dma.done [#allocation15], 64
    $region129: #{tpu_custom_call.1} parent=1 // pred_fallthru
      _
    // Predicated region
    $region130: #{tpu_custom_call.1} parent=1 // pred_check
      _
    $region131: #{tpu_custom_call.1} parent=1 // pred_check_branch
      %186 = sbr.rel (0) target = $region133
    $region132: #{tpu_custom_call.1} parent=1 // pred_region
      %187 = dma.done [#allocation15], 512
    $region133: #{tpu_custom_call.1} parent=1 // pred_fallthru
      _
    %v188 = vld [vmem:[%s1] sm:$0xff]
    %v189 = vld [vmem:[%s1 + $0x8] sm:$0xff]
    %v190 = vld [vmem:[%s1 + $0x10] sm:$0xff]
    %v191 = vld [vmem:[%s1 + $0x18] sm:$0xff]
    %v192 = vld [vmem:[%s1 + $0x20] sm:$0xff]
    %v193 = vld [vmem:[%s1 + $0x28] sm:$0xff]
    %v194 = vld [vmem:[#allocation2] sm:$0xff]
    %v195 = vld [vmem:[#allocation2 + $0x8] sm:$0xff]
    %vm196 = vcmask 130048
    %v198 = vsel %vm196, %v188, 0
    %v201 = vsel %vm196, %v189, 0
    %v204 = vsel %vm196, %v190, 0
    %v207 = vsel %vm196, %v191, 0
    %v210 = vsel %vm196, %v192, 0
    %v213 = vsel %vm196, %v193, 0
    %215 = vmatprep.subr.mxu0 0.0
    %216 = vmatpush1.msra.mxu0 %v194
    %217 = vmatprep.subr.mxu0 0.0
    %218 = vmatpush1.msra.mxu0 %v195
    %219 = vmatprep.subr.mxu0 0.0
    %220 = vmatpush1.msra.mxu0 0.0
    %221 = vmatprep.subr.mxu0 0.0
    %222 = vmatpush1.msra.mxu0 0.0
    %223 = vmatprep.subr.mxu0 0.0
    %224 = vmatpush1.msra.mxu0 0.0
    %225 = vmatprep.subr.mxu0 0.0
    %226 = vmatpush1.msra.mxu0 0.0
    %227 = vmatprep.subr.mxu0 0.0
    %228 = vmatpush1.msra.mxu0 0.0
    %229 = vmatprep.subr.mxu0 0.0
    %230 = vmatpush1.msra.mxu0 0.0
    %231 = vmatprep.subr.mxu0 0.0
    %232 = vmatpush1.msra.mxu0 0.0
    %233 = vmatprep.subr.mxu0 0.0
    %234 = vmatpush1.msra.mxu0 0.0
    %235 = vmatprep.subr.mxu0 0.0
    %236 = vmatpush1.msra.mxu0 0.0
    %237 = vmatprep.subr.mxu0 0.0
    %238 = vmatpush1.msra.mxu0 0.0
    %239 = vmatprep.subr.mxu0 0.0
    %240 = vmatpush1.msra.mxu0 0.0
    %241 = vmatprep.subr.mxu0 0.0
    %242 = vmatpush1.msra.mxu0 0.0
    %243 = vmatprep.subr.mxu0 0.0
    %244 = vmatpush1.msra.mxu0 0.0
    %245 = vmatprep.subr.mxu0 0.0
    %246 = vmatpush1.msra.mxu0 0.0
    %247 = vmatprep.subr.mxu0 0.0
    %248 = vmatpush1.msra.mxu0 0.0
    %249 = vmatprep.subr.mxu0 0.0
    %250 = vmatpush1.msra.mxu0 0.0
    %251 = vmatprep.subr.mxu0 0.0
    %252 = vmatpush1.msra.mxu0 0.0
    %253 = vmatprep.subr.mxu0 0.0
    %254 = vmatpush1.msra.mxu0 0.0
    %255 = vmatprep.subr.mxu0 0.0
    %256 = vmatpush1.msra.mxu0 0.0
    %257 = vmatprep.subr.mxu0 0.0
    %258 = vmatpush1.msra.mxu0 0.0
    %259 = vmatprep.subr.mxu0 0.0
    %260 = vmatpush1.msra.mxu0 0.0
    %261 = vmatprep.subr.mxu0 0.0
    %262 = vmatpush1.msra.mxu0 0.0
    %263 = vmatprep.subr.mxu0 0.0
    %264 = vmatpush1.msra.mxu0 0.0
    %265 = vmatprep.subr.mxu0 0.0
    %266 = vmatpush1.msra.mxu0 0.0
    %267 = vmatprep.subr.mxu0 0.0
    %268 = vmatpush1.msra.mxu0 0.0
    %269 = vmatprep.subr.mxu0 0.0
    %270 = vmatpush1.msra.mxu0 0.0
    %271 = vmatprep.subr.mxu0 0.0
    %272 = vmatpush1.msra.mxu0 0.0
    %273 = vmatprep.subr.mxu0 0.0
    %274 = vmatpush1.msra.mxu0 0.0
    %275 = vmatprep.subr.mxu0 0.0
    %276 = vmatpush1.msra.mxu0 0.0
    %277 = vmatprep.subr.mxu0 0.0
    %278 = vmatpush1.msra.mxu0 0.0
    %279 = vmatprep.mubr.f32.mxu0 0.0
    %280 = vmatmul.mubr.f32.gmra.mrb[0].mxu0 %v198
    %v281 = vpop.f32.mrb[0].mxu0
    %v282 = vadd.f32 0.0, %v281
    %v283 = vpop.f32.mrb[0].mxu0
    %284 = vmatprep.mubr.f32.mxu0 0.0
    %285 = vmatmul.mubr.f32.gmra.mrb[0].mxu0 %v201
    %v286 = vpop.f32.mrb[0].mxu0
    %v287 = vadd.f32 0.0, %v286
    %v288 = vpop.f32.mrb[0].mxu0
    %289 = vmatprep.mubr.f32.mxu0 0.0
    %290 = vmatmul.mubr.f32.gmra.mrb[0].mxu0 %v204
    %v291 = vpop.f32.mrb[0].mxu0
    %v292 = vadd.f32 0.0, %v291
    %v293 = vpop.f32.mrb[0].mxu0
    %294 = vmatprep.mubr.f32.mxu0 0.0
    %295 = vmatmul.mubr.f32.gmra.mrb[0].mxu0 %v207
    %v296 = vpop.f32.mrb[0].mxu0
    %v297 = vadd.f32 0.0, %v296
    %v298 = vpop.f32.mrb[0].mxu0
    %299 = vmatprep.mubr.f32.mxu0 0.0
    %300 = vmatmul.mubr.f32.gmra.mrb[0].mxu0 %v210
    %v301 = vpop.f32.mrb[0].mxu0
    %v302 = vadd.f32 0.0, %v301
    %v303 = vpop.f32.mrb[0].mxu0
    %304 = vmatprep.mubr.f32.mxu0 0.0
    %305 = vmatmul.mubr.f32.gmra.mrb[0].mxu0 %v213
    %v306 = vpop.f32.mrb[0].mxu0
    %v307 = vadd.f32 0.0, %v306
    %v308 = vpop.f32.mrb[0].mxu0
    %309 = vdwg.mxu0
    %v310 = vmax.f32 %v282, %v292
    %v311 = vmax.f32 %v287, %v297
    %v312 = vmax.f32 %v310, %v302
    %v313 = vmax.f32 %v311, %v307
    %v314 = vld [vmem:[%s0] sm:$0xff]
    %v315 = vld [vmem:[%s0 + $0x8] sm:$0xff]
    %v316 = vld [vmem:[#allocation5] sm:$0xff]
    %v317 = vld [vmem:[#allocation5 + $0x8] sm:$0xff]
    %v319 = vsel %vm196, %v316, 0
    %v322 = vsel %vm196, %v317, 0
    %324 = vmatprep.subr.mxu0 0.0
    %325 = vmatpush1.msra.mxu0 %v314
    %326 = vmatprep.subr.mxu0 0.0
    %327 = vmatpush1.msra.mxu0 %v315
    %328 = vmatprep.subr.mxu0 0.0
    %329 = vmatpush1.msra.mxu0 0.0
    %330 = vmatprep.subr.mxu0 0.0
    %331 = vmatpush1.msra.mxu0 0.0
    %332 = vmatprep.subr.mxu0 0.0
    %333 = vmatpush1.msra.mxu0 0.0
    %334 = vmatprep.subr.mxu0 0.0
    %335 = vmatpush1.msra.mxu0 0.0
    %336 = vmatprep.subr.mxu0 0.0
    %337 = vmatpush1.msra.mxu0 0.0
    %338 = vmatprep.subr.mxu0 0.0
    %339 = vmatpush1.msra.mxu0 0.0
    %340 = vmatprep.subr.mxu0 0.0
    %341 = vmatpush1.msra.mxu0 0.0
    %342 = vmatprep.subr.mxu0 0.0
    %343 = vmatpush1.msra.mxu0 0.0
    %344 = vmatprep.subr.mxu0 0.0
    %345 = vmatpush1.msra.mxu0 0.0
    %346 = vmatprep.subr.mxu0 0.0
    %347 = vmatpush1.msra.mxu0 0.0
    %348 = vmatprep.subr.mxu0 0.0
    %349 = vmatpush1.msra.mxu0 0.0
    %350 = vmatprep.subr.mxu0 0.0
    %351 = vmatpush1.msra.mxu0 0.0
    %352 = vmatprep.subr.mxu0 0.0
    %353 = vmatpush1.msra.mxu0 0.0
    %354 = vmatprep.subr.mxu0 0.0
    %355 = vmatpush1.msra.mxu0 0.0
    %356 = vmatprep.subr.mxu0 0.0
    %357 = vmatpush1.msra.mxu0 0.0
    %358 = vmatprep.subr.mxu0 0.0
    %359 = vmatpush1.msra.mxu0 0.0
    %360 = vmatprep.subr.mxu0 0.0
    %361 = vmatpush1.msra.mxu0 0.0
    %362 = vmatprep.subr.mxu0 0.0
    %363 = vmatpush1.msra.mxu0 0.0
    %364 = vmatprep.subr.mxu0 0.0
    %365 = vmatpush1.msra.mxu0 0.0
    %366 = vmatprep.subr.mxu0 0.0
    %367 = vmatpush1.msra.mxu0 0.0
    %368 = vmatprep.subr.mxu0 0.0
    %369 = vmatpush1.msra.mxu0 0.0
    %370 = vmatprep.subr.mxu0 0.0
    %371 = vmatpush1.msra.mxu0 0.0
    %372 = vmatprep.subr.mxu0 0.0
    %373 = vmatpush1.msra.mxu0 0.0
    %374 = vmatprep.subr.mxu0 0.0
    %375 = vmatpush1.msra.mxu0 0.0
    %376 = vmatprep.subr.mxu0 0.0
    %377 = vmatpush1.msra.mxu0 0.0
    %378 = vmatprep.subr.mxu0 0.0
    %379 = vmatpush1.msra.mxu0 0.0
    %380 = vmatprep.subr.mxu0 0.0
    %381 = vmatpush1.msra.mxu0 0.0
    %382 = vmatprep.subr.mxu0 0.0
    %383 = vmatpush1.msra.mxu0 0.0
    %384 = vmatprep.subr.mxu0 0.0
    %385 = vmatpush1.msra.mxu0 0.0
    %386 = vmatprep.subr.mxu0 0.0
    %387 = vmatpush1.msra.mxu0 0.0
    %388 = vmatprep.mubr.f32.mxu0 0.0
    %389 = vmatmul.mubr.f32.gmra.mrb[0].mxu0 %v319
    %v390 = vpop.f32.mrb[0].mxu0
    %v391 = vadd.f32 0.0, %v390
    %v392 = vpop.f32.mrb[0].mxu0
    %393 = vmatprep.mubr.f32.mxu0 0.0
    %394 = vmatmul.mubr.f32.gmra.mrb[0].mxu0 %v322
    %v395 = vpop.f32.mrb[0].mxu0
    %v396 = vadd.f32 0.0, %v395
    %v397 = vpop.f32.mrb[0].mxu0
    %398 = vdwg.mxu0
    %399 = vmatprep.subr.mxu0 0.0
    %400 = vmatpush1.msra.mxu0 %v312
    %401 = vmatprep.subr.mxu0 0.0
    %402 = vmatpush1.msra.mxu0 %v313
    %403 = vmatprep.subr.mxu0 0.0
    %404 = vmatpush1.msra.mxu0 0.0
    %405 = vmatprep.subr.mxu0 0.0
    %406 = vmatpush1.msra.mxu0 0.0
    %407 = vmatprep.subr.mxu0 0.0
    %408 = vmatpush1.msra.mxu0 0.0
    %409 = vmatprep.subr.mxu0 0.0
    %410 = vmatpush1.msra.mxu0 0.0
    %411 = vmatprep.subr.mxu0 0.0
    %412 = vmatpush1.msra.mxu0 0.0
    %413 = vmatprep.subr.mxu0 0.0
    %414 = vmatpush1.msra.mxu0 0.0
    %415 = vmatprep.subr.mxu0 0.0
    %416 = vmatpush1.msra.mxu0 0.0
    %417 = vmatprep.subr.mxu0 0.0
    %418 = vmatpush1.msra.mxu0 0.0
    %419 = vmatprep.subr.mxu0 0.0
    %420 = vmatpush1.msra.mxu0 0.0
    %421 = vmatprep.subr.mxu0 0.0
    %422 = vmatpush1.msra.mxu0 0.0
    %423 = vmatprep.subr.mxu0 0.0
    %424 = vmatpush1.msra.mxu0 0.0
    %425 = vmatprep.subr.mxu0 0.0
    %426 = vmatpush1.msra.mxu0 0.0
    %427 = vmatprep.subr.mxu0 0.0
    %428 = vmatpush1.msra.mxu0 0.0
    %429 = vmatprep.subr.mxu0 0.0
    %430 = vmatpush1.msra.mxu0 0.0
    %431 = vmatprep.subr.mxu0 0.0
    %432 = vmatpush1.msra.mxu0 0.0
    %433 = vmatprep.subr.mxu0 0.0
    %434 = vmatpush1.msra.mxu0 0.0
    %435 = vmatprep.subr.mxu0 0.0
    %436 = vmatpush1.msra.mxu0 0.0
    %437 = vmatprep.subr.mxu0 0.0
    %438 = vmatpush1.msra.mxu0 0.0
    %439 = vmatprep.subr.mxu0 0.0
    %440 = vmatpush1.msra.mxu0 0.0
    %441 = vmatprep.subr.mxu0 0.0
    %442 = vmatpush1.msra.mxu0 0.0
    %443 = vmatprep.subr.mxu0 0.0
    %444 = vmatpush1.msra.mxu0 0.0
    %445 = vmatprep.subr.mxu0 0.0
    %446 = vmatpush1.msra.mxu0 0.0
    %447 = vmatprep.subr.mxu0 0.0
    %448 = vmatpush1.msra.mxu0 0.0
    %449 = vmatprep.subr.mxu0 0.0
    %450 = vmatpush1.msra.mxu0 0.0
    %451 = vmatprep.subr.mxu0 0.0
    %452 = vmatpush1.msra.mxu0 0.0
    %453 = vmatprep.subr.mxu0 0.0
    %454 = vmatpush1.msra.mxu0 0.0
    %455 = vmatprep.subr.mxu0 0.0
    %456 = vmatpush1.msra.mxu0 0.0
    %457 = vmatprep.subr.mxu0 0.0
    %458 = vmatpush1.msra.mxu0 0.0
    %459 = vmatprep.subr.mxu0 0.0
    %460 = vmatpush1.msra.mxu0 0.0
    %461 = vmatprep.subr.mxu0 0.0
    %462 = vmatpush1.msra.mxu0 0.0
    %463 = vmatprep.mubr.f32.mxu0 0.0
    %464 = vmatmul.mubr.f32.gmra.mrb[0].mxu0 %v319
    %v465 = vpop.f32.mrb[0].mxu0
    %v466 = vadd.f32 0.0, %v465
    %v467 = vpop.f32.mrb[0].mxu0
    %468 = vmatprep.mubr.f32.mxu0 0.0
    %469 = vmatmul.mubr.f32.gmra.mrb[0].mxu0 %v322
    %v470 = vpop.f32.mrb[0].mxu0
    %v471 = vadd.f32 0.0, %v470
    %v472 = vpop.f32.mrb[0].mxu0
    %473 = vdwg.mxu0
    %v474 = vld [vmem:[#allocation10] sm:$0xf]
    %v475 = vld [vmem:[%s9] sm:$0xff]
    %v476 = vld [vmem:[%s9 + $0x8] sm:$0xff]
    %v477 = vld [vmem:[%s9 + $0x10] sm:$0xff]
    %v478 = vld [vmem:[%s9 + $0x18] sm:$0xff]
    %vm479 = vcmask 261120
    %v481 = vsel %vm479, %v466, 0
    %v484 = vsel %vm479, %v471, 0
    %486 = vmatprep.subr.mxu0 0.0
    %487 = vmatpush1.msra.mxu0 %v475
    %488 = vmatprep.subr.mxu0 0.0
    %489 = vmatpush1.msra.mxu0 %v476
    %490 = vmatprep.subr.mxu0 0.0
    %491 = vmatpush1.msra.mxu0 %v477
    %492 = vmatprep.subr.mxu0 0.0
    %493 = vmatpush1.msra.mxu0 %v478
    %494 = vmatprep.subr.mxu0 0.0
    %495 = vmatpush1.msra.mxu0 0.0
    %496 = vmatprep.subr.mxu0 0.0
    %497 = vmatpush1.msra.mxu0 0.0
    %498 = vmatprep.subr.mxu0 0.0
    %499 = vmatpush1.msra.mxu0 0.0
    %500 = vmatprep.subr.mxu0 0.0
    %501 = vmatpush1.msra.mxu0 0.0
    %502 = vmatprep.subr.mxu0 0.0
    %503 = vmatpush1.msra.mxu0 0.0
    %504 = vmatprep.subr.mxu0 0.0
    %505 = vmatpush1.msra.mxu0 0.0
    %506 = vmatprep.subr.mxu0 0.0
    %507 = vmatpush1.msra.mxu0 0.0
    %508 = vmatprep.subr.mxu0 0.0
    %509 = vmatpush1.msra.mxu0 0.0
    %510 = vmatprep.subr.mxu0 0.0
    %511 = vmatpush1.msra.mxu0 0.0
    %512 = vmatprep.subr.mxu0 0.0
    %513 = vmatpush1.msra.mxu0 0.0
    %514 = vmatprep.subr.mxu0 0.0
    %515 = vmatpush1.msra.mxu0 0.0
    %516 = vmatprep.subr.mxu0 0.0
    %517 = vmatpush1.msra.mxu0 0.0
    %518 = vmatprep.subr.mxu0 0.0
    %519 = vmatpush1.msra.mxu0 0.0
    %520 = vmatprep.subr.mxu0 0.0
    %521 = vmatpush1.msra.mxu0 0.0
    %522 = vmatprep.subr.mxu0 0.0
    %523 = vmatpush1.msra.mxu0 0.0
    %524 = vmatprep.subr.mxu0 0.0
    %525 = vmatpush1.msra.mxu0 0.0
    %526 = vmatprep.subr.mxu0 0.0
    %527 = vmatpush1.msra.mxu0 0.0
    %528 = vmatprep.subr.mxu0 0.0
    %529 = vmatpush1.msra.mxu0 0.0
    %530 = vmatprep.subr.mxu0 0.0
    %531 = vmatpush1.msra.mxu0 0.0
    %532 = vmatprep.subr.mxu0 0.0
    %533 = vmatpush1.msra.mxu0 0.0
    %534 = vmatprep.subr.mxu0 0.0
    %535 = vmatpush1.msra.mxu0 0.0
    %536 = vmatprep.subr.mxu0 0.0
    %537 = vmatpush1.msra.mxu0 0.0
    %538 = vmatprep.subr.mxu0 0.0
    %539 = vmatpush1.msra.mxu0 0.0
    %540 = vmatprep.subr.mxu0 0.0
    %541 = vmatpush1.msra.mxu0 0.0
    %542 = vmatprep.subr.mxu0 0.0
    %543 = vmatpush1.msra.mxu0 0.0
    %544 = vmatprep.subr.mxu0 0.0
    %545 = vmatpush1.msra.mxu0 0.0
    %546 = vmatprep.subr.mxu0 0.0
    %547 = vmatpush1.msra.mxu0 0.0
    %548 = vmatprep.subr.mxu0 0.0
    %549 = vmatpush1.msra.mxu0 0.0
    %550 = vmatprep.mubr.f32.mxu0 0.0
    %551 = vmatmul.mubr.f32.gmra.mrb[0].mxu0 %v481
    %v552 = vpop.f32.mrb[0].mxu0
    %v553 = vadd.f32 0.0, %v552
    %v554 = vpop.f32.mrb[0].mxu0
    %555 = vmatprep.mubr.f32.mxu0 0.0
    %556 = vmatmul.mubr.f32.gmra.mrb[0].mxu0 %v484
    %v557 = vpop.f32.mrb[0].mxu0
    %v558 = vadd.f32 0.0, %v557
    %v559 = vpop.f32.mrb[0].mxu0
    %560 = vdwg.mxu0
    %vm561 = vcmask 31744
    %v563 = vsel %vm561, %v391, 0
    %v566 = vsel %vm561, %v396, 0
    %vm568 = vcmask 1043456
    %v570 = vsel %vm568, %v474, 0
    %572 = vmatprep.subr.mxu0 0.0
    %573 = vmatpush1.msra.mxu0 %v570
    %574 = vmatprep.subr.mxu0 0.0
    %575 = vmatpush1.msra.mxu0 0.0
    %576 = vmatprep.subr.mxu0 0.0
    %577 = vmatpush1.msra.mxu0 0.0
    %578 = vmatprep.subr.mxu0 0.0
    %579 = vmatpush1.msra.mxu0 0.0
    %580 = vmatprep.subr.mxu0 0.0
    %581 = vmatpush1.msra.mxu0 0.0
    %582 = vmatprep.subr.mxu0 0.0
    %583 = vmatpush1.msra.mxu0 0.0
    %584 = vmatprep.subr.mxu0 0.0
    %585 = vmatpush1.msra.mxu0 0.0
    %586 = vmatprep.subr.mxu0 0.0
    %587 = vmatpush1.msra.mxu0 0.0
    %588 = vmatprep.subr.mxu0 0.0
    %589 = vmatpush1.msra.mxu0 0.0
    %590 = vmatprep.subr.mxu0 0.0
    %591 = vmatpush1.msra.mxu0 0.0
    %592 = vmatprep.subr.mxu0 0.0
    %593 = vmatpush1.msra.mxu0 0.0
    %594 = vmatprep.subr.mxu0 0.0
    %595 = vmatpush1.msra.mxu0 0.0
    %596 = vmatprep.subr.mxu0 0.0
    %597 = vmatpush1.msra.mxu0 0.0
    %598 = vmatprep.subr.mxu0 0.0
    %599 = vmatpush1.msra.mxu0 0.0
    %600 = vmatprep.subr.mxu0 0.0
    %601 = vmatpush1.msra.mxu0 0.0
    %602 = vmatprep.subr.mxu0 0.0
    %603 = vmatpush1.msra.mxu0 0.0
    %604 = vmatprep.subr.mxu0 0.0
    %605 = vmatpush1.msra.mxu0 0.0
    %606 = vmatprep.subr.mxu0 0.0
    %607 = vmatpush1.msra.mxu0 0.0
    %608 = vmatprep.subr.mxu0 0.0
    %609 = vmatpush1.msra.mxu0 0.0
    %610 = vmatprep.subr.mxu0 0.0
    %611 = vmatpush1.msra.mxu0 0.0
    %612 = vmatprep.subr.mxu0 0.0
    %613 = vmatpush1.msra.mxu0 0.0
    %614 = vmatprep.subr.mxu0 0.0
    %615 = vmatpush1.msra.mxu0 0.0
    %616 = vmatprep.subr.mxu0 0.0
    %617 = vmatpush1.msra.mxu0 0.0
    %618 = vmatprep.subr.mxu0 0.0
    %619 = vmatpush1.msra.mxu0 0.0
    %620 = vmatprep.subr.mxu0 0.0
    %621 = vmatpush1.msra.mxu0 0.0
    %622 = vmatprep.subr.mxu0 0.0
    %623 = vmatpush1.msra.mxu0 0.0
    %624 = vmatprep.subr.mxu0 0.0
    %625 = vmatpush1.msra.mxu0 0.0
    %626 = vmatprep.subr.mxu0 0.0
    %627 = vmatpush1.msra.mxu0 0.0
    %628 = vmatprep.subr.mxu0 0.0
    %629 = vmatpush1.msra.mxu0 0.0
    %630 = vmatprep.subr.mxu0 0.0
    %631 = vmatpush1.msra.mxu0 0.0
    %632 = vmatprep.subr.mxu0 0.0
    %633 = vmatpush1.msra.mxu0 0.0
    %634 = vmatprep.subr.mxu0 0.0
    %635 = vmatpush1.msra.mxu0 0.0
    %636 = vmatprep.mubr.f32.mxu0 0.0
    %637 = vmatmul.mubr.f32.gmra.mrb[0].mxu0 %v563
    %v638 = vpop.f32.mrb[0].mxu0
    %v639 = vadd.f32 %v553, %v638
    %v640 = vpop.f32.mrb[0].mxu0
    %641 = vmatprep.mubr.f32.mxu0 0.0
    %642 = vmatmul.mubr.f32.gmra.mrb[0].mxu0 %v566
    %v643 = vpop.f32.mrb[0].mxu0
    %v644 = vadd.f32 %v558, %v643
    %v645 = vpop.f32.mrb[0].mxu0
    %646 = vdwg.mxu0
    %v647 = vld [vmem:[#allocation11] sm:$0xf]
    %v648 = vld [vmem:[%s13] sm:$0xff]
    %v649 = vld [vmem:[%s13 + $0x8] sm:$0xff]
    %v650 = vld [vmem:[%s13 + $0x10] sm:$0xff]
    %v651 = vld [vmem:[%s13 + $0x18] sm:$0xff]
    %652 = vmatprep.subr.mxu0 0.0
    %653 = vmatpush1.msra.mxu0 %v648
    %654 = vmatprep.subr.mxu0 0.0
    %655 = vmatpush1.msra.mxu0 %v649
    %656 = vmatprep.subr.mxu0 0.0
    %657 = vmatpush1.msra.mxu0 %v650
    %658 = vmatprep.subr.mxu0 0.0
    %659 = vmatpush1.msra.mxu0 %v651
    %660 = vmatprep.subr.mxu0 0.0
    %661 = vmatpush1.msra.mxu0 0.0
    %662 = vmatprep.subr.mxu0 0.0
    %663 = vmatpush1.msra.mxu0 0.0
    %664 = vmatprep.subr.mxu0 0.0
    %665 = vmatpush1.msra.mxu0 0.0
    %666 = vmatprep.subr.mxu0 0.0
    %667 = vmatpush1.msra.mxu0 0.0
    %668 = vmatprep.subr.mxu0 0.0
    %669 = vmatpush1.msra.mxu0 0.0
    %670 = vmatprep.subr.mxu0 0.0
    %671 = vmatpush1.msra.mxu0 0.0
    %672 = vmatprep.subr.mxu0 0.0
    %673 = vmatpush1.msra.mxu0 0.0
    %674 = vmatprep.subr.mxu0 0.0
    %675 = vmatpush1.msra.mxu0 0.0
    %676 = vmatprep.subr.mxu0 0.0
    %677 = vmatpush1.msra.mxu0 0.0
    %678 = vmatprep.subr.mxu0 0.0
    %679 = vmatpush1.msra.mxu0 0.0
    %680 = vmatprep.subr.mxu0 0.0
    %681 = vmatpush1.msra.mxu0 0.0
    %682 = vmatprep.subr.mxu0 0.0
    %683 = vmatpush1.msra.mxu0 0.0
    %684 = vmatprep.subr.mxu0 0.0
    %685 = vmatpush1.msra.mxu0 0.0
    %686 = vmatprep.subr.mxu0 0.0
    %687 = vmatpush1.msra.mxu0 0.0
    %688 = vmatprep.subr.mxu0 0.0
    %689 = vmatpush1.msra.mxu0 0.0
    %690 = vmatprep.subr.mxu0 0.0
    %691 = vmatpush1.msra.mxu0 0.0
    %692 = vmatprep.subr.mxu0 0.0
    %693 = vmatpush1.msra.mxu0 0.0
    %694 = vmatprep.subr.mxu0 0.0
    %695 = vmatpush1.msra.mxu0 0.0
    %696 = vmatprep.subr.mxu0 0.0
    %697 = vmatpush1.msra.mxu0 0.0
    %698 = vmatprep.subr.mxu0 0.0
    %699 = vmatpush1.msra.mxu0 0.0
    %700 = vmatprep.subr.mxu0 0.0
    %701 = vmatpush1.msra.mxu0 0.0
    %702 = vmatprep.subr.mxu0 0.0
    %703 = vmatpush1.msra.mxu0 0.0
    %704 = vmatprep.subr.mxu0 0.0
    %705 = vmatpush1.msra.mxu0 0.0
    %706 = vmatprep.subr.mxu0 0.0
    %707 = vmatpush1.msra.mxu0 0.0
    %708 = vmatprep.subr.mxu0 0.0
    %709 = vmatpush1.msra.mxu0 0.0
    %710 = vmatprep.subr.mxu0 0.0
    %711 = vmatpush1.msra.mxu0 0.0
    %712 = vmatprep.subr.mxu0 0.0
    %713 = vmatpush1.msra.mxu0 0.0
    %714 = vmatprep.subr.mxu0 0.0
    %715 = vmatpush1.msra.mxu0 0.0
    %716 = vmatprep.mubr.f32.mxu0 0.0
    %717 = vmatmul.mubr.f32.gmra.mrb[0].mxu0 %v481
    %v718 = vpop.f32.mrb[0].mxu0
    %v719 = vadd.f32 0.0, %v718
    %v720 = vpop.f32.mrb[0].mxu0
    %721 = vmatprep.mubr.f32.mxu0 0.0
    %722 = vmatmul.mubr.f32.gmra.mrb[0].mxu0 %v484
    %v723 = vpop.f32.mrb[0].mxu0
    %v724 = vadd.f32 0.0, %v723
    %v725 = vpop.f32.mrb[0].mxu0
    %726 = vdwg.mxu0
    %v728 = vsel %vm568, %v647, 0
    %730 = vmatprep.subr.mxu0 0.0
    %731 = vmatpush1.msra.mxu0 %v728
    %732 = vmatprep.subr.mxu0 0.0
    %733 = vmatpush1.msra.mxu0 0.0
    %734 = vmatprep.subr.mxu0 0.0
    %735 = vmatpush1.msra.mxu0 0.0
    %736 = vmatprep.subr.mxu0 0.0
    %737 = vmatpush1.msra.mxu0 0.0
    %738 = vmatprep.subr.mxu0 0.0
    %739 = vmatpush1.msra.mxu0 0.0
    %740 = vmatprep.subr.mxu0 0.0
    %741 = vmatpush1.msra.mxu0 0.0
    %742 = vmatprep.subr.mxu0 0.0
    %743 = vmatpush1.msra.mxu0 0.0
    %744 = vmatprep.subr.mxu0 0.0
    %745 = vmatpush1.msra.mxu0 0.0
    %746 = vmatprep.subr.mxu0 0.0
    %747 = vmatpush1.msra.mxu0 0.0
    %748 = vmatprep.subr.mxu0 0.0
    %749 = vmatpush1.msra.mxu0 0.0
    %750 = vmatprep.subr.mxu0 0.0
    %751 = vmatpush1.msra.mxu0 0.0
    %752 = vmatprep.subr.mxu0 0.0
    %753 = vmatpush1.msra.mxu0 0.0
    %754 = vmatprep.subr.mxu0 0.0
    %755 = vmatpush1.msra.mxu0 0.0
    %756 = vmatprep.subr.mxu0 0.0
    %757 = vmatpush1.msra.mxu0 0.0
    %758 = vmatprep.subr.mxu0 0.0
    %759 = vmatpush1.msra.mxu0 0.0
    %760 = vmatprep.subr.mxu0 0.0
    %761 = vmatpush1.msra.mxu0 0.0
    %762 = vmatprep.subr.mxu0 0.0
    %763 = vmatpush1.msra.mxu0 0.0
    %764 = vmatprep.subr.mxu0 0.0
    %765 = vmatpush1.msra.mxu0 0.0
    %766 = vmatprep.subr.mxu0 0.0
    %767 = vmatpush1.msra.mxu0 0.0
    %768 = vmatprep.subr.mxu0 0.0
    %769 = vmatpush1.msra.mxu0 0.0
    %770 = vmatprep.subr.mxu0 0.0
    %771 = vmatpush1.msra.mxu0 0.0
    %772 = vmatprep.subr.mxu0 0.0
    %773 = vmatpush1.msra.mxu0 0.0
    %774 = vmatprep.subr.mxu0 0.0
    %775 = vmatpush1.msra.mxu0 0.0
    %776 = vmatprep.subr.mxu0 0.0
    %777 = vmatpush1.msra.mxu0 0.0
    %778 = vmatprep.subr.mxu0 0.0
    %779 = vmatpush1.msra.mxu0 0.0
    %780 = vmatprep.subr.mxu0 0.0
    %781 = vmatpush1.msra.mxu0 0.0
    %782 = vmatprep.subr.mxu0 0.0
    %783 = vmatpush1.msra.mxu0 0.0
    %784 = vmatprep.subr.mxu0 0.0
    %785 = vmatpush1.msra.mxu0 0.0
    %786 = vmatprep.subr.mxu0 0.0
    %787 = vmatpush1.msra.mxu0 0.0
    %788 = vmatprep.subr.mxu0 0.0
    %789 = vmatpush1.msra.mxu0 0.0
    %790 = vmatprep.subr.mxu0 0.0
    %791 = vmatpush1.msra.mxu0 0.0
    %792 = vmatprep.subr.mxu0 0.0
    %793 = vmatpush1.msra.mxu0 0.0
    %794 = vmatprep.mubr.f32.mxu0 0.0
    %795 = vmatmul.mubr.f32.gmra.mrb[0].mxu0 %v563
    %v796 = vpop.f32.mrb[0].mxu0
    %v797 = vadd.f32 %v719, %v796
    %v798 = vpop.f32.mrb[0].mxu0
    %799 = vmatprep.mubr.f32.mxu0 0.0
    %800 = vmatmul.mubr.f32.gmra.mrb[0].mxu0 %v566
    %v801 = vpop.f32.mrb[0].mxu0
    %v802 = vadd.f32 %v724, %v801
    %v803 = vpop.f32.mrb[0].mxu0
    %804 = vdwg.mxu0
    %v805 = vld [vmem:[#allocation14] sm:$0xf]
    %v806 = vld [vmem:[%s17] sm:$0xff]
    %v807 = vld [vmem:[%s17 + $0x8] sm:$0xff]
    %v808 = vld [vmem:[%s17 + $0x10] sm:$0xff]
    %v809 = vld [vmem:[%s17 + $0x18] sm:$0xff]
    %810 = vmatprep.subr.mxu0 0.0
    %811 = vmatpush1.msra.mxu0 %v806
    %812 = vmatprep.subr.mxu0 0.0
    %813 = vmatpush1.msra.mxu0 %v807
    %814 = vmatprep.subr.mxu0 0.0
    %815 = vmatpush1.msra.mxu0 %v808
    %816 = vmatprep.subr.mxu0 0.0
    %817 = vmatpush1.msra.mxu0 %v809
    %818 = vmatprep.subr.mxu0 0.0
    %819 = vmatpush1.msra.mxu0 0.0
    %820 = vmatprep.subr.mxu0 0.0
    %821 = vmatpush1.msra.mxu0 0.0
    %822 = vmatprep.subr.mxu0 0.0
    %823 = vmatpush1.msra.mxu0 0.0
    %824 = vmatprep.subr.mxu0 0.0
    %825 = vmatpush1.msra.mxu0 0.0
    %826 = vmatprep.subr.mxu0 0.0
    %827 = vmatpush1.msra.mxu0 0.0
    %828 = vmatprep.subr.mxu0 0.0
    %829 = vmatpush1.msra.mxu0 0.0
    %830 = vmatprep.subr.mxu0 0.0
    %831 = vmatpush1.msra.mxu0 0.0
    %832 = vmatprep.subr.mxu0 0.0
    %833 = vmatpush1.msra.mxu0 0.0
    %834 = vmatprep.subr.mxu0 0.0
    %835 = vmatpush1.msra.mxu0 0.0
    %836 = vmatprep.subr.mxu0 0.0
    %837 = vmatpush1.msra.mxu0 0.0
    %838 = vmatprep.subr.mxu0 0.0
    %839 = vmatpush1.msra.mxu0 0.0
    %840 = vmatprep.subr.mxu0 0.0
    %841 = vmatpush1.msra.mxu0 0.0
    %842 = vmatprep.subr.mxu0 0.0
    %843 = vmatpush1.msra.mxu0 0.0
    %844 = vmatprep.subr.mxu0 0.0
    %845 = vmatpush1.msra.mxu0 0.0
    %846 = vmatprep.subr.mxu0 0.0
    %847 = vmatpush1.msra.mxu0 0.0
    %848 = vmatprep.subr.mxu0 0.0
    %849 = vmatpush1.msra.mxu0 0.0
    %850 = vmatprep.subr.mxu0 0.0
    %851 = vmatpush1.msra.mxu0 0.0
    %852 = vmatprep.subr.mxu0 0.0
    %853 = vmatpush1.msra.mxu0 0.0
    %854 = vmatprep.subr.mxu0 0.0
    %855 = vmatpush1.msra.mxu0 0.0
    %856 = vmatprep.subr.mxu0 0.0
    %857 = vmatpush1.msra.mxu0 0.0
    %858 = vmatprep.subr.mxu0 0.0
    %859 = vmatpush1.msra.mxu0 0.0
    %860 = vmatprep.subr.mxu0 0.0
    %861 = vmatpush1.msra.mxu0 0.0
    %862 = vmatprep.subr.mxu0 0.0
    %863 = vmatpush1.msra.mxu0 0.0
    %864 = vmatprep.subr.mxu0 0.0
    %865 = vmatpush1.msra.mxu0 0.0
    %866 = vmatprep.subr.mxu0 0.0
    %867 = vmatpush1.msra.mxu0 0.0
    %868 = vmatprep.subr.mxu0 0.0
    %869 = vmatpush1.msra.mxu0 0.0
    %870 = vmatprep.subr.mxu0 0.0
    %871 = vmatpush1.msra.mxu0 0.0
    %872 = vmatprep.subr.mxu0 0.0
    %873 = vmatpush1.msra.mxu0 0.0
    %874 = vmatprep.mubr.f32.mxu0 0.0
    %875 = vmatmul.mubr.f32.gmra.mrb[0].mxu0 %v481
    %v876 = vpop.f32.mrb[0].mxu0
    %v877 = vadd.f32 0.0, %v876
    %v878 = vpop.f32.mrb[0].mxu0
    %879 = vmatprep.mubr.f32.mxu0 0.0
    %880 = vmatmul.mubr.f32.gmra.mrb[0].mxu0 %v484
    %v881 = vpop.f32.mrb[0].mxu0
    %v882 = vadd.f32 0.0, %v881
    %v883 = vpop.f32.mrb[0].mxu0
    %884 = vdwg.mxu0
    %v886 = vsel %vm568, %v805, 0
    %888 = vmatprep.subr.mxu0 0.0
    %889 = vmatpush1.msra.mxu0 %v886
    %890 = vmatprep.subr.mxu0 0.0
    %891 = vmatpush1.msra.mxu0 0.0
    %892 = vmatprep.subr.mxu0 0.0
    %893 = vmatpush1.msra.mxu0 0.0
    %894 = vmatprep.subr.mxu0 0.0
    %895 = vmatpush1.msra.mxu0 0.0
    %896 = vmatprep.subr.mxu0 0.0
    %897 = vmatpush1.msra.mxu0 0.0
    %898 = vmatprep.subr.mxu0 0.0
    %899 = vmatpush1.msra.mxu0 0.0
    %900 = vmatprep.subr.mxu0 0.0
    %901 = vmatpush1.msra.mxu0 0.0
    %902 = vmatprep.subr.mxu0 0.0
    %903 = vmatpush1.msra.mxu0 0.0
    %904 = vmatprep.subr.mxu0 0.0
    %905 = vmatpush1.msra.mxu0 0.0
    %906 = vmatprep.subr.mxu0 0.0
    %907 = vmatpush1.msra.mxu0 0.0
    %908 = vmatprep.subr.mxu0 0.0
    %909 = vmatpush1.msra.mxu0 0.0
    %910 = vmatprep.subr.mxu0 0.0
    %911 = vmatpush1.msra.mxu0 0.0
    %912 = vmatprep.subr.mxu0 0.0
    %913 = vmatpush1.msra.mxu0 0.0
    %914 = vmatprep.subr.mxu0 0.0
    %915 = vmatpush1.msra.mxu0 0.0
    %916 = vmatprep.subr.mxu0 0.0
    %917 = vmatpush1.msra.mxu0 0.0
    %918 = vmatprep.subr.mxu0 0.0
    %919 = vmatpush1.msra.mxu0 0.0
    %920 = vmatprep.subr.mxu0 0.0
    %921 = vmatpush1.msra.mxu0 0.0
    %922 = vmatprep.subr.mxu0 0.0
    %923 = vmatpush1.msra.mxu0 0.0
    %924 = vmatprep.subr.mxu0 0.0
    %925 = vmatpush1.msra.mxu0 0.0
    %926 = vmatprep.subr.mxu0 0.0
    %927 = vmatpush1.msra.mxu0 0.0
    %928 = vmatprep.subr.mxu0 0.0
    %929 = vmatpush1.msra.mxu0 0.0
    %930 = vmatprep.subr.mxu0 0.0
    %931 = vmatpush1.msra.mxu0 0.0
    %932 = vmatprep.subr.mxu0 0.0
    %933 = vmatpush1.msra.mxu0 0.0
    %934 = vmatprep.subr.mxu0 0.0
    %935 = vmatpush1.msra.mxu0 0.0
    %936 = vmatprep.subr.mxu0 0.0
    %937 = vmatpush1.msra.mxu0 0.0
    %938 = vmatprep.subr.mxu0 0.0
    %939 = vmatpush1.msra.mxu0 0.0
    %940 = vmatprep.subr.mxu0 0.0
    %941 = vmatpush1.msra.mxu0 0.0
    %942 = vmatprep.subr.mxu0 0.0
    %943 = vmatpush1.msra.mxu0 0.0
    %944 = vmatprep.subr.mxu0 0.0
    %945 = vmatpush1.msra.mxu0 0.0
    %946 = vmatprep.subr.mxu0 0.0
    %947 = vmatpush1.msra.mxu0 0.0
    %948 = vmatprep.subr.mxu0 0.0
    %949 = vmatpush1.msra.mxu0 0.0
    %950 = vmatprep.subr.mxu0 0.0
    %951 = vmatpush1.msra.mxu0 0.0
    %952 = vmatprep.mubr.f32.mxu0 0.0
    %953 = vmatmul.mubr.f32.gmra.mrb[0].mxu0 %v563
    %v954 = vpop.f32.mrb[0].mxu0
    %v955 = vadd.f32 %v877, %v954
    %v956 = vpop.f32.mrb[0].mxu0
    %957 = vmatprep.mubr.f32.mxu0 0.0
    %958 = vmatmul.mubr.f32.gmra.mrb[0].mxu0 %v566
    %v959 = vpop.f32.mrb[0].mxu0
    %v960 = vadd.f32 %v882, %v959
    %v961 = vpop.f32.mrb[0].mxu0
    %962 = vdwg.mxu0
    %v963 = vld [vmem:[%s7] sm:$0xff]
    %v964 = vld [vmem:[%s7 + $0x8] sm:$0xff]
    %v965 = vld [vmem:[%s4] sm:$0xff]
    %v966 = vld [vmem:[%s4 + $0x8] sm:$0xff]
    %v967 = vld [vmem:[%s4 + $0x10] sm:$0xff]
    %v968 = vld [vmem:[%s4 + $0x18] sm:$0xff]
    %v969 = vld [vmem:[%s4 + $0x20] sm:$0xff]
    %v970 = vld [vmem:[%s4 + $0x28] sm:$0xff]
    %v971 = vld [vmem:[%s14] sm:$0xff]
    %v972 = vld [vmem:[%s14 + $0x8] sm:$0xff]
    %v973 = vld [vmem:[%s14 + $0x10] sm:$0xff]
    %v974 = vld [vmem:[%s14 + $0x18] sm:$0xff]
    %v975 = vld [vmem:[#allocation13] sm:$0x1]
    %v976 = vld [vmem:[%s10] sm:$0xff]
    %v977 = vld [vmem:[%s10 + $0x8] sm:$0xff]
    %v978 = vld [vmem:[%s10 + $0x10] sm:$0xff]
    %v979 = vld [vmem:[%s10 + $0x18] sm:$0xff]
    %v980 = vld [vmem:[%s11] sm:$0x1]
    %v981 = vld [vmem:[%s18] sm:$0xff]
    %v982 = vld [vmem:[%s18 + $0x8] sm:$0xff]
    %v983 = vld [vmem:[%s18 + $0x10] sm:$0xff]
    %v984 = vld [vmem:[%s18 + $0x18] sm:$0xff]
    %v985 = vld [vmem:[%s19] sm:$0x1]
    %v987 = vlaneseq
    %v988 = vshrl.u32 %v987, 7
    %v989 = vsub.s32 0, %v988
    %v990 = vrot.slane %v975, %v989
    %v993 = vsel %vm479, 0.0, 0
    %995 = vmatprep.subr.mxu0 0.0
    %996 = vmatpush1.msra.mxu0 %v971
    %997 = vmatprep.subr.mxu0 0.0
    %998 = vmatpush1.msra.mxu0 %v972
    %999 = vmatprep.subr.mxu0 0.0
    %1000 = vmatpush1.msra.mxu0 %v973
    %1001 = vmatprep.subr.mxu0 0.0
    %1002 = vmatpush1.msra.mxu0 %v974
    %1003 = vmatprep.subr.mxu0 0.0
    %1004 = vmatpush1.msra.mxu0 0.0
    %1005 = vmatprep.subr.mxu0 0.0
    %1006 = vmatpush1.msra.mxu0 0.0
    %1007 = vmatprep.subr.mxu0 0.0
    %1008 = vmatpush1.msra.mxu0 0.0
    %1009 = vmatprep.subr.mxu0 0.0
    %1010 = vmatpush1.msra.mxu0 0.0
    %1011 = vmatprep.subr.mxu0 0.0
    %1012 = vmatpush1.msra.mxu0 0.0
    %1013 = vmatprep.subr.mxu0 0.0
    %1014 = vmatpush1.msra.mxu0 0.0
    %1015 = vmatprep.subr.mxu0 0.0
    %1016 = vmatpush1.msra.mxu0 0.0
    %1017 = vmatprep.subr.mxu0 0.0
    %1018 = vmatpush1.msra.mxu0 0.0
    %1019 = vmatprep.subr.mxu0 0.0
    %1020 = vmatpush1.msra.mxu0 0.0
    %1021 = vmatprep.subr.mxu0 0.0
    %1022 = vmatpush1.msra.mxu0 0.0
    %1023 = vmatprep.subr.mxu0 0.0
    %1024 = vmatpush1.msra.mxu0 0.0
    %1025 = vmatprep.subr.mxu0 0.0
    %1026 = vmatpush1.msra.mxu0 0.0
    %1027 = vmatprep.subr.mxu0 0.0
    %1028 = vmatpush1.msra.mxu0 0.0
    %1029 = vmatprep.subr.mxu0 0.0
    %1030 = vmatpush1.msra.mxu0 0.0
    %1031 = vmatprep.subr.mxu0 0.0
    %1032 = vmatpush1.msra.mxu0 0.0
    %1033 = vmatprep.subr.mxu0 0.0
    %1034 = vmatpush1.msra.mxu0 0.0
    %1035 = vmatprep.subr.mxu0 0.0
    %1036 = vmatpush1.msra.mxu0 0.0
    %1037 = vmatprep.subr.mxu0 0.0
    %1038 = vmatpush1.msra.mxu0 0.0
    %1039 = vmatprep.subr.mxu0 0.0
    %1040 = vmatpush1.msra.mxu0 0.0
    %1041 = vmatprep.subr.mxu0 0.0
    %1042 = vmatpush1.msra.mxu0 0.0
    %1043 = vmatprep.subr.mxu0 0.0
    %1044 = vmatpush1.msra.mxu0 0.0
    %1045 = vmatprep.subr.mxu0 0.0
    %1046 = vmatpush1.msra.mxu0 0.0
    %1047 = vmatprep.subr.mxu0 0.0
    %1048 = vmatpush1.msra.mxu0 0.0
    %1049 = vmatprep.subr.mxu0 0.0
    %1050 = vmatpush1.msra.mxu0 0.0
    %1051 = vmatprep.subr.mxu0 0.0
    %1052 = vmatpush1.msra.mxu0 0.0
    %1053 = vmatprep.subr.mxu0 0.0
    %1054 = vmatpush1.msra.mxu0 0.0
    %1055 = vmatprep.subr.mxu0 0.0
    %1056 = vmatpush1.msra.mxu0 0.0
    %1057 = vmatprep.subr.mxu0 0.0
    %1058 = vmatpush1.msra.mxu0 0.0
    %1059 = vmatprep.mubr.f32.mxu0 0.0
    %1060 = vmatmul.mubr.f32.gmra.mrb[0].mxu0 %v993
    %v1061 = vpop.f32.mrb[0].mxu0
    %v1062 = vadd.f32 %v990, %v1061
    %v1063 = vpop.f32.mrb[0].mxu0
    %1064 = vmatprep.mubr.f32.mxu0 0.0
    %1065 = vmatmul.mubr.f32.gmra.mrb[0].mxu0 %v993
    %v1066 = vpop.f32.mrb[0].mxu0
    %v1067 = vadd.f32 %v990, %v1066
    %v1068 = vpop.f32.mrb[0].mxu0
    %1069 = vdwg.mxu0
    %v1071 = vsel %vm196, %v965, 0
    %v1074 = vsel %vm196, %v966, 0
    %v1077 = vsel %vm196, %v967, 0
    %v1080 = vsel %vm196, %v968, 0
    %v1083 = vsel %vm196, %v969, 0
    %v1086 = vsel %vm196, %v970, 0
    %1088 = vmatprep.subr.mxu0 0.0
    %1089 = vmatpush1.msra.mxu0 0.0
    %1090 = vmatprep.subr.mxu0 0.0
    %1091 = vmatpush1.msra.mxu0 0.0
    %1092 = vmatprep.subr.mxu0 0.0
    %1093 = vmatpush1.msra.mxu0 0.0
    %1094 = vmatprep.subr.mxu0 0.0
    %1095 = vmatpush1.msra.mxu0 0.0
    %1096 = vmatprep.subr.mxu0 0.0
    %1097 = vmatpush1.msra.mxu0 0.0
    %1098 = vmatprep.subr.mxu0 0.0
    %1099 = vmatpush1.msra.mxu0 0.0
    %1100 = vmatprep.subr.mxu0 0.0
    %1101 = vmatpush1.msra.mxu0 0.0
    %1102 = vmatprep.subr.mxu0 0.0
    %1103 = vmatpush1.msra.mxu0 0.0
    %1104 = vmatprep.subr.mxu0 0.0
    %1105 = vmatpush1.msra.mxu0 0.0
    %1106 = vmatprep.subr.mxu0 0.0
    %1107 = vmatpush1.msra.mxu0 0.0
    %1108 = vmatprep.subr.mxu0 0.0
    %1109 = vmatpush1.msra.mxu0 0.0
    %1110 = vmatprep.subr.mxu0 0.0
    %1111 = vmatpush1.msra.mxu0 0.0
    %1112 = vmatprep.subr.mxu0 0.0
    %1113 = vmatpush1.msra.mxu0 0.0
    %1114 = vmatprep.subr.mxu0 0.0
    %1115 = vmatpush1.msra.mxu0 0.0
    %1116 = vmatprep.subr.mxu0 0.0
    %1117 = vmatpush1.msra.mxu0 0.0
    %1118 = vmatprep.subr.mxu0 0.0
    %1119 = vmatpush1.msra.mxu0 0.0
    %1120 = vmatprep.subr.mxu0 0.0
    %1121 = vmatpush1.msra.mxu0 0.0
    %1122 = vmatprep.subr.mxu0 0.0
    %1123 = vmatpush1.msra.mxu0 0.0
    %1124 = vmatprep.subr.mxu0 0.0
    %1125 = vmatpush1.msra.mxu0 0.0
    %1126 = vmatprep.subr.mxu0 0.0
    %1127 = vmatpush1.msra.mxu0 0.0
    %1128 = vmatprep.subr.mxu0 0.0
    %1129 = vmatpush1.msra.mxu0 0.0
    %1130 = vmatprep.subr.mxu0 0.0
    %1131 = vmatpush1.msra.mxu0 0.0
    %1132 = vmatprep.subr.mxu0 0.0
    %1133 = vmatpush1.msra.mxu0 0.0
    %1134 = vmatprep.subr.mxu0 0.0
    %1135 = vmatpush1.msra.mxu0 0.0
    %1136 = vmatprep.subr.mxu0 0.0
    %1137 = vmatpush1.msra.mxu0 0.0
    %1138 = vmatprep.subr.mxu0 0.0
    %1139 = vmatpush1.msra.mxu0 0.0
    %1140 = vmatprep.subr.mxu0 0.0
    %1141 = vmatpush1.msra.mxu0 0.0
    %1142 = vmatprep.subr.mxu0 0.0
    %1143 = vmatpush1.msra.mxu0 0.0
    %1144 = vmatprep.subr.mxu0 0.0
    %1145 = vmatpush1.msra.mxu0 0.0
    %1146 = vmatprep.subr.mxu0 0.0
    %1147 = vmatpush1.msra.mxu0 0.0
    %1148 = vmatprep.subr.mxu0 0.0
    %1149 = vmatpush1.msra.mxu0 0.0
    %1150 = vmatprep.subr.mxu0 0.0
    %1151 = vmatpush1.msra.mxu0 0.0
    %1152 = vmatprep.mubr.f32.mxu0 0.0
    %1153 = vmatmul.mubr.f32.gmra.mrb[0].mxu0 %v1071
    %v1154 = vpop.f32.mrb[0].mxu0
    %v1155 = vadd.f32 0.0, %v1154
    %v1156 = vpop.f32.mrb[0].mxu0
    %1157 = vmatprep.mubr.f32.mxu0 0.0
    %1158 = vmatmul.mubr.f32.gmra.mrb[0].mxu0 %v1074
    %v1159 = vpop.f32.mrb[0].mxu0
    %v1160 = vadd.f32 0.0, %v1159
    %v1161 = vpop.f32.mrb[0].mxu0
    %1162 = vmatprep.mubr.f32.mxu0 0.0
    %1163 = vmatmul.mubr.f32.gmra.mrb[0].mxu0 %v1077
    %v1164 = vpop.f32.mrb[0].mxu0
    %v1165 = vadd.f32 0.0, %v1164
    %v1166 = vpop.f32.mrb[0].mxu0
    %1167 = vmatprep.mubr.f32.mxu0 0.0
    %1168 = vmatmul.mubr.f32.gmra.mrb[0].mxu0 %v1080
    %v1169 = vpop.f32.mrb[0].mxu0
    %v1170 = vadd.f32 0.0, %v1169
    %v1171 = vpop.f32.mrb[0].mxu0
    %1172 = vmatprep.mubr.f32.mxu0 0.0
    %1173 = vmatmul.mubr.f32.gmra.mrb[0].mxu0 %v1083
    %v1174 = vpop.f32.mrb[0].mxu0
    %v1175 = vadd.f32 0.0, %v1174
    %v1176 = vpop.f32.mrb[0].mxu0
    %1177 = vmatprep.mubr.f32.mxu0 0.0
    %1178 = vmatmul.mubr.f32.gmra.mrb[0].mxu0 %v1086
    %v1179 = vpop.f32.mrb[0].mxu0
    %v1180 = vadd.f32 0.0, %v1179
    %v1181 = vpop.f32.mrb[0].mxu0
    %1182 = vdwg.mxu0
    %1183 = vmatprep.subr.mxu0 0.0
    %1184 = vmatpush1.msra.mxu0 %v1062
    %1185 = vmatprep.subr.mxu0 0.0
    %1186 = vmatpush1.msra.mxu0 %v1067
    %1187 = vmatprep.subr.mxu0 0.0
    %1188 = vmatpush1.msra.mxu0 0.0
    %1189 = vmatprep.subr.mxu0 0.0
    %1190 = vmatpush1.msra.mxu0 0.0
    %1191 = vmatprep.subr.mxu0 0.0
    %1192 = vmatpush1.msra.mxu0 0.0
    %1193 = vmatprep.subr.mxu0 0.0
    %1194 = vmatpush1.msra.mxu0 0.0
    %1195 = vmatprep.subr.mxu0 0.0
    %1196 = vmatpush1.msra.mxu0 0.0
    %1197 = vmatprep.subr.mxu0 0.0
    %1198 = vmatpush1.msra.mxu0 0.0
    %1199 = vmatprep.subr.mxu0 0.0
    %1200 = vmatpush1.msra.mxu0 0.0
    %1201 = vmatprep.subr.mxu0 0.0
    %1202 = vmatpush1.msra.mxu0 0.0
    %1203 = vmatprep.subr.mxu0 0.0
    %1204 = vmatpush1.msra.mxu0 0.0
    %1205 = vmatprep.subr.mxu0 0.0
    %1206 = vmatpush1.msra.mxu0 0.0
    %1207 = vmatprep.subr.mxu0 0.0
    %1208 = vmatpush1.msra.mxu0 0.0
    %1209 = vmatprep.subr.mxu0 0.0
    %1210 = vmatpush1.msra.mxu0 0.0
    %1211 = vmatprep.subr.mxu0 0.0
    %1212 = vmatpush1.msra.mxu0 0.0
    %1213 = vmatprep.subr.mxu0 0.0
    %1214 = vmatpush1.msra.mxu0 0.0
    %1215 = vmatprep.subr.mxu0 0.0
    %1216 = vmatpush1.msra.mxu0 0.0
    %1217 = vmatprep.subr.mxu0 0.0
    %1218 = vmatpush1.msra.mxu0 0.0
    %1219 = vmatprep.subr.mxu0 0.0
    %1220 = vmatpush1.msra.mxu0 0.0
    %1221 = vmatprep.subr.mxu0 0.0
    %1222 = vmatpush1.msra.mxu0 0.0
    %1223 = vmatprep.subr.mxu0 0.0
    %1224 = vmatpush1.msra.mxu0 0.0
    %1225 = vmatprep.subr.mxu0 0.0
    %1226 = vmatpush1.msra.mxu0 0.0
    %1227 = vmatprep.subr.mxu0 0.0
    %1228 = vmatpush1.msra.mxu0 0.0
    %1229 = vmatprep.subr.mxu0 0.0
    %1230 = vmatpush1.msra.mxu0 0.0
    %1231 = vmatprep.subr.mxu0 0.0
    %1232 = vmatpush1.msra.mxu0 0.0
    %1233 = vmatprep.subr.mxu0 0.0
    %1234 = vmatpush1.msra.mxu0 0.0
    %1235 = vmatprep.subr.mxu0 0.0
    %1236 = vmatpush1.msra.mxu0 0.0
    %1237 = vmatprep.subr.mxu0 0.0
    %1238 = vmatpush1.msra.mxu0 0.0
    %1239 = vmatprep.subr.mxu0 0.0
    %1240 = vmatpush1.msra.mxu0 0.0
    %1241 = vmatprep.subr.mxu0 0.0
    %1242 = vmatpush1.msra.mxu0 0.0
    %1243 = vmatprep.subr.mxu0 0.0
    %1244 = vmatpush1.msra.mxu0 0.0
    %1245 = vmatprep.subr.mxu0 0.0
    %1246 = vmatpush1.msra.mxu0 0.0
    %1247 = vmatprep.mubr.f32.mxu0 0.0
    %1248 = vmatmul.mubr.f32.gmra.mrb[0].mxu0 %v1071
    %v1249 = vpop.f32.mrb[0].mxu0
    %v1250 = vadd.f32 0.0, %v1249
    %v1251 = vpop.f32.mrb[0].mxu0
    %1252 = vmatprep.mubr.f32.mxu0 0.0
    %1253 = vmatmul.mubr.f32.gmra.mrb[0].mxu0 %v1074
    %v1254 = vpop.f32.mrb[0].mxu0
    %v1255 = vadd.f32 0.0, %v1254
    %v1256 = vpop.f32.mrb[0].mxu0
    %1257 = vmatprep.mubr.f32.mxu0 0.0
    %1258 = vmatmul.mubr.f32.gmra.mrb[0].mxu0 %v1077
    %v1259 = vpop.f32.mrb[0].mxu0
    %v1260 = vadd.f32 0.0, %v1259
    %v1261 = vpop.f32.mrb[0].mxu0
    %1262 = vmatprep.mubr.f32.mxu0 0.0
    %1263 = vmatmul.mubr.f32.gmra.mrb[0].mxu0 %v1080
    %v1264 = vpop.f32.mrb[0].mxu0
    %v1265 = vadd.f32 0.0, %v1264
    %v1266 = vpop.f32.mrb[0].mxu0
    %1267 = vmatprep.mubr.f32.mxu0 0.0
    %1268 = vmatmul.mubr.f32.gmra.mrb[0].mxu0 %v1083
    %v1269 = vpop.f32.mrb[0].mxu0
    %v1270 = vadd.f32 0.0, %v1269
    %v1271 = vpop.f32.mrb[0].mxu0
    %1272 = vmatprep.mubr.f32.mxu0 0.0
    %1273 = vmatmul.mubr.f32.gmra.mrb[0].mxu0 %v1086
    %v1274 = vpop.f32.mrb[0].mxu0
    %v1275 = vadd.f32 0.0, %v1274
    %v1276 = vpop.f32.mrb[0].mxu0
    %1277 = vdwg.mxu0
    %v1278 = vadd.f32 %v797, %v1250
    %v1279 = vadd.f32 %v802, %v1255
    %v1280 = vxor.u32 %v1278, 2147483648
    %v1281 = vxor.u32 %v1279, 2147483648
    %v1282 = vmul.f32 %v1280, 1.442695
    %v1283 = vpow.pop %v1282
    %v1284 = vmul.f32 %v1281, 1.442695
    %v1285 = vpow.pop %v1284
    %v1286 = vadd.f32 %v1283, 1.0
    %v1287 = vadd.f32 %v1285, 1.0
    %v1288 = vrcp.pop %v1286
    %v1289 = vmul.f32 1.0, %v1288
    %v1290 = vrcp.pop %v1287
    %v1291 = vmul.f32 1.0, %v1290
    %v1292 = vadd.f32 %v1155, 0.0
    %v1293 = vadd.f32 %v1160, 0.0
    %v1294 = vmul.f32 %v1289, %v1155
    %v1295 = vmul.f32 %v1291, %v1160
    %v1296 = vadd.f32 %v1294, 0.0
    %v1297 = vadd.f32 %v1295, 0.0
    %v1298 = vadd.f32 %v797, %v1260
    %v1299 = vadd.f32 %v802, %v1265
    %v1300 = vxor.u32 %v1298, 2147483648
    %v1301 = vxor.u32 %v1299, 2147483648
    %v1302 = vmul.f32 %v1300, 1.442695
    %v1303 = vpow.pop %v1302
    %v1304 = vmul.f32 %v1301, 1.442695
    %v1305 = vpow.pop %v1304
    %v1306 = vadd.f32 %v1303, 1.0
    %v1307 = vadd.f32 %v1305, 1.0
    %v1308 = vrcp.pop %v1306
    %v1309 = vmul.f32 1.0, %v1308
    %v1310 = vrcp.pop %v1307
    %v1311 = vmul.f32 1.0, %v1310
    %v1312 = vadd.f32 %v1292, %v1165
    %v1313 = vadd.f32 %v1293, %v1170
    %v1314 = vmul.f32 %v1309, %v1165
    %v1315 = vmul.f32 %v1311, %v1170
    %v1316 = vadd.f32 %v1296, %v1314
    %v1317 = vadd.f32 %v1297, %v1315
    %v1318 = vadd.f32 %v797, %v1270
    %v1319 = vadd.f32 %v802, %v1275
    %v1320 = vxor.u32 %v1318, 2147483648
    %v1321 = vxor.u32 %v1319, 2147483648
    %v1322 = vmul.f32 %v1320, 1.442695
    %v1323 = vpow.pop %v1322
    %v1324 = vmul.f32 %v1321, 1.442695
    %v1325 = vpow.pop %v1324
    %v1326 = vadd.f32 %v1323, 1.0
    %v1327 = vadd.f32 %v1325, 1.0
    %v1328 = vrcp.pop %v1326
    %v1329 = vmul.f32 1.0, %v1328
    %v1330 = vrcp.pop %v1327
    %v1331 = vmul.f32 1.0, %v1330
    %v1332 = vadd.f32 %v1312, %v1175
    %v1333 = vadd.f32 %v1313, %v1180
    %v1334 = vmul.f32 %v1329, %v1175
    %v1335 = vmul.f32 %v1331, %v1180
    %v1336 = vadd.f32 %v1316, %v1334
    %v1337 = vadd.f32 %v1317, %v1335
    %v1339 = vsel %vm479, %v1332, 0
    %v1342 = vsel %vm479, %v1333, 0
    %1344 = vmatprep.subr.mxu0 0.0
    %1345 = vmatpush1.msra.mxu0 %v976
    %1346 = vmatprep.subr.mxu0 0.0
    %1347 = vmatpush1.msra.mxu0 %v977
    %1348 = vmatprep.subr.mxu0 0.0
    %1349 = vmatpush1.msra.mxu0 %v978
    %1350 = vmatprep.subr.mxu0 0.0
    %1351 = vmatpush1.msra.mxu0 %v979
    %1352 = vmatprep.subr.mxu0 0.0
    %1353 = vmatpush1.msra.mxu0 0.0
    %1354 = vmatprep.subr.mxu0 0.0
    %1355 = vmatpush1.msra.mxu0 0.0
    %1356 = vmatprep.subr.mxu0 0.0
    %1357 = vmatpush1.msra.mxu0 0.0
    %1358 = vmatprep.subr.mxu0 0.0
    %1359 = vmatpush1.msra.mxu0 0.0
    %1360 = vmatprep.subr.mxu0 0.0
    %1361 = vmatpush1.msra.mxu0 0.0
    %1362 = vmatprep.subr.mxu0 0.0
    %1363 = vmatpush1.msra.mxu0 0.0
    %1364 = vmatprep.subr.mxu0 0.0
    %1365 = vmatpush1.msra.mxu0 0.0
    %1366 = vmatprep.subr.mxu0 0.0
    %1367 = vmatpush1.msra.mxu0 0.0
    %1368 = vmatprep.subr.mxu0 0.0
    %1369 = vmatpush1.msra.mxu0 0.0
    %1370 = vmatprep.subr.mxu0 0.0
    %1371 = vmatpush1.msra.mxu0 0.0
    %1372 = vmatprep.subr.mxu0 0.0
    %1373 = vmatpush1.msra.mxu0 0.0
    %1374 = vmatprep.subr.mxu0 0.0
    %1375 = vmatpush1.msra.mxu0 0.0
    %1376 = vmatprep.subr.mxu0 0.0
    %1377 = vmatpush1.msra.mxu0 0.0
    %1378 = vmatprep.subr.mxu0 0.0
    %1379 = vmatpush1.msra.mxu0 0.0
    %1380 = vmatprep.subr.mxu0 0.0
    %1381 = vmatpush1.msra.mxu0 0.0
    %1382 = vmatprep.subr.mxu0 0.0
    %1383 = vmatpush1.msra.mxu0 0.0
    %1384 = vmatprep.subr.mxu0 0.0
    %1385 = vmatpush1.msra.mxu0 0.0
    %1386 = vmatprep.subr.mxu0 0.0
    %1387 = vmatpush1.msra.mxu0 0.0
    %1388 = vmatprep.subr.mxu0 0.0
    %1389 = vmatpush1.msra.mxu0 0.0
    %1390 = vmatprep.subr.mxu0 0.0
    %1391 = vmatpush1.msra.mxu0 0.0
    %1392 = vmatprep.subr.mxu0 0.0
    %1393 = vmatpush1.msra.mxu0 0.0
    %1394 = vmatprep.subr.mxu0 0.0
    %1395 = vmatpush1.msra.mxu0 0.0
    %1396 = vmatprep.subr.mxu0 0.0
    %1397 = vmatpush1.msra.mxu0 0.0
    %1398 = vmatprep.subr.mxu0 0.0
    %1399 = vmatpush1.msra.mxu0 0.0
    %1400 = vmatprep.subr.mxu0 0.0
    %1401 = vmatpush1.msra.mxu0 0.0
    %1402 = vmatprep.subr.mxu0 0.0
    %1403 = vmatpush1.msra.mxu0 0.0
    %1404 = vmatprep.subr.mxu0 0.0
    %1405 = vmatpush1.msra.mxu0 0.0
    %1406 = vmatprep.subr.mxu0 0.0
    %1407 = vmatpush1.msra.mxu0 0.0
    %1408 = vmatprep.mubr.f32.mxu0 0.0
    %1409 = vmatmul.mubr.f32.gmra.mrb[0].mxu0 %v1339
    %v1410 = vpop.f32.mrb[0].mxu0
    %v1411 = vadd.f32 0.0, %v1410
    %v1412 = vpop.f32.mrb[0].mxu0
    %1413 = vmatprep.mubr.f32.mxu0 0.0
    %1414 = vmatmul.mubr.f32.gmra.mrb[0].mxu0 %v1342
    %v1415 = vpop.f32.mrb[0].mxu0
    %v1416 = vadd.f32 0.0, %v1415
    %v1417 = vpop.f32.mrb[0].mxu0
    %1418 = vdwg.mxu0
    %v1419 = vadd.f32 %v639, %v1411
    %v1420 = vadd.f32 %v644, %v1416
    %v1422 = vlaneseq
    %v1423 = vshrl.u32 %v1422, 7
    %v1424 = vsub.s32 0, %v1423
    %v1425 = vrot.slane %v980, %v1424
    %v1427 = vadd.f32 %v1419, %v1425
    %v1428 = vadd.f32 %v1420, %v1425
    %v1429 = vxor.u32 %v1427, 2147483648
    %v1430 = vxor.u32 %v1428, 2147483648
    %v1431 = vmul.f32 %v1429, 1.442695
    %v1432 = vpow.pop %v1431
    %v1433 = vmul.f32 %v1430, 1.442695
    %v1434 = vpow.pop %v1433
    %v1435 = vadd.f32 %v1432, 1.0
    %v1436 = vadd.f32 %v1434, 1.0
    %v1437 = vrcp.pop %v1435
    %v1438 = vmul.f32 1.0, %v1437
    %v1439 = vrcp.pop %v1436
    %v1440 = vmul.f32 1.0, %v1439
    %v1442 = vsel %vm479, %v1336, 0
    %v1445 = vsel %vm479, %v1337, 0
    %1447 = vmatprep.subr.mxu0 0.0
    %1448 = vmatpush1.msra.mxu0 %v981
    %1449 = vmatprep.subr.mxu0 0.0
    %1450 = vmatpush1.msra.mxu0 %v982
    %1451 = vmatprep.subr.mxu0 0.0
    %1452 = vmatpush1.msra.mxu0 %v983
    %1453 = vmatprep.subr.mxu0 0.0
    %1454 = vmatpush1.msra.mxu0 %v984
    %1455 = vmatprep.subr.mxu0 0.0
    %1456 = vmatpush1.msra.mxu0 0.0
    %1457 = vmatprep.subr.mxu0 0.0
    %1458 = vmatpush1.msra.mxu0 0.0
    %1459 = vmatprep.subr.mxu0 0.0
    %1460 = vmatpush1.msra.mxu0 0.0
    %1461 = vmatprep.subr.mxu0 0.0
    %1462 = vmatpush1.msra.mxu0 0.0
    %1463 = vmatprep.subr.mxu0 0.0
    %1464 = vmatpush1.msra.mxu0 0.0
    %1465 = vmatprep.subr.mxu0 0.0
    %1466 = vmatpush1.msra.mxu0 0.0
    %1467 = vmatprep.subr.mxu0 0.0
    %1468 = vmatpush1.msra.mxu0 0.0
    %1469 = vmatprep.subr.mxu0 0.0
    %1470 = vmatpush1.msra.mxu0 0.0
    %1471 = vmatprep.subr.mxu0 0.0
    %1472 = vmatpush1.msra.mxu0 0.0
    %1473 = vmatprep.subr.mxu0 0.0
    %1474 = vmatpush1.msra.mxu0 0.0
    %1475 = vmatprep.subr.mxu0 0.0
    %1476 = vmatpush1.msra.mxu0 0.0
    %1477 = vmatprep.subr.mxu0 0.0
    %1478 = vmatpush1.msra.mxu0 0.0
    %1479 = vmatprep.subr.mxu0 0.0
    %1480 = vmatpush1.msra.mxu0 0.0
    %1481 = vmatprep.subr.mxu0 0.0
    %1482 = vmatpush1.msra.mxu0 0.0
    %1483 = vmatprep.subr.mxu0 0.0
    %1484 = vmatpush1.msra.mxu0 0.0
    %1485 = vmatprep.subr.mxu0 0.0
    %1486 = vmatpush1.msra.mxu0 0.0
    %1487 = vmatprep.subr.mxu0 0.0
    %1488 = vmatpush1.msra.mxu0 0.0
    %1489 = vmatprep.subr.mxu0 0.0
    %1490 = vmatpush1.msra.mxu0 0.0
    %1491 = vmatprep.subr.mxu0 0.0
    %1492 = vmatpush1.msra.mxu0 0.0
    %1493 = vmatprep.subr.mxu0 0.0
    %1494 = vmatpush1.msra.mxu0 0.0
    %1495 = vmatprep.subr.mxu0 0.0
    %1496 = vmatpush1.msra.mxu0 0.0
    %1497 = vmatprep.subr.mxu0 0.0
    %1498 = vmatpush1.msra.mxu0 0.0
    %1499 = vmatprep.subr.mxu0 0.0
    %1500 = vmatpush1.msra.mxu0 0.0
    %1501 = vmatprep.subr.mxu0 0.0
    %1502 = vmatpush1.msra.mxu0 0.0
    %1503 = vmatprep.subr.mxu0 0.0
    %1504 = vmatpush1.msra.mxu0 0.0
    %1505 = vmatprep.subr.mxu0 0.0
    %1506 = vmatpush1.msra.mxu0 0.0
    %1507 = vmatprep.subr.mxu0 0.0
    %1508 = vmatpush1.msra.mxu0 0.0
    %1509 = vmatprep.subr.mxu0 0.0
    %1510 = vmatpush1.msra.mxu0 0.0
    %1511 = vmatprep.mubr.f32.mxu0 0.0
    %1512 = vmatmul.mubr.f32.gmra.mrb[0].mxu0 %v1442
    %v1513 = vpop.f32.mrb[0].mxu0
    %v1514 = vadd.f32 0.0, %v1513
    %v1515 = vpop.f32.mrb[0].mxu0
    %1516 = vmatprep.mubr.f32.mxu0 0.0
    %1517 = vmatmul.mubr.f32.gmra.mrb[0].mxu0 %v1445
    %v1518 = vpop.f32.mrb[0].mxu0
    %v1519 = vadd.f32 0.0, %v1518
    %v1520 = vpop.f32.mrb[0].mxu0
    %1521 = vdwg.mxu0
    %v1522 = vadd.f32 %v955, %v1514
    %v1523 = vadd.f32 %v960, %v1519
    %v1525 = vlaneseq
    %v1526 = vshrl.u32 %v1525, 7
    %v1527 = vsub.s32 0, %v1526
    %v1528 = vrot.slane %v985, %v1527
    %v1530 = vadd.f32 %v1522, %v1528
    %v1531 = vadd.f32 %v1523, %v1528
    %v1532 = vtanh.pop %v1530
    %v1533 = vtanh.pop %v1531
    %v1534 = vsub.f32 1.0, %v1438
    %v1535 = vsub.f32 1.0, %v1440
    %v1536 = vmul.f32 %v1534, %v1332
    %v1537 = vmul.f32 %v1535, %v1333
    %v1538 = vmul.f32 %v1438, %v1532
    %v1539 = vmul.f32 %v1440, %v1533
    %v1540 = vadd.f32 %v1536, %v1538
    %v1541 = vadd.f32 %v1537, %v1539
    %1543 = vset.pattern.permute.xlu0 0
    %1544 = vperm.xlu0 %1543, %v963
    %v1545 = vpop.permute.xlu0 %1544
    %1548 = vset.pattern.permute.xlu0 0
    %1549 = vperm.xlu0 %1548, %v964
    %v1550 = vpop.permute.xlu0 %1549
    %v1552 = vmul.f32 %v1540, %v1545
    %v1553 = vmul.f32 %v1541, %v1550
    %v1555 = vsel %vm479, %v1552, 0
    %v1558 = vsel %vm479, %v1553, 0
    %1560 = vmatprep.subr.mxu0 0.0
    %1561 = vmatpush1.msra.mxu0 %v971
    %1562 = vmatprep.subr.mxu0 0.0
    %1563 = vmatpush1.msra.mxu0 %v972
    %1564 = vmatprep.subr.mxu0 0.0
    %1565 = vmatpush1.msra.mxu0 %v973
    %1566 = vmatprep.subr.mxu0 0.0
    %1567 = vmatpush1.msra.mxu0 %v974
    %1568 = vmatprep.subr.mxu0 0.0
    %1569 = vmatpush1.msra.mxu0 0.0
    %1570 = vmatprep.subr.mxu0 0.0
    %1571 = vmatpush1.msra.mxu0 0.0
    %1572 = vmatprep.subr.mxu0 0.0
    %1573 = vmatpush1.msra.mxu0 0.0
    %1574 = vmatprep.subr.mxu0 0.0
    %1575 = vmatpush1.msra.mxu0 0.0
    %1576 = vmatprep.subr.mxu0 0.0
    %1577 = vmatpush1.msra.mxu0 0.0
    %1578 = vmatprep.subr.mxu0 0.0
    %1579 = vmatpush1.msra.mxu0 0.0
    %1580 = vmatprep.subr.mxu0 0.0
    %1581 = vmatpush1.msra.mxu0 0.0
    %1582 = vmatprep.subr.mxu0 0.0
    %1583 = vmatpush1.msra.mxu0 0.0
    %1584 = vmatprep.subr.mxu0 0.0
    %1585 = vmatpush1.msra.mxu0 0.0
    %1586 = vmatprep.subr.mxu0 0.0
    %1587 = vmatpush1.msra.mxu0 0.0
    %1588 = vmatprep.subr.mxu0 0.0
    %1589 = vmatpush1.msra.mxu0 0.0
    %1590 = vmatprep.subr.mxu0 0.0
    %1591 = vmatpush1.msra.mxu0 0.0
    %1592 = vmatprep.subr.mxu0 0.0
    %1593 = vmatpush1.msra.mxu0 0.0
    %1594 = vmatprep.subr.mxu0 0.0
    %1595 = vmatpush1.msra.mxu0 0.0
    %1596 = vmatprep.subr.mxu0 0.0
    %1597 = vmatpush1.msra.mxu0 0.0
    %1598 = vmatprep.subr.mxu0 0.0
    %1599 = vmatpush1.msra.mxu0 0.0
    %1600 = vmatprep.subr.mxu0 0.0
    %1601 = vmatpush1.msra.mxu0 0.0
    %1602 = vmatprep.subr.mxu0 0.0
    %1603 = vmatpush1.msra.mxu0 0.0
    %1604 = vmatprep.subr.mxu0 0.0
    %1605 = vmatpush1.msra.mxu0 0.0
    %1606 = vmatprep.subr.mxu0 0.0
    %1607 = vmatpush1.msra.mxu0 0.0
    %1608 = vmatprep.subr.mxu0 0.0
    %1609 = vmatpush1.msra.mxu0 0.0
    %1610 = vmatprep.subr.mxu0 0.0
    %1611 = vmatpush1.msra.mxu0 0.0
    %1612 = vmatprep.subr.mxu0 0.0
    %1613 = vmatpush1.msra.mxu0 0.0
    %1614 = vmatprep.subr.mxu0 0.0
    %1615 = vmatpush1.msra.mxu0 0.0
    %1616 = vmatprep.subr.mxu0 0.0
    %1617 = vmatpush1.msra.mxu0 0.0
    %1618 = vmatprep.subr.mxu0 0.0
    %1619 = vmatpush1.msra.mxu0 0.0
    %1620 = vmatprep.subr.mxu0 0.0
    %1621 = vmatpush1.msra.mxu0 0.0
    %1622 = vmatprep.subr.mxu0 0.0
    %1623 = vmatpush1.msra.mxu0 0.0
    %1624 = vmatprep.mubr.f32.mxu0 0.0
    %1625 = vmatmul.mubr.f32.gmra.mrb[0].mxu0 %v1555
    %v1626 = vpop.f32.mrb[0].mxu0
    %v1627 = vadd.f32 %v990, %v1626
    %v1628 = vpop.f32.mrb[0].mxu0
    %1629 = vmatprep.mubr.f32.mxu0 0.0
    %1630 = vmatmul.mubr.f32.gmra.mrb[0].mxu0 %v1558
    %v1631 = vpop.f32.mrb[0].mxu0
    %v1632 = vadd.f32 %v990, %v1631
    %v1633 = vpop.f32.mrb[0].mxu0
    %1634 = vdwg.mxu0
    %1635 = vmatprep.subr.mxu0 0.0
    %1636 = vmatpush1.msra.mxu0 %v1552
    %1637 = vmatprep.subr.mxu0 0.0
    %1638 = vmatpush1.msra.mxu0 %v1553
    %1639 = vmatprep.subr.mxu0 0.0
    %1640 = vmatpush1.msra.mxu0 0.0
    %1641 = vmatprep.subr.mxu0 0.0
    %1642 = vmatpush1.msra.mxu0 0.0
    %1643 = vmatprep.subr.mxu0 0.0
    %1644 = vmatpush1.msra.mxu0 0.0
    %1645 = vmatprep.subr.mxu0 0.0
    %1646 = vmatpush1.msra.mxu0 0.0
    %1647 = vmatprep.subr.mxu0 0.0
    %1648 = vmatpush1.msra.mxu0 0.0
    %1649 = vmatprep.subr.mxu0 0.0
    %1650 = vmatpush1.msra.mxu0 0.0
    %1651 = vmatprep.subr.mxu0 0.0
    %1652 = vmatpush1.msra.mxu0 0.0
    %1653 = vmatprep.subr.mxu0 0.0
    %1654 = vmatpush1.msra.mxu0 0.0
    %1655 = vmatprep.subr.mxu0 0.0
    %1656 = vmatpush1.msra.mxu0 0.0
    %1657 = vmatprep.subr.mxu0 0.0
    %1658 = vmatpush1.msra.mxu0 0.0
    %1659 = vmatprep.subr.mxu0 0.0
    %1660 = vmatpush1.msra.mxu0 0.0
    %1661 = vmatprep.subr.mxu0 0.0
    %1662 = vmatpush1.msra.mxu0 0.0
    %1663 = vmatprep.subr.mxu0 0.0
    %1664 = vmatpush1.msra.mxu0 0.0
    %1665 = vmatprep.subr.mxu0 0.0
    %1666 = vmatpush1.msra.mxu0 0.0
    %1667 = vmatprep.subr.mxu0 0.0
    %1668 = vmatpush1.msra.mxu0 0.0
    %1669 = vmatprep.subr.mxu0 0.0
    %1670 = vmatpush1.msra.mxu0 0.0
    %1671 = vmatprep.subr.mxu0 0.0
    %1672 = vmatpush1.msra.mxu0 0.0
    %1673 = vmatprep.subr.mxu0 0.0
    %1674 = vmatpush1.msra.mxu0 0.0
    %1675 = vmatprep.subr.mxu0 0.0
    %1676 = vmatpush1.msra.mxu0 0.0
    %1677 = vmatprep.subr.mxu0 0.0
    %1678 = vmatpush1.msra.mxu0 0.0
    %1679 = vmatprep.subr.mxu0 0.0
    %1680 = vmatpush1.msra.mxu0 0.0
    %1681 = vmatprep.subr.mxu0 0.0
    %1682 = vmatpush1.msra.mxu0 0.0
    %1683 = vmatprep.subr.mxu0 0.0
    %1684 = vmatpush1.msra.mxu0 0.0
    %1685 = vmatprep.subr.mxu0 0.0
    %1686 = vmatpush1.msra.mxu0 0.0
    %1687 = vmatprep.subr.mxu0 0.0
    %1688 = vmatpush1.msra.mxu0 0.0
    %1689 = vmatprep.subr.mxu0 0.0
    %1690 = vmatpush1.msra.mxu0 0.0
    %1691 = vmatprep.subr.mxu0 0.0
    %1692 = vmatpush1.msra.mxu0 0.0
    %1693 = vmatprep.subr.mxu0 0.0
    %1694 = vmatpush1.msra.mxu0 0.0
    %1695 = vmatprep.subr.mxu0 0.0
    %1696 = vmatpush1.msra.mxu0 0.0
    %1697 = vmatprep.subr.mxu0 0.0
    %1698 = vmatpush1.msra.mxu0 0.0
    %1699 = vmatprep.mubr.f32.mxu0 0.0
    %1700 = vmatmul.mubr.f32.gmra.mrb[0].mxu0 %v1071
    %v1701 = vpop.f32.mrb[0].mxu0
    %v1702 = vadd.f32 0.0, %v1701
    %v1703 = vpop.f32.mrb[0].mxu0
    %1704 = vmatprep.mubr.f32.mxu0 0.0
    %1705 = vmatmul.mubr.f32.gmra.mrb[0].mxu0 %v1074
    %v1706 = vpop.f32.mrb[0].mxu0
    %v1707 = vadd.f32 0.0, %v1706
    %v1708 = vpop.f32.mrb[0].mxu0
    %1709 = vmatprep.mubr.f32.mxu0 0.0
    %1710 = vmatmul.mubr.f32.gmra.mrb[0].mxu0 %v1077
    %v1711 = vpop.f32.mrb[0].mxu0
    %v1712 = vadd.f32 0.0, %v1711
    %v1713 = vpop.f32.mrb[0].mxu0
    %1714 = vmatprep.mubr.f32.mxu0 0.0
    %1715 = vmatmul.mubr.f32.gmra.mrb[0].mxu0 %v1080
    %v1716 = vpop.f32.mrb[0].mxu0
    %v1717 = vadd.f32 0.0, %v1716
    %v1718 = vpop.f32.mrb[0].mxu0
    %1719 = vmatprep.mubr.f32.mxu0 0.0
    %1720 = vmatmul.mubr.f32.gmra.mrb[0].mxu0 %v1083
    %v1721 = vpop.f32.mrb[0].mxu0
    %v1722 = vadd.f32 0.0, %v1721
    %v1723 = vpop.f32.mrb[0].mxu0
    %1724 = vmatprep.mubr.f32.mxu0 0.0
    %1725 = vmatmul.mubr.f32.gmra.mrb[0].mxu0 %v1086
    %v1726 = vpop.f32.mrb[0].mxu0
    %v1727 = vadd.f32 0.0, %v1726
    %v1728 = vpop.f32.mrb[0].mxu0
    %1729 = vdwg.mxu0
    %1730 = vmatprep.subr.mxu0 0.0
    %1731 = vmatpush1.msra.mxu0 %v1627
    %1732 = vmatprep.subr.mxu0 0.0
    %1733 = vmatpush1.msra.mxu0 %v1632
    %1734 = vmatprep.subr.mxu0 0.0
    %1735 = vmatpush1.msra.mxu0 0.0
    %1736 = vmatprep.subr.mxu0 0.0
    %1737 = vmatpush1.msra.mxu0 0.0
    %1738 = vmatprep.subr.mxu0 0.0
    %1739 = vmatpush1.msra.mxu0 0.0
    %1740 = vmatprep.subr.mxu0 0.0
    %1741 = vmatpush1.msra.mxu0 0.0
    %1742 = vmatprep.subr.mxu0 0.0
    %1743 = vmatpush1.msra.mxu0 0.0
    %1744 = vmatprep.subr.mxu0 0.0
    %1745 = vmatpush1.msra.mxu0 0.0
    %1746 = vmatprep.subr.mxu0 0.0
    %1747 = vmatpush1.msra.mxu0 0.0
    %1748 = vmatprep.subr.mxu0 0.0
    %1749 = vmatpush1.msra.mxu0 0.0
    %1750 = vmatprep.subr.mxu0 0.0
    %1751 = vmatpush1.msra.mxu0 0.0
    %1752 = vmatprep.subr.mxu0 0.0
    %1753 = vmatpush1.msra.mxu0 0.0
    %1754 = vmatprep.subr.mxu0 0.0
    %1755 = vmatpush1.msra.mxu0 0.0
    %1756 = vmatprep.subr.mxu0 0.0
    %1757 = vmatpush1.msra.mxu0 0.0
    %1758 = vmatprep.subr.mxu0 0.0
    %1759 = vmatpush1.msra.mxu0 0.0
    %1760 = vmatprep.subr.mxu0 0.0
    %1761 = vmatpush1.msra.mxu0 0.0
    %1762 = vmatprep.subr.mxu0 0.0
    %1763 = vmatpush1.msra.mxu0 0.0
    %1764 = vmatprep.subr.mxu0 0.0
    %1765 = vmatpush1.msra.mxu0 0.0
    %1766 = vmatprep.subr.mxu0 0.0
    %1767 = vmatpush1.msra.mxu0 0.0
    %1768 = vmatprep.subr.mxu0 0.0
    %1769 = vmatpush1.msra.mxu0 0.0
    %1770 = vmatprep.subr.mxu0 0.0
    %1771 = vmatpush1.msra.mxu0 0.0
    %1772 = vmatprep.subr.mxu0 0.0
    %1773 = vmatpush1.msra.mxu0 0.0
    %1774 = vmatprep.subr.mxu0 0.0
    %1775 = vmatpush1.msra.mxu0 0.0
    %1776 = vmatprep.subr.mxu0 0.0
    %1777 = vmatpush1.msra.mxu0 0.0
    %1778 = vmatprep.subr.mxu0 0.0
    %1779 = vmatpush1.msra.mxu0 0.0
    %1780 = vmatprep.subr.mxu0 0.0
    %1781 = vmatpush1.msra.mxu0 0.0
    %1782 = vmatprep.subr.mxu0 0.0
    %1783 = vmatpush1.msra.mxu0 0.0
    %1784 = vmatprep.subr.mxu0 0.0
    %1785 = vmatpush1.msra.mxu0 0.0
    %1786 = vmatprep.subr.mxu0 0.0
    %1787 = vmatpush1.msra.mxu0 0.0
    %1788 = vmatprep.subr.mxu0 0.0
    %1789 = vmatpush1.msra.mxu0 0.0
    %1790 = vmatprep.subr.mxu0 0.0
    %1791 = vmatpush1.msra.mxu0 0.0
    %1792 = vmatprep.subr.mxu0 0.0
    %1793 = vmatpush1.msra.mxu0 0.0
    %1794 = vmatprep.mubr.f32.mxu0 0.0
    %1795 = vmatmul.mubr.f32.gmra.mrb[0].mxu0 %v1071
    %v1796 = vpop.f32.mrb[0].mxu0
    %v1797 = vadd.f32 0.0, %v1796
    %v1798 = vpop.f32.mrb[0].mxu0
    %1799 = vmatprep.mubr.f32.mxu0 0.0
    %1800 = vmatmul.mubr.f32.gmra.mrb[0].mxu0 %v1074
    %v1801 = vpop.f32.mrb[0].mxu0
    %v1802 = vadd.f32 0.0, %v1801
    %v1803 = vpop.f32.mrb[0].mxu0
    %1804 = vmatprep.mubr.f32.mxu0 0.0
    %1805 = vmatmul.mubr.f32.gmra.mrb[0].mxu0 %v1077
    %v1806 = vpop.f32.mrb[0].mxu0
    %v1807 = vadd.f32 0.0, %v1806
    %v1808 = vpop.f32.mrb[0].mxu0
    %1809 = vmatprep.mubr.f32.mxu0 0.0
    %1810 = vmatmul.mubr.f32.gmra.mrb[0].mxu0 %v1080
    %v1811 = vpop.f32.mrb[0].mxu0
    %v1812 = vadd.f32 0.0, %v1811
    %v1813 = vpop.f32.mrb[0].mxu0
    %1814 = vmatprep.mubr.f32.mxu0 0.0
    %1815 = vmatmul.mubr.f32.gmra.mrb[0].mxu0 %v1083
    %v1816 = vpop.f32.mrb[0].mxu0
    %v1817 = vadd.f32 0.0, %v1816
    %v1818 = vpop.f32.mrb[0].mxu0
    %1819 = vmatprep.mubr.f32.mxu0 0.0
    %1820 = vmatmul.mubr.f32.gmra.mrb[0].mxu0 %v1086
    %v1821 = vpop.f32.mrb[0].mxu0
    %v1822 = vadd.f32 0.0, %v1821
    %v1823 = vpop.f32.mrb[0].mxu0
    %1824 = vdwg.mxu0
    %v1825 = vadd.f32 %v797, %v1797
    %v1826 = vadd.f32 %v802, %v1802
    %v1827 = vxor.u32 %v1825, 2147483648
    %v1828 = vxor.u32 %v1826, 2147483648
    %v1829 = vmul.f32 %v1827, 1.442695
    %v1830 = vpow.pop %v1829
    %v1831 = vmul.f32 %v1828, 1.442695
    %v1832 = vpow.pop %v1831
    %v1833 = vadd.f32 %v1830, 1.0
    %v1834 = vadd.f32 %v1832, 1.0
    %v1835 = vrcp.pop %v1833
    %v1836 = vmul.f32 1.0, %v1835
    %v1837 = vrcp.pop %v1834
    %v1838 = vmul.f32 1.0, %v1837
    %v1839 = vadd.f32 %v1702, 0.0
    %v1840 = vadd.f32 %v1707, 0.0
    %v1841 = vmul.f32 %v1836, %v1702
    %v1842 = vmul.f32 %v1838, %v1707
    %v1843 = vadd.f32 %v1841, 0.0
    %v1844 = vadd.f32 %v1842, 0.0
    %v1845 = vadd.f32 %v797, %v1807
    %v1846 = vadd.f32 %v802, %v1812
    %v1847 = vxor.u32 %v1845, 2147483648
    %v1848 = vxor.u32 %v1846, 2147483648
    %v1849 = vmul.f32 %v1847, 1.442695
    %v1850 = vpow.pop %v1849
    %v1851 = vmul.f32 %v1848, 1.442695
    %v1852 = vpow.pop %v1851
    %v1853 = vadd.f32 %v1850, 1.0
    %v1854 = vadd.f32 %v1852, 1.0
    %v1855 = vrcp.pop %v1853
    %v1856 = vmul.f32 1.0, %v1855
    %v1857 = vrcp.pop %v1854
    %v1858 = vmul.f32 1.0, %v1857
    %v1859 = vadd.f32 %v1839, %v1712
    %v1860 = vadd.f32 %v1840, %v1717
    %v1861 = vmul.f32 %v1856, %v1712
    %v1862 = vmul.f32 %v1858, %v1717
    %v1863 = vadd.f32 %v1843, %v1861
    %v1864 = vadd.f32 %v1844, %v1862
    %v1865 = vadd.f32 %v797, %v1817
    %v1866 = vadd.f32 %v802, %v1822
    %v1867 = vxor.u32 %v1865, 2147483648
    %v1868 = vxor.u32 %v1866, 2147483648
    %v1869 = vmul.f32 %v1867, 1.442695
    %v1870 = vpow.pop %v1869
    %v1871 = vmul.f32 %v1868, 1.442695
    %v1872 = vpow.pop %v1871
    %v1873 = vadd.f32 %v1870, 1.0
    %v1874 = vadd.f32 %v1872, 1.0
    %v1875 = vrcp.pop %v1873
    %v1876 = vmul.f32 1.0, %v1875
    %v1877 = vrcp.pop %v1874
    %v1878 = vmul.f32 1.0, %v1877
    %v1879 = vadd.f32 %v1859, %v1722
    %v1880 = vadd.f32 %v1860, %v1727
    %v1881 = vmul.f32 %v1876, %v1722
    %v1882 = vmul.f32 %v1878, %v1727
    %v1883 = vadd.f32 %v1863, %v1881
    %v1884 = vadd.f32 %v1864, %v1882
    %v1886 = vsel %vm479, %v1879, 0
    %v1889 = vsel %vm479, %v1880, 0
    %1891 = vmatprep.subr.mxu0 0.0
    %1892 = vmatpush1.msra.mxu0 %v976
    %1893 = vmatprep.subr.mxu0 0.0
    %1894 = vmatpush1.msra.mxu0 %v977
    %1895 = vmatprep.subr.mxu0 0.0
    %1896 = vmatpush1.msra.mxu0 %v978
    %1897 = vmatprep.subr.mxu0 0.0
    %1898 = vmatpush1.msra.mxu0 %v979
    %1899 = vmatprep.subr.mxu0 0.0
    %1900 = vmatpush1.msra.mxu0 0.0
    %1901 = vmatprep.subr.mxu0 0.0
    %1902 = vmatpush1.msra.mxu0 0.0
    %1903 = vmatprep.subr.mxu0 0.0
    %1904 = vmatpush1.msra.mxu0 0.0
    %1905 = vmatprep.subr.mxu0 0.0
    %1906 = vmatpush1.msra.mxu0 0.0
    %1907 = vmatprep.subr.mxu0 0.0
    %1908 = vmatpush1.msra.mxu0 0.0
    %1909 = vmatprep.subr.mxu0 0.0
    %1910 = vmatpush1.msra.mxu0 0.0
    %1911 = vmatprep.subr.mxu0 0.0
    %1912 = vmatpush1.msra.mxu0 0.0
    %1913 = vmatprep.subr.mxu0 0.0
    %1914 = vmatpush1.msra.mxu0 0.0
    %1915 = vmatprep.subr.mxu0 0.0
    %1916 = vmatpush1.msra.mxu0 0.0
    %1917 = vmatprep.subr.mxu0 0.0
    %1918 = vmatpush1.msra.mxu0 0.0
    %1919 = vmatprep.subr.mxu0 0.0
    %1920 = vmatpush1.msra.mxu0 0.0
    %1921 = vmatprep.subr.mxu0 0.0
    %1922 = vmatpush1.msra.mxu0 0.0
    %1923 = vmatprep.subr.mxu0 0.0
    %1924 = vmatpush1.msra.mxu0 0.0
    %1925 = vmatprep.subr.mxu0 0.0
    %1926 = vmatpush1.msra.mxu0 0.0
    %1927 = vmatprep.subr.mxu0 0.0
    %1928 = vmatpush1.msra.mxu0 0.0
    %1929 = vmatprep.subr.mxu0 0.0
    %1930 = vmatpush1.msra.mxu0 0.0
    %1931 = vmatprep.subr.mxu0 0.0
    %1932 = vmatpush1.msra.mxu0 0.0
    %1933 = vmatprep.subr.mxu0 0.0
    %1934 = vmatpush1.msra.mxu0 0.0
    %1935 = vmatprep.subr.mxu0 0.0
    %1936 = vmatpush1.msra.mxu0 0.0
    %1937 = vmatprep.subr.mxu0 0.0
    %1938 = vmatpush1.msra.mxu0 0.0
    %1939 = vmatprep.subr.mxu0 0.0
    %1940 = vmatpush1.msra.mxu0 0.0
    %1941 = vmatprep.subr.mxu0 0.0
    %1942 = vmatpush1.msra.mxu0 0.0
    %1943 = vmatprep.subr.mxu0 0.0
    %1944 = vmatpush1.msra.mxu0 0.0
    %1945 = vmatprep.subr.mxu0 0.0
    %1946 = vmatpush1.msra.mxu0 0.0
    %1947 = vmatprep.subr.mxu0 0.0
    %1948 = vmatpush1.msra.mxu0 0.0
    %1949 = vmatprep.subr.mxu0 0.0
    %1950 = vmatpush1.msra.mxu0 0.0
    %1951 = vmatprep.subr.mxu0 0.0
    %1952 = vmatpush1.msra.mxu0 0.0
    %1953 = vmatprep.subr.mxu0 0.0
    %1954 = vmatpush1.msra.mxu0 0.0
    %1955 = vmatprep.mubr.f32.mxu0 0.0
    %1956 = vmatmul.mubr.f32.gmra.mrb[0].mxu0 %v1886
    %v1957 = vpop.f32.mrb[0].mxu0
    %v1958 = vadd.f32 0.0, %v1957
    %v1959 = vpop.f32.mrb[0].mxu0
    %1960 = vmatprep.mubr.f32.mxu0 0.0
    %1961 = vmatmul.mubr.f32.gmra.mrb[0].mxu0 %v1889
    %v1962 = vpop.f32.mrb[0].mxu0
    %v1963 = vadd.f32 0.0, %v1962
    %v1964 = vpop.f32.mrb[0].mxu0
    %1965 = vdwg.mxu0
    %v1966 = vadd.f32 %v639, %v1958
    %v1967 = vadd.f32 %v644, %v1963
    %v1968 = vadd.f32 %v1966, %v1425
    %v1969 = vadd.f32 %v1967, %v1425
    %v1970 = vxor.u32 %v1968, 2147483648
    %v1971 = vxor.u32 %v1969, 2147483648
    %v1972 = vmul.f32 %v1970, 1.442695
    %v1973 = vpow.pop %v1972
    %v1974 = vmul.f32 %v1971, 1.442695
    %v1975 = vpow.pop %v1974
    %v1976 = vadd.f32 %v1973, 1.0
    %v1977 = vadd.f32 %v1975, 1.0
    %v1978 = vrcp.pop %v1976
    %v1979 = vmul.f32 1.0, %v1978
    %v1980 = vrcp.pop %v1977
    %v1981 = vmul.f32 1.0, %v1980
    %v1983 = vsel %vm479, %v1883, 0
    %v1986 = vsel %vm479, %v1884, 0
    %1988 = vmatprep.subr.mxu0 0.0
    %1989 = vmatpush1.msra.mxu0 %v981
    %1990 = vmatprep.subr.mxu0 0.0
    %1991 = vmatpush1.msra.mxu0 %v982
    %1992 = vmatprep.subr.mxu0 0.0
    %1993 = vmatpush1.msra.mxu0 %v983
    %1994 = vmatprep.subr.mxu0 0.0
    %1995 = vmatpush1.msra.mxu0 %v984
    %1996 = vmatprep.subr.mxu0 0.0
    %1997 = vmatpush1.msra.mxu0 0.0
    %1998 = vmatprep.subr.mxu0 0.0
    %1999 = vmatpush1.msra.mxu0 0.0
    %2000 = vmatprep.subr.mxu0 0.0
    %2001 = vmatpush1.msra.mxu0 0.0
    %2002 = vmatprep.subr.mxu0 0.0
    %2003 = vmatpush1.msra.mxu0 0.0
    %2004 = vmatprep.subr.mxu0 0.0
    %2005 = vmatpush1.msra.mxu0 0.0
    %2006 = vmatprep.subr.mxu0 0.0
    %2007 = vmatpush1.msra.mxu0 0.0
    %2008 = vmatprep.subr.mxu0 0.0
    %2009 = vmatpush1.msra.mxu0 0.0
    %2010 = vmatprep.subr.mxu0 0.0
    %2011 = vmatpush1.msra.mxu0 0.0
    %2012 = vmatprep.subr.mxu0 0.0
    %2013 = vmatpush1.msra.mxu0 0.0
    %2014 = vmatprep.subr.mxu0 0.0
    %2015 = vmatpush1.msra.mxu0 0.0
    %2016 = vmatprep.subr.mxu0 0.0
    %2017 = vmatpush1.msra.mxu0 0.0
    %2018 = vmatprep.subr.mxu0 0.0
    %2019 = vmatpush1.msra.mxu0 0.0
    %2020 = vmatprep.subr.mxu0 0.0
    %2021 = vmatpush1.msra.mxu0 0.0
    %2022 = vmatprep.subr.mxu0 0.0
    %2023 = vmatpush1.msra.mxu0 0.0
    %2024 = vmatprep.subr.mxu0 0.0
    %2025 = vmatpush1.msra.mxu0 0.0
    %2026 = vmatprep.subr.mxu0 0.0
    %2027 = vmatpush1.msra.mxu0 0.0
    %2028 = vmatprep.subr.mxu0 0.0
    %2029 = vmatpush1.msra.mxu0 0.0
    %2030 = vmatprep.subr.mxu0 0.0
    %2031 = vmatpush1.msra.mxu0 0.0
    %2032 = vmatprep.subr.mxu0 0.0
    %2033 = vmatpush1.msra.mxu0 0.0
    %2034 = vmatprep.subr.mxu0 0.0
    %2035 = vmatpush1.msra.mxu0 0.0
    %2036 = vmatprep.subr.mxu0 0.0
    %2037 = vmatpush1.msra.mxu0 0.0
    %2038 = vmatprep.subr.mxu0 0.0
    %2039 = vmatpush1.msra.mxu0 0.0
    %2040 = vmatprep.subr.mxu0 0.0
    %2041 = vmatpush1.msra.mxu0 0.0
    %2042 = vmatprep.subr.mxu0 0.0
    %2043 = vmatpush1.msra.mxu0 0.0
    %2044 = vmatprep.subr.mxu0 0.0
    %2045 = vmatpush1.msra.mxu0 0.0
    %2046 = vmatprep.subr.mxu0 0.0
    %2047 = vmatpush1.msra.mxu0 0.0
    %2048 = vmatprep.subr.mxu0 0.0
    %2049 = vmatpush1.msra.mxu0 0.0
    %2050 = vmatprep.subr.mxu0 0.0
    %2051 = vmatpush1.msra.mxu0 0.0
    %2052 = vmatprep.mubr.f32.mxu0 0.0
    %2053 = vmatmul.mubr.f32.gmra.mrb[0].mxu0 %v1983
    %v2054 = vpop.f32.mrb[0].mxu0
    %v2055 = vadd.f32 0.0, %v2054
    %v2056 = vpop.f32.mrb[0].mxu0
    %2057 = vmatprep.mubr.f32.mxu0 0.0
    %2058 = vmatmul.mubr.f32.gmra.mrb[0].mxu0 %v1986
    %v2059 = vpop.f32.mrb[0].mxu0
    %v2060 = vadd.f32 0.0, %v2059
    %v2061 = vpop.f32.mrb[0].mxu0
    %2062 = vdwg.mxu0
    %v2063 = vadd.f32 %v955, %v2055
    %v2064 = vadd.f32 %v960, %v2060
    %v2065 = vadd.f32 %v2063, %v1528
    %v2066 = vadd.f32 %v2064, %v1528
    %v2067 = vtanh.pop %v2065
    %v2068 = vtanh.pop %v2066
    %v2069 = vsub.f32 1.0, %v1979
    %v2070 = vsub.f32 1.0, %v1981
    %v2071 = vmul.f32 %v2069, %v1879
    %v2072 = vmul.f32 %v2070, %v1880
    %v2073 = vmul.f32 %v1979, %v2067
    %v2074 = vmul.f32 %v1981, %v2068
    %v2075 = vadd.f32 %v2071, %v2073
    %v2076 = vadd.f32 %v2072, %v2074
    %v2077 = vmul.f32 %v2075, %v1545
    %v2078 = vmul.f32 %v2076, %v1550
    %v2080 = vsel %vm479, %v2077, 0
    %v2083 = vsel %vm479, %v2078, 0
    %2085 = vmatprep.subr.mxu0 0.0
    %2086 = vmatpush1.msra.mxu0 %v971
    %2087 = vmatprep.subr.mxu0 0.0
    %2088 = vmatpush1.msra.mxu0 %v972
    %2089 = vmatprep.subr.mxu0 0.0
    %2090 = vmatpush1.msra.mxu0 %v973
    %2091 = vmatprep.subr.mxu0 0.0
    %2092 = vmatpush1.msra.mxu0 %v974
    %2093 = vmatprep.subr.mxu0 0.0
    %2094 = vmatpush1.msra.mxu0 0.0
    %2095 = vmatprep.subr.mxu0 0.0
    %2096 = vmatpush1.msra.mxu0 0.0
    %2097 = vmatprep.subr.mxu0 0.0
    %2098 = vmatpush1.msra.mxu0 0.0
    %2099 = vmatprep.subr.mxu0 0.0
    %2100 = vmatpush1.msra.mxu0 0.0
    %2101 = vmatprep.subr.mxu0 0.0
    %2102 = vmatpush1.msra.mxu0 0.0
    %2103 = vmatprep.subr.mxu0 0.0
    %2104 = vmatpush1.msra.mxu0 0.0
    %2105 = vmatprep.subr.mxu0 0.0
    %2106 = vmatpush1.msra.mxu0 0.0
    %2107 = vmatprep.subr.mxu0 0.0
    %2108 = vmatpush1.msra.mxu0 0.0
    %2109 = vmatprep.subr.mxu0 0.0
    %2110 = vmatpush1.msra.mxu0 0.0
    %2111 = vmatprep.subr.mxu0 0.0
    %2112 = vmatpush1.msra.mxu0 0.0
    %2113 = vmatprep.subr.mxu0 0.0
    %2114 = vmatpush1.msra.mxu0 0.0
    %2115 = vmatprep.subr.mxu0 0.0
    %2116 = vmatpush1.msra.mxu0 0.0
    %2117 = vmatprep.subr.mxu0 0.0
    %2118 = vmatpush1.msra.mxu0 0.0
    %2119 = vmatprep.subr.mxu0 0.0
    %2120 = vmatpush1.msra.mxu0 0.0
    %2121 = vmatprep.subr.mxu0 0.0
    %2122 = vmatpush1.msra.mxu0 0.0
    %2123 = vmatprep.subr.mxu0 0.0
    %2124 = vmatpush1.msra.mxu0 0.0
    %2125 = vmatprep.subr.mxu0 0.0
    %2126 = vmatpush1.msra.mxu0 0.0
    %2127 = vmatprep.subr.mxu0 0.0
    %2128 = vmatpush1.msra.mxu0 0.0
    %2129 = vmatprep.subr.mxu0 0.0
    %2130 = vmatpush1.msra.mxu0 0.0
    %2131 = vmatprep.subr.mxu0 0.0
    %2132 = vmatpush1.msra.mxu0 0.0
    %2133 = vmatprep.subr.mxu0 0.0
    %2134 = vmatpush1.msra.mxu0 0.0
    %2135 = vmatprep.subr.mxu0 0.0
    %2136 = vmatpush1.msra.mxu0 0.0
    %2137 = vmatprep.subr.mxu0 0.0
    %2138 = vmatpush1.msra.mxu0 0.0
    %2139 = vmatprep.subr.mxu0 0.0
    %2140 = vmatpush1.msra.mxu0 0.0
    %2141 = vmatprep.subr.mxu0 0.0
    %2142 = vmatpush1.msra.mxu0 0.0
    %2143 = vmatprep.subr.mxu0 0.0
    %2144 = vmatpush1.msra.mxu0 0.0
    %2145 = vmatprep.subr.mxu0 0.0
    %2146 = vmatpush1.msra.mxu0 0.0
    %2147 = vmatprep.subr.mxu0 0.0
    %2148 = vmatpush1.msra.mxu0 0.0
    %2149 = vmatprep.mubr.f32.mxu0 0.0
    %2150 = vmatmul.mubr.f32.gmra.mrb[0].mxu0 %v2080
    %v2151 = vpop.f32.mrb[0].mxu0
    %v2152 = vadd.f32 %v990, %v2151
    %v2153 = vpop.f32.mrb[0].mxu0
    %2154 = vmatprep.mubr.f32.mxu0 0.0
    %2155 = vmatmul.mubr.f32.gmra.mrb[0].mxu0 %v2083
    %v2156 = vpop.f32.mrb[0].mxu0
    %v2157 = vadd.f32 %v990, %v2156
    %v2158 = vpop.f32.mrb[0].mxu0
    %2159 = vdwg.mxu0
    %2160 = vmatprep.subr.mxu0 0.0
    %2161 = vmatpush1.msra.mxu0 %v2077
    %2162 = vmatprep.subr.mxu0 0.0
    %2163 = vmatpush1.msra.mxu0 %v2078
    %2164 = vmatprep.subr.mxu0 0.0
    %2165 = vmatpush1.msra.mxu0 0.0
    %2166 = vmatprep.subr.mxu0 0.0
    %2167 = vmatpush1.msra.mxu0 0.0
    %2168 = vmatprep.subr.mxu0 0.0
    %2169 = vmatpush1.msra.mxu0 0.0
    %2170 = vmatprep.subr.mxu0 0.0
    %2171 = vmatpush1.msra.mxu0 0.0
    %2172 = vmatprep.subr.mxu0 0.0
    %2173 = vmatpush1.msra.mxu0 0.0
    %2174 = vmatprep.subr.mxu0 0.0
    %2175 = vmatpush1.msra.mxu0 0.0
    %2176 = vmatprep.subr.mxu0 0.0
    %2177 = vmatpush1.msra.mxu0 0.0
    %2178 = vmatprep.subr.mxu0 0.0
    %2179 = vmatpush1.msra.mxu0 0.0
    %2180 = vmatprep.subr.mxu0 0.0
    %2181 = vmatpush1.msra.mxu0 0.0
    %2182 = vmatprep.subr.mxu0 0.0
    %2183 = vmatpush1.msra.mxu0 0.0
    %2184 = vmatprep.subr.mxu0 0.0
    %2185 = vmatpush1.msra.mxu0 0.0
    %2186 = vmatprep.subr.mxu0 0.0
    %2187 = vmatpush1.msra.mxu0 0.0
    %2188 = vmatprep.subr.mxu0 0.0
    %2189 = vmatpush1.msra.mxu0 0.0
    %2190 = vmatprep.subr.mxu0 0.0
    %2191 = vmatpush1.msra.mxu0 0.0
    %2192 = vmatprep.subr.mxu0 0.0
    %2193 = vmatpush1.msra.mxu0 0.0
    %2194 = vmatprep.subr.mxu0 0.0
    %2195 = vmatpush1.msra.mxu0 0.0
    %2196 = vmatprep.subr.mxu0 0.0
    %2197 = vmatpush1.msra.mxu0 0.0
    %2198 = vmatprep.subr.mxu0 0.0
    %2199 = vmatpush1.msra.mxu0 0.0
    %2200 = vmatprep.subr.mxu0 0.0
    %2201 = vmatpush1.msra.mxu0 0.0
    %2202 = vmatprep.subr.mxu0 0.0
    %2203 = vmatpush1.msra.mxu0 0.0
    %2204 = vmatprep.subr.mxu0 0.0
    %2205 = vmatpush1.msra.mxu0 0.0
    %2206 = vmatprep.subr.mxu0 0.0
    %2207 = vmatpush1.msra.mxu0 0.0
    %2208 = vmatprep.subr.mxu0 0.0
    %2209 = vmatpush1.msra.mxu0 0.0
    %2210 = vmatprep.subr.mxu0 0.0
    %2211 = vmatpush1.msra.mxu0 0.0
    %2212 = vmatprep.subr.mxu0 0.0
    %2213 = vmatpush1.msra.mxu0 0.0
    %2214 = vmatprep.subr.mxu0 0.0
    %2215 = vmatpush1.msra.mxu0 0.0
    %2216 = vmatprep.subr.mxu0 0.0
    %2217 = vmatpush1.msra.mxu0 0.0
    %2218 = vmatprep.subr.mxu0 0.0
    %2219 = vmatpush1.msra.mxu0 0.0
    %2220 = vmatprep.subr.mxu0 0.0
    %2221 = vmatpush1.msra.mxu0 0.0
    %2222 = vmatprep.subr.mxu0 0.0
    %2223 = vmatpush1.msra.mxu0 0.0
    %2224 = vmatprep.mubr.f32.mxu0 0.0
    %2225 = vmatmul.mubr.f32.gmra.mrb[0].mxu0 %v1071
    %v2226 = vpop.f32.mrb[0].mxu0
    %v2227 = vadd.f32 0.0, %v2226
    %v2228 = vpop.f32.mrb[0].mxu0
    %2229 = vmatprep.mubr.f32.mxu0 0.0
    %2230 = vmatmul.mubr.f32.gmra.mrb[0].mxu0 %v1074
    %v2231 = vpop.f32.mrb[0].mxu0
    %v2232 = vadd.f32 0.0, %v2231
    %v2233 = vpop.f32.mrb[0].mxu0
    %2234 = vmatprep.mubr.f32.mxu0 0.0
    %2235 = vmatmul.mubr.f32.gmra.mrb[0].mxu0 %v1077
    %v2236 = vpop.f32.mrb[0].mxu0
    %v2237 = vadd.f32 0.0, %v2236
    %v2238 = vpop.f32.mrb[0].mxu0
    %2239 = vmatprep.mubr.f32.mxu0 0.0
    %2240 = vmatmul.mubr.f32.gmra.mrb[0].mxu0 %v1080
    %v2241 = vpop.f32.mrb[0].mxu0
    %v2242 = vadd.f32 0.0, %v2241
    %v2243 = vpop.f32.mrb[0].mxu0
    %2244 = vmatprep.mubr.f32.mxu0 0.0
    %2245 = vmatmul.mubr.f32.gmra.mrb[0].mxu0 %v1083
    %v2246 = vpop.f32.mrb[0].mxu0
    %v2247 = vadd.f32 0.0, %v2246
    %v2248 = vpop.f32.mrb[0].mxu0
    %2249 = vmatprep.mubr.f32.mxu0 0.0
    %2250 = vmatmul.mubr.f32.gmra.mrb[0].mxu0 %v1086
    %v2251 = vpop.f32.mrb[0].mxu0
    %v2252 = vadd.f32 0.0, %v2251
    %v2253 = vpop.f32.mrb[0].mxu0
    %2254 = vdwg.mxu0
    %2255 = vmatprep.subr.mxu0 0.0
    %2256 = vmatpush1.msra.mxu0 %v2152
    %2257 = vmatprep.subr.mxu0 0.0
    %2258 = vmatpush1.msra.mxu0 %v2157
    %2259 = vmatprep.subr.mxu0 0.0
    %2260 = vmatpush1.msra.mxu0 0.0
    %2261 = vmatprep.subr.mxu0 0.0
    %2262 = vmatpush1.msra.mxu0 0.0
    %2263 = vmatprep.subr.mxu0 0.0
    %2264 = vmatpush1.msra.mxu0 0.0
    %2265 = vmatprep.subr.mxu0 0.0
    %2266 = vmatpush1.msra.mxu0 0.0
    %2267 = vmatprep.subr.mxu0 0.0
    %2268 = vmatpush1.msra.mxu0 0.0
    %2269 = vmatprep.subr.mxu0 0.0
    %2270 = vmatpush1.msra.mxu0 0.0
    %2271 = vmatprep.subr.mxu0 0.0
    %2272 = vmatpush1.msra.mxu0 0.0
    %2273 = vmatprep.subr.mxu0 0.0
    %2274 = vmatpush1.msra.mxu0 0.0
    %2275 = vmatprep.subr.mxu0 0.0
    %2276 = vmatpush1.msra.mxu0 0.0
    %2277 = vmatprep.subr.mxu0 0.0
    %2278 = vmatpush1.msra.mxu0 0.0
    %2279 = vmatprep.subr.mxu0 0.0
    %2280 = vmatpush1.msra.mxu0 0.0
    %2281 = vmatprep.subr.mxu0 0.0
    %2282 = vmatpush1.msra.mxu0 0.0
    %2283 = vmatprep.subr.mxu0 0.0
    %2284 = vmatpush1.msra.mxu0 0.0
    %2285 = vmatprep.subr.mxu0 0.0
    %2286 = vmatpush1.msra.mxu0 0.0
    %2287 = vmatprep.subr.mxu0 0.0
    %2288 = vmatpush1.msra.mxu0 0.0
    %2289 = vmatprep.subr.mxu0 0.0
    %2290 = vmatpush1.msra.mxu0 0.0
    %2291 = vmatprep.subr.mxu0 0.0
    %2292 = vmatpush1.msra.mxu0 0.0
    %2293 = vmatprep.subr.mxu0 0.0
    %2294 = vmatpush1.msra.mxu0 0.0
    %2295 = vmatprep.subr.mxu0 0.0
    %2296 = vmatpush1.msra.mxu0 0.0
    %2297 = vmatprep.subr.mxu0 0.0
    %2298 = vmatpush1.msra.mxu0 0.0
    %2299 = vmatprep.subr.mxu0 0.0
    %2300 = vmatpush1.msra.mxu0 0.0
    %2301 = vmatprep.subr.mxu0 0.0
    %2302 = vmatpush1.msra.mxu0 0.0
    %2303 = vmatprep.subr.mxu0 0.0
    %2304 = vmatpush1.msra.mxu0 0.0
    %2305 = vmatprep.subr.mxu0 0.0
    %2306 = vmatpush1.msra.mxu0 0.0
    %2307 = vmatprep.subr.mxu0 0.0
    %2308 = vmatpush1.msra.mxu0 0.0
    %2309 = vmatprep.subr.mxu0 0.0
    %2310 = vmatpush1.msra.mxu0 0.0
    %2311 = vmatprep.subr.mxu0 0.0
    %2312 = vmatpush1.msra.mxu0 0.0
    %2313 = vmatprep.subr.mxu0 0.0
    %2314 = vmatpush1.msra.mxu0 0.0
    %2315 = vmatprep.subr.mxu0 0.0
    %2316 = vmatpush1.msra.mxu0 0.0
    %2317 = vmatprep.subr.mxu0 0.0
    %2318 = vmatpush1.msra.mxu0 0.0
    %2319 = vmatprep.mubr.f32.mxu0 0.0
    %2320 = vmatmul.mubr.f32.gmra.mrb[0].mxu0 %v1071
    %v2321 = vpop.f32.mrb[0].mxu0
    %v2322 = vadd.f32 0.0, %v2321
    %v2323 = vpop.f32.mrb[0].mxu0
    %2324 = vmatprep.mubr.f32.mxu0 0.0
    %2325 = vmatmul.mubr.f32.gmra.mrb[0].mxu0 %v1074
    %v2326 = vpop.f32.mrb[0].mxu0
    %v2327 = vadd.f32 0.0, %v2326
    %v2328 = vpop.f32.mrb[0].mxu0
    %2329 = vmatprep.mubr.f32.mxu0 0.0
    %2330 = vmatmul.mubr.f32.gmra.mrb[0].mxu0 %v1077
    %v2331 = vpop.f32.mrb[0].mxu0
    %v2332 = vadd.f32 0.0, %v2331
    %v2333 = vpop.f32.mrb[0].mxu0
    %2334 = vmatprep.mubr.f32.mxu0 0.0
    %2335 = vmatmul.mubr.f32.gmra.mrb[0].mxu0 %v1080
    %v2336 = vpop.f32.mrb[0].mxu0
    %v2337 = vadd.f32 0.0, %v2336
    %v2338 = vpop.f32.mrb[0].mxu0
    %2339 = vmatprep.mubr.f32.mxu0 0.0
    %2340 = vmatmul.mubr.f32.gmra.mrb[0].mxu0 %v1083
    %v2341 = vpop.f32.mrb[0].mxu0
    %v2342 = vadd.f32 0.0, %v2341
    %v2343 = vpop.f32.mrb[0].mxu0
    %2344 = vmatprep.mubr.f32.mxu0 0.0
    %2345 = vmatmul.mubr.f32.gmra.mrb[0].mxu0 %v1086
    %v2346 = vpop.f32.mrb[0].mxu0
    %v2347 = vadd.f32 0.0, %v2346
    %v2348 = vpop.f32.mrb[0].mxu0
    %2349 = vdwg.mxu0
    %v2350 = vadd.f32 %v797, %v2322
    %v2351 = vadd.f32 %v802, %v2327
    %v2352 = vxor.u32 %v2350, 2147483648
    %v2353 = vxor.u32 %v2351, 2147483648
    %v2354 = vmul.f32 %v2352, 1.442695
    %v2355 = vpow.pop %v2354
    %v2356 = vmul.f32 %v2353, 1.442695
    %v2357 = vpow.pop %v2356
    %v2358 = vadd.f32 %v2355, 1.0
    %v2359 = vadd.f32 %v2357, 1.0
    %v2360 = vrcp.pop %v2358
    %v2361 = vmul.f32 1.0, %v2360
    %v2362 = vrcp.pop %v2359
    %v2363 = vmul.f32 1.0, %v2362
    %v2364 = vadd.f32 %v2227, 0.0
    %v2365 = vadd.f32 %v2232, 0.0
    %v2366 = vmul.f32 %v2361, %v2227
    %v2367 = vmul.f32 %v2363, %v2232
    %v2368 = vadd.f32 %v2366, 0.0
    %v2369 = vadd.f32 %v2367, 0.0
    %v2370 = vadd.f32 %v797, %v2332
    %v2371 = vadd.f32 %v802, %v2337
    %v2372 = vxor.u32 %v2370, 2147483648
    %v2373 = vxor.u32 %v2371, 2147483648
    %v2374 = vmul.f32 %v2372, 1.442695
    %v2375 = vpow.pop %v2374
    %v2376 = vmul.f32 %v2373, 1.442695
    %v2377 = vpow.pop %v2376
    %v2378 = vadd.f32 %v2375, 1.0
    %v2379 = vadd.f32 %v2377, 1.0
    %v2380 = vrcp.pop %v2378
    %v2381 = vmul.f32 1.0, %v2380
    %v2382 = vrcp.pop %v2379
    %v2383 = vmul.f32 1.0, %v2382
    %v2384 = vadd.f32 %v2364, %v2237
    %v2385 = vadd.f32 %v2365, %v2242
    %v2386 = vmul.f32 %v2381, %v2237
    %v2387 = vmul.f32 %v2383, %v2242
    %v2388 = vadd.f32 %v2368, %v2386
    %v2389 = vadd.f32 %v2369, %v2387
    %v2390 = vadd.f32 %v797, %v2342
    %v2391 = vadd.f32 %v802, %v2347
    %v2392 = vxor.u32 %v2390, 2147483648
    %v2393 = vxor.u32 %v2391, 2147483648
    %v2394 = vmul.f32 %v2392, 1.442695
    %v2395 = vpow.pop %v2394
    %v2396 = vmul.f32 %v2393, 1.442695
    %v2397 = vpow.pop %v2396
    %v2398 = vadd.f32 %v2395, 1.0
    %v2399 = vadd.f32 %v2397, 1.0
    %v2400 = vrcp.pop %v2398
    %v2401 = vmul.f32 1.0, %v2400
    %v2402 = vrcp.pop %v2399
    %v2403 = vmul.f32 1.0, %v2402
    %v2404 = vadd.f32 %v2384, %v2247
    %v2405 = vadd.f32 %v2385, %v2252
    %v2406 = vmul.f32 %v2401, %v2247
    %v2407 = vmul.f32 %v2403, %v2252
    %v2408 = vadd.f32 %v2388, %v2406
    %v2409 = vadd.f32 %v2389, %v2407
    %v2411 = vsel %vm479, %v2404, 0
    %v2414 = vsel %vm479, %v2405, 0
    %2416 = vmatprep.subr.mxu0 0.0
    %2417 = vmatpush1.msra.mxu0 %v976
    %2418 = vmatprep.subr.mxu0 0.0
    %2419 = vmatpush1.msra.mxu0 %v977
    %2420 = vmatprep.subr.mxu0 0.0
    %2421 = vmatpush1.msra.mxu0 %v978
    %2422 = vmatprep.subr.mxu0 0.0
    %2423 = vmatpush1.msra.mxu0 %v979
    %2424 = vmatprep.subr.mxu0 0.0
    %2425 = vmatpush1.msra.mxu0 0.0
    %2426 = vmatprep.subr.mxu0 0.0
    %2427 = vmatpush1.msra.mxu0 0.0
    %2428 = vmatprep.subr.mxu0 0.0
    %2429 = vmatpush1.msra.mxu0 0.0
    %2430 = vmatprep.subr.mxu0 0.0
    %2431 = vmatpush1.msra.mxu0 0.0
    %2432 = vmatprep.subr.mxu0 0.0
    %2433 = vmatpush1.msra.mxu0 0.0
    %2434 = vmatprep.subr.mxu0 0.0
    %2435 = vmatpush1.msra.mxu0 0.0
    %2436 = vmatprep.subr.mxu0 0.0
    %2437 = vmatpush1.msra.mxu0 0.0
    %2438 = vmatprep.subr.mxu0 0.0
    %2439 = vmatpush1.msra.mxu0 0.0
    %2440 = vmatprep.subr.mxu0 0.0
    %2441 = vmatpush1.msra.mxu0 0.0
    %2442 = vmatprep.subr.mxu0 0.0
    %2443 = vmatpush1.msra.mxu0 0.0
    %2444 = vmatprep.subr.mxu0 0.0
    %2445 = vmatpush1.msra.mxu0 0.0
    %2446 = vmatprep.subr.mxu0 0.0
    %2447 = vmatpush1.msra.mxu0 0.0
    %2448 = vmatprep.subr.mxu0 0.0
    %2449 = vmatpush1.msra.mxu0 0.0
    %2450 = vmatprep.subr.mxu0 0.0
    %2451 = vmatpush1.msra.mxu0 0.0
    %2452 = vmatprep.subr.mxu0 0.0
    %2453 = vmatpush1.msra.mxu0 0.0
    %2454 = vmatprep.subr.mxu0 0.0
    %2455 = vmatpush1.msra.mxu0 0.0
    %2456 = vmatprep.subr.mxu0 0.0
    %2457 = vmatpush1.msra.mxu0 0.0
    %2458 = vmatprep.subr.mxu0 0.0
    %2459 = vmatpush1.msra.mxu0 0.0
    %2460 = vmatprep.subr.mxu0 0.0
    %2461 = vmatpush1.msra.mxu0 0.0
    %2462 = vmatprep.subr.mxu0 0.0
    %2463 = vmatpush1.msra.mxu0 0.0
    %2464 = vmatprep.subr.mxu0 0.0
    %2465 = vmatpush1.msra.mxu0 0.0
    %2466 = vmatprep.subr.mxu0 0.0
    %2467 = vmatpush1.msra.mxu0 0.0
    %2468 = vmatprep.subr.mxu0 0.0
    %2469 = vmatpush1.msra.mxu0 0.0
    %2470 = vmatprep.subr.mxu0 0.0
    %2471 = vmatpush1.msra.mxu0 0.0
    %2472 = vmatprep.subr.mxu0 0.0
    %2473 = vmatpush1.msra.mxu0 0.0
    %2474 = vmatprep.subr.mxu0 0.0
    %2475 = vmatpush1.msra.mxu0 0.0
    %2476 = vmatprep.subr.mxu0 0.0
    %2477 = vmatpush1.msra.mxu0 0.0
    %2478 = vmatprep.subr.mxu0 0.0
    %2479 = vmatpush1.msra.mxu0 0.0
    %2480 = vmatprep.mubr.f32.mxu0 0.0
    %2481 = vmatmul.mubr.f32.gmra.mrb[0].mxu0 %v2411
    %v2482 = vpop.f32.mrb[0].mxu0
    %v2483 = vadd.f32 0.0, %v2482
    %v2484 = vpop.f32.mrb[0].mxu0
    %2485 = vmatprep.mubr.f32.mxu0 0.0
    %2486 = vmatmul.mubr.f32.gmra.mrb[0].mxu0 %v2414
    %v2487 = vpop.f32.mrb[0].mxu0
    %v2488 = vadd.f32 0.0, %v2487
    %v2489 = vpop.f32.mrb[0].mxu0
    %2490 = vdwg.mxu0
    %v2491 = vadd.f32 %v639, %v2483
    %v2492 = vadd.f32 %v644, %v2488
    %v2493 = vadd.f32 %v2491, %v1425
    %v2494 = vadd.f32 %v2492, %v1425
    %v2495 = vxor.u32 %v2493, 2147483648
    %v2496 = vxor.u32 %v2494, 2147483648
    %v2497 = vmul.f32 %v2495, 1.442695
    %v2498 = vpow.pop %v2497
    %v2499 = vmul.f32 %v2496, 1.442695
    %v2500 = vpow.pop %v2499
    %v2501 = vadd.f32 %v2498, 1.0
    %v2502 = vadd.f32 %v2500, 1.0
    %v2503 = vrcp.pop %v2501
    %v2504 = vmul.f32 1.0, %v2503
    %v2505 = vrcp.pop %v2502
    %v2506 = vmul.f32 1.0, %v2505
    %v2508 = vsel %vm479, %v2408, 0
    %v2511 = vsel %vm479, %v2409, 0
    %2513 = vmatprep.subr.mxu0 0.0
    %2514 = vmatpush1.msra.mxu0 %v981
    %2515 = vmatprep.subr.mxu0 0.0
    %2516 = vmatpush1.msra.mxu0 %v982
    %2517 = vmatprep.subr.mxu0 0.0
    %2518 = vmatpush1.msra.mxu0 %v983
    %2519 = vmatprep.subr.mxu0 0.0
    %2520 = vmatpush1.msra.mxu0 %v984
    %2521 = vmatprep.subr.mxu0 0.0
    %2522 = vmatpush1.msra.mxu0 0.0
    %2523 = vmatprep.subr.mxu0 0.0
    %2524 = vmatpush1.msra.mxu0 0.0
    %2525 = vmatprep.subr.mxu0 0.0
    %2526 = vmatpush1.msra.mxu0 0.0
    %2527 = vmatprep.subr.mxu0 0.0
    %2528 = vmatpush1.msra.mxu0 0.0
    %2529 = vmatprep.subr.mxu0 0.0
    %2530 = vmatpush1.msra.mxu0 0.0
    %2531 = vmatprep.subr.mxu0 0.0
    %2532 = vmatpush1.msra.mxu0 0.0
    %2533 = vmatprep.subr.mxu0 0.0
    %2534 = vmatpush1.msra.mxu0 0.0
    %2535 = vmatprep.subr.mxu0 0.0
    %2536 = vmatpush1.msra.mxu0 0.0
    %2537 = vmatprep.subr.mxu0 0.0
    %2538 = vmatpush1.msra.mxu0 0.0
    %2539 = vmatprep.subr.mxu0 0.0
    %2540 = vmatpush1.msra.mxu0 0.0
    %2541 = vmatprep.subr.mxu0 0.0
    %2542 = vmatpush1.msra.mxu0 0.0
    %2543 = vmatprep.subr.mxu0 0.0
    %2544 = vmatpush1.msra.mxu0 0.0
    %2545 = vmatprep.subr.mxu0 0.0
    %2546 = vmatpush1.msra.mxu0 0.0
    %2547 = vmatprep.subr.mxu0 0.0
    %2548 = vmatpush1.msra.mxu0 0.0
    %2549 = vmatprep.subr.mxu0 0.0
    %2550 = vmatpush1.msra.mxu0 0.0
    %2551 = vmatprep.subr.mxu0 0.0
    %2552 = vmatpush1.msra.mxu0 0.0
    %2553 = vmatprep.subr.mxu0 0.0
    %2554 = vmatpush1.msra.mxu0 0.0
    %2555 = vmatprep.subr.mxu0 0.0
    %2556 = vmatpush1.msra.mxu0 0.0
    %2557 = vmatprep.subr.mxu0 0.0
    %2558 = vmatpush1.msra.mxu0 0.0
    %2559 = vmatprep.subr.mxu0 0.0
    %2560 = vmatpush1.msra.mxu0 0.0
    %2561 = vmatprep.subr.mxu0 0.0
    %2562 = vmatpush1.msra.mxu0 0.0
    %2563 = vmatprep.subr.mxu0 0.0
    %2564 = vmatpush1.msra.mxu0 0.0
    %2565 = vmatprep.subr.mxu0 0.0
    %2566 = vmatpush1.msra.mxu0 0.0
    %2567 = vmatprep.subr.mxu0 0.0
    %2568 = vmatpush1.msra.mxu0 0.0
    %2569 = vmatprep.subr.mxu0 0.0
    %2570 = vmatpush1.msra.mxu0 0.0
    %2571 = vmatprep.subr.mxu0 0.0
    %2572 = vmatpush1.msra.mxu0 0.0
    %2573 = vmatprep.subr.mxu0 0.0
    %2574 = vmatpush1.msra.mxu0 0.0
    %2575 = vmatprep.subr.mxu0 0.0
    %2576 = vmatpush1.msra.mxu0 0.0
    %2577 = vmatprep.mubr.f32.mxu0 0.0
    %2578 = vmatmul.mubr.f32.gmra.mrb[0].mxu0 %v2508
    %v2579 = vpop.f32.mrb[0].mxu0
    %v2580 = vadd.f32 0.0, %v2579
    %v2581 = vpop.f32.mrb[0].mxu0
    %2582 = vmatprep.mubr.f32.mxu0 0.0
    %2583 = vmatmul.mubr.f32.gmra.mrb[0].mxu0 %v2511
    %v2584 = vpop.f32.mrb[0].mxu0
    %v2585 = vadd.f32 0.0, %v2584
    %v2586 = vpop.f32.mrb[0].mxu0
    %2587 = vdwg.mxu0
    %v2588 = vadd.f32 %v955, %v2580
    %v2589 = vadd.f32 %v960, %v2585
    %v2590 = vadd.f32 %v2588, %v1528
    %v2591 = vadd.f32 %v2589, %v1528
    %v2592 = vtanh.pop %v2590
    %v2593 = vtanh.pop %v2591
    %v2594 = vsub.f32 1.0, %v2504
    %v2595 = vsub.f32 1.0, %v2506
    %v2596 = vmul.f32 %v2594, %v2404
    %v2597 = vmul.f32 %v2595, %v2405
    %v2598 = vmul.f32 %v2504, %v2592
    %v2599 = vmul.f32 %v2506, %v2593
    %v2600 = vadd.f32 %v2596, %v2598
    %v2601 = vadd.f32 %v2597, %v2599
    %v2602 = vmul.f32 %v2600, %v1545
    %v2603 = vmul.f32 %v2601, %v1550
    %v2604 = vld [vmem:[#allocation8] sm:$0xff]
    %v2606 = vsel %vm196, %v2604, 0
    %2608 = vmatprep.subr.mxu0 0.0
    %2609 = vmatpush1.msra.mxu0 %v314
    %2610 = vmatprep.subr.mxu0 0.0
    %2611 = vmatpush1.msra.mxu0 %v315
    %2612 = vmatprep.subr.mxu0 0.0
    %2613 = vmatpush1.msra.mxu0 0.0
    %2614 = vmatprep.subr.mxu0 0.0
    %2615 = vmatpush1.msra.mxu0 0.0
    %2616 = vmatprep.subr.mxu0 0.0
    %2617 = vmatpush1.msra.mxu0 0.0
    %2618 = vmatprep.subr.mxu0 0.0
    %2619 = vmatpush1.msra.mxu0 0.0
    %2620 = vmatprep.subr.mxu0 0.0
    %2621 = vmatpush1.msra.mxu0 0.0
    %2622 = vmatprep.subr.mxu0 0.0
    %2623 = vmatpush1.msra.mxu0 0.0
    %2624 = vmatprep.subr.mxu0 0.0
    %2625 = vmatpush1.msra.mxu0 0.0
    %2626 = vmatprep.subr.mxu0 0.0
    %2627 = vmatpush1.msra.mxu0 0.0
    %2628 = vmatprep.subr.mxu0 0.0
    %2629 = vmatpush1.msra.mxu0 0.0
    %2630 = vmatprep.subr.mxu0 0.0
    %2631 = vmatpush1.msra.mxu0 0.0
    %2632 = vmatprep.subr.mxu0 0.0
    %2633 = vmatpush1.msra.mxu0 0.0
    %2634 = vmatprep.subr.mxu0 0.0
    %2635 = vmatpush1.msra.mxu0 0.0
    %2636 = vmatprep.subr.mxu0 0.0
    %2637 = vmatpush1.msra.mxu0 0.0
    %2638 = vmatprep.subr.mxu0 0.0
    %2639 = vmatpush1.msra.mxu0 0.0
    %2640 = vmatprep.subr.mxu0 0.0
    %2641 = vmatpush1.msra.mxu0 0.0
    %2642 = vmatprep.subr.mxu0 0.0
    %2643 = vmatpush1.msra.mxu0 0.0
    %2644 = vmatprep.subr.mxu0 0.0
    %2645 = vmatpush1.msra.mxu0 0.0
    %2646 = vmatprep.subr.mxu0 0.0
    %2647 = vmatpush1.msra.mxu0 0.0
    %2648 = vmatprep.subr.mxu0 0.0
    %2649 = vmatpush1.msra.mxu0 0.0
    %2650 = vmatprep.subr.mxu0 0.0
    %2651 = vmatpush1.msra.mxu0 0.0
    %2652 = vmatprep.subr.mxu0 0.0
    %2653 = vmatpush1.msra.mxu0 0.0
    %2654 = vmatprep.subr.mxu0 0.0
    %2655 = vmatpush1.msra.mxu0 0.0
    %2656 = vmatprep.subr.mxu0 0.0
    %2657 = vmatpush1.msra.mxu0 0.0
    %2658 = vmatprep.subr.mxu0 0.0
    %2659 = vmatpush1.msra.mxu0 0.0
    %2660 = vmatprep.subr.mxu0 0.0
    %2661 = vmatpush1.msra.mxu0 0.0
    %2662 = vmatprep.subr.mxu0 0.0
    %2663 = vmatpush1.msra.mxu0 0.0
    %2664 = vmatprep.subr.mxu0 0.0
    %2665 = vmatpush1.msra.mxu0 0.0
    %2666 = vmatprep.subr.mxu0 0.0
    %2667 = vmatpush1.msra.mxu0 0.0
    %2668 = vmatprep.subr.mxu0 0.0
    %2669 = vmatpush1.msra.mxu0 0.0
    %2670 = vmatprep.subr.mxu0 0.0
    %2671 = vmatpush1.msra.mxu0 0.0
    %2672 = vmatprep.mubr.f32.mxu0 0.0
    %2673 = vmatmul.mubr.f32.gmra.mrb[0].mxu0 %v2606
    %v2674 = vpop.f32.mrb[0].mxu0
    %v2675 = vadd.f32 0.0, %v2674
    %v2676 = vpop.f32.mrb[0].mxu0
    %2677 = vdwg.mxu0
    %2678 = vmatprep.subr.mxu0 0.0
    %2679 = vmatpush1.msra.mxu0 %v312
    %2680 = vmatprep.subr.mxu0 0.0
    %2681 = vmatpush1.msra.mxu0 %v313
    %2682 = vmatprep.subr.mxu0 0.0
    %2683 = vmatpush1.msra.mxu0 0.0
    %2684 = vmatprep.subr.mxu0 0.0
    %2685 = vmatpush1.msra.mxu0 0.0
    %2686 = vmatprep.subr.mxu0 0.0
    %2687 = vmatpush1.msra.mxu0 0.0
    %2688 = vmatprep.subr.mxu0 0.0
    %2689 = vmatpush1.msra.mxu0 0.0
    %2690 = vmatprep.subr.mxu0 0.0
    %2691 = vmatpush1.msra.mxu0 0.0
    %2692 = vmatprep.subr.mxu0 0.0
    %2693 = vmatpush1.msra.mxu0 0.0
    %2694 = vmatprep.subr.mxu0 0.0
    %2695 = vmatpush1.msra.mxu0 0.0
    %2696 = vmatprep.subr.mxu0 0.0
    %2697 = vmatpush1.msra.mxu0 0.0
    %2698 = vmatprep.subr.mxu0 0.0
    %2699 = vmatpush1.msra.mxu0 0.0
    %2700 = vmatprep.subr.mxu0 0.0
    %2701 = vmatpush1.msra.mxu0 0.0
    %2702 = vmatprep.subr.mxu0 0.0
    %2703 = vmatpush1.msra.mxu0 0.0
    %2704 = vmatprep.subr.mxu0 0.0
    %2705 = vmatpush1.msra.mxu0 0.0
    %2706 = vmatprep.subr.mxu0 0.0
    %2707 = vmatpush1.msra.mxu0 0.0
    %2708 = vmatprep.subr.mxu0 0.0
    %2709 = vmatpush1.msra.mxu0 0.0
    %2710 = vmatprep.subr.mxu0 0.0
    %2711 = vmatpush1.msra.mxu0 0.0
    %2712 = vmatprep.subr.mxu0 0.0
    %2713 = vmatpush1.msra.mxu0 0.0
    %2714 = vmatprep.subr.mxu0 0.0
    %2715 = vmatpush1.msra.mxu0 0.0
    %2716 = vmatprep.subr.mxu0 0.0
    %2717 = vmatpush1.msra.mxu0 0.0
    %2718 = vmatprep.subr.mxu0 0.0
    %2719 = vmatpush1.msra.mxu0 0.0
    %2720 = vmatprep.subr.mxu0 0.0
    %2721 = vmatpush1.msra.mxu0 0.0
    %2722 = vmatprep.subr.mxu0 0.0
    %2723 = vmatpush1.msra.mxu0 0.0
    %2724 = vmatprep.subr.mxu0 0.0
    %2725 = vmatpush1.msra.mxu0 0.0
    %2726 = vmatprep.subr.mxu0 0.0
    %2727 = vmatpush1.msra.mxu0 0.0
    %2728 = vmatprep.subr.mxu0 0.0
    %2729 = vmatpush1.msra.mxu0 0.0
    %2730 = vmatprep.subr.mxu0 0.0
    %2731 = vmatpush1.msra.mxu0 0.0
    %2732 = vmatprep.subr.mxu0 0.0
    %2733 = vmatpush1.msra.mxu0 0.0
    %2734 = vmatprep.subr.mxu0 0.0
    %2735 = vmatpush1.msra.mxu0 0.0
    %2736 = vmatprep.subr.mxu0 0.0
    %2737 = vmatpush1.msra.mxu0 0.0
    %2738 = vmatprep.subr.mxu0 0.0
    %2739 = vmatpush1.msra.mxu0 0.0
    %2740 = vmatprep.subr.mxu0 0.0
    %2741 = vmatpush1.msra.mxu0 0.0
    %2742 = vmatprep.mubr.f32.mxu0 0.0
    %2743 = vmatmul.mubr.f32.gmra.mrb[0].mxu0 %v2606
    %v2744 = vpop.f32.mrb[0].mxu0
    %v2745 = vadd.f32 0.0, %v2744
    %v2746 = vpop.f32.mrb[0].mxu0
    %2747 = vdwg.mxu0
    %v2748 = vld [vmem:[#allocation7] sm:$0xff]
    %v2750 = vsel %vm196, %v2748, 0
    %2752 = vmatprep.subr.mxu0 0.0
    %2753 = vmatpush1.msra.mxu0 %v2602
    %2754 = vmatprep.subr.mxu0 0.0
    %2755 = vmatpush1.msra.mxu0 %v2603
    %2756 = vmatprep.subr.mxu0 0.0
    %2757 = vmatpush1.msra.mxu0 0.0
    %2758 = vmatprep.subr.mxu0 0.0
    %2759 = vmatpush1.msra.mxu0 0.0
    %2760 = vmatprep.subr.mxu0 0.0
    %2761 = vmatpush1.msra.mxu0 0.0
    %2762 = vmatprep.subr.mxu0 0.0
    %2763 = vmatpush1.msra.mxu0 0.0
    %2764 = vmatprep.subr.mxu0 0.0
    %2765 = vmatpush1.msra.mxu0 0.0
    %2766 = vmatprep.subr.mxu0 0.0
    %2767 = vmatpush1.msra.mxu0 0.0
    %2768 = vmatprep.subr.mxu0 0.0
    %2769 = vmatpush1.msra.mxu0 0.0
    %2770 = vmatprep.subr.mxu0 0.0
    %2771 = vmatpush1.msra.mxu0 0.0
    %2772 = vmatprep.subr.mxu0 0.0
    %2773 = vmatpush1.msra.mxu0 0.0
    %2774 = vmatprep.subr.mxu0 0.0
    %2775 = vmatpush1.msra.mxu0 0.0
    %2776 = vmatprep.subr.mxu0 0.0
    %2777 = vmatpush1.msra.mxu0 0.0
    %2778 = vmatprep.subr.mxu0 0.0
    %2779 = vmatpush1.msra.mxu0 0.0
    %2780 = vmatprep.subr.mxu0 0.0
    %2781 = vmatpush1.msra.mxu0 0.0
    %2782 = vmatprep.subr.mxu0 0.0
    %2783 = vmatpush1.msra.mxu0 0.0
    %2784 = vmatprep.subr.mxu0 0.0
    %2785 = vmatpush1.msra.mxu0 0.0
    %2786 = vmatprep.subr.mxu0 0.0
    %2787 = vmatpush1.msra.mxu0 0.0
    %2788 = vmatprep.subr.mxu0 0.0
    %2789 = vmatpush1.msra.mxu0 0.0
    %2790 = vmatprep.subr.mxu0 0.0
    %2791 = vmatpush1.msra.mxu0 0.0
    %2792 = vmatprep.subr.mxu0 0.0
    %2793 = vmatpush1.msra.mxu0 0.0
    %2794 = vmatprep.subr.mxu0 0.0
    %2795 = vmatpush1.msra.mxu0 0.0
    %2796 = vmatprep.subr.mxu0 0.0
    %2797 = vmatpush1.msra.mxu0 0.0
    %2798 = vmatprep.subr.mxu0 0.0
    %2799 = vmatpush1.msra.mxu0 0.0
    %2800 = vmatprep.subr.mxu0 0.0
    %2801 = vmatpush1.msra.mxu0 0.0
    %2802 = vmatprep.subr.mxu0 0.0
    %2803 = vmatpush1.msra.mxu0 0.0
    %2804 = vmatprep.subr.mxu0 0.0
    %2805 = vmatpush1.msra.mxu0 0.0
    %2806 = vmatprep.subr.mxu0 0.0
    %2807 = vmatpush1.msra.mxu0 0.0
    %2808 = vmatprep.subr.mxu0 0.0
    %2809 = vmatpush1.msra.mxu0 0.0
    %2810 = vmatprep.subr.mxu0 0.0
    %2811 = vmatpush1.msra.mxu0 0.0
    %2812 = vmatprep.subr.mxu0 0.0
    %2813 = vmatpush1.msra.mxu0 0.0
    %2814 = vmatprep.subr.mxu0 0.0
    %2815 = vmatpush1.msra.mxu0 0.0
    %2816 = vmatprep.mubr.f32.mxu0 0.0
    %2817 = vmatmul.mubr.f32.gmra.mrb[0].mxu0 %v2750
    %v2818 = vpop.f32.mrb[0].mxu0
    %v2819 = vadd.f32 0.0, %v2818
    %v2820 = vpop.f32.mrb[0].mxu0
    %2821 = vdwg.mxu0
    %v2822 = vld [vmem:[%s20] sm:$0xf]
    %v2823 = vld [vmem:[%s21] sm:$0xff]
    %v2824 = vld [vmem:[%s21 + $0x8] sm:$0xff]
    %v2825 = vld [vmem:[%s21 + $0x10] sm:$0xff]
    %v2826 = vld [vmem:[%s21 + $0x18] sm:$0xff]
    %v2828 = vsel %vm479, %v2745, 0
    %2830 = vmatprep.subr.mxu0 0.0
    %2831 = vmatpush1.msra.mxu0 %v2823
    %2832 = vmatprep.subr.mxu0 0.0
    %2833 = vmatpush1.msra.mxu0 %v2824
    %2834 = vmatprep.subr.mxu0 0.0
    %2835 = vmatpush1.msra.mxu0 %v2825
    %2836 = vmatprep.subr.mxu0 0.0
    %2837 = vmatpush1.msra.mxu0 %v2826
    %2838 = vmatprep.subr.mxu0 0.0
    %2839 = vmatpush1.msra.mxu0 0.0
    %2840 = vmatprep.subr.mxu0 0.0
    %2841 = vmatpush1.msra.mxu0 0.0
    %2842 = vmatprep.subr.mxu0 0.0
    %2843 = vmatpush1.msra.mxu0 0.0
    %2844 = vmatprep.subr.mxu0 0.0
    %2845 = vmatpush1.msra.mxu0 0.0
    %2846 = vmatprep.subr.mxu0 0.0
    %2847 = vmatpush1.msra.mxu0 0.0
    %2848 = vmatprep.subr.mxu0 0.0
    %2849 = vmatpush1.msra.mxu0 0.0
    %2850 = vmatprep.subr.mxu0 0.0
    %2851 = vmatpush1.msra.mxu0 0.0
    %2852 = vmatprep.subr.mxu0 0.0
    %2853 = vmatpush1.msra.mxu0 0.0
    %2854 = vmatprep.subr.mxu0 0.0
    %2855 = vmatpush1.msra.mxu0 0.0
    %2856 = vmatprep.subr.mxu0 0.0
    %2857 = vmatpush1.msra.mxu0 0.0
    %2858 = vmatprep.subr.mxu0 0.0
    %2859 = vmatpush1.msra.mxu0 0.0
    %2860 = vmatprep.subr.mxu0 0.0
    %2861 = vmatpush1.msra.mxu0 0.0
    %2862 = vmatprep.subr.mxu0 0.0
    %2863 = vmatpush1.msra.mxu0 0.0
    %2864 = vmatprep.subr.mxu0 0.0
    %2865 = vmatpush1.msra.mxu0 0.0
    %2866 = vmatprep.subr.mxu0 0.0
    %2867 = vmatpush1.msra.mxu0 0.0
    %2868 = vmatprep.subr.mxu0 0.0
    %2869 = vmatpush1.msra.mxu0 0.0
    %2870 = vmatprep.subr.mxu0 0.0
    %2871 = vmatpush1.msra.mxu0 0.0
    %2872 = vmatprep.subr.mxu0 0.0
    %2873 = vmatpush1.msra.mxu0 0.0
    %2874 = vmatprep.subr.mxu0 0.0
    %2875 = vmatpush1.msra.mxu0 0.0
    %2876 = vmatprep.subr.mxu0 0.0
    %2877 = vmatpush1.msra.mxu0 0.0
    %2878 = vmatprep.subr.mxu0 0.0
    %2879 = vmatpush1.msra.mxu0 0.0
    %2880 = vmatprep.subr.mxu0 0.0
    %2881 = vmatpush1.msra.mxu0 0.0
    %2882 = vmatprep.subr.mxu0 0.0
    %2883 = vmatpush1.msra.mxu0 0.0
    %2884 = vmatprep.subr.mxu0 0.0
    %2885 = vmatpush1.msra.mxu0 0.0
    %2886 = vmatprep.subr.mxu0 0.0
    %2887 = vmatpush1.msra.mxu0 0.0
    %2888 = vmatprep.subr.mxu0 0.0
    %2889 = vmatpush1.msra.mxu0 0.0
    %2890 = vmatprep.subr.mxu0 0.0
    %2891 = vmatpush1.msra.mxu0 0.0
    %2892 = vmatprep.subr.mxu0 0.0
    %2893 = vmatpush1.msra.mxu0 0.0
    %2894 = vmatprep.mubr.f32.mxu0 0.0
    %2895 = vmatmul.mubr.f32.gmra.mrb[0].mxu0 %v2828
    %v2896 = vpop.f32.mrb[0].mxu0
    %v2897 = vadd.f32 0.0, %v2896
    %v2898 = vpop.f32.mrb[0].mxu0
    %2899 = vdwg.mxu0
    %v2901 = vsel %vm561, %v2675, 0
    %v2904 = vsel %vm568, %v2822, 0
    %2906 = vmatprep.subr.mxu0 0.0
    %2907 = vmatpush1.msra.mxu0 %v2904
    %2908 = vmatprep.subr.mxu0 0.0
    %2909 = vmatpush1.msra.mxu0 0.0
    %2910 = vmatprep.subr.mxu0 0.0
    %2911 = vmatpush1.msra.mxu0 0.0
    %2912 = vmatprep.subr.mxu0 0.0
    %2913 = vmatpush1.msra.mxu0 0.0
    %2914 = vmatprep.subr.mxu0 0.0
    %2915 = vmatpush1.msra.mxu0 0.0
    %2916 = vmatprep.subr.mxu0 0.0
    %2917 = vmatpush1.msra.mxu0 0.0
    %2918 = vmatprep.subr.mxu0 0.0
    %2919 = vmatpush1.msra.mxu0 0.0
    %2920 = vmatprep.subr.mxu0 0.0
    %2921 = vmatpush1.msra.mxu0 0.0
    %2922 = vmatprep.subr.mxu0 0.0
    %2923 = vmatpush1.msra.mxu0 0.0
    %2924 = vmatprep.subr.mxu0 0.0
    %2925 = vmatpush1.msra.mxu0 0.0
    %2926 = vmatprep.subr.mxu0 0.0
    %2927 = vmatpush1.msra.mxu0 0.0
    %2928 = vmatprep.subr.mxu0 0.0
    %2929 = vmatpush1.msra.mxu0 0.0
    %2930 = vmatprep.subr.mxu0 0.0
    %2931 = vmatpush1.msra.mxu0 0.0
    %2932 = vmatprep.subr.mxu0 0.0
    %2933 = vmatpush1.msra.mxu0 0.0
    %2934 = vmatprep.subr.mxu0 0.0
    %2935 = vmatpush1.msra.mxu0 0.0
    %2936 = vmatprep.subr.mxu0 0.0
    %2937 = vmatpush1.msra.mxu0 0.0
    %2938 = vmatprep.subr.mxu0 0.0
    %2939 = vmatpush1.msra.mxu0 0.0
    %2940 = vmatprep.subr.mxu0 0.0
    %2941 = vmatpush1.msra.mxu0 0.0
    %2942 = vmatprep.subr.mxu0 0.0
    %2943 = vmatpush1.msra.mxu0 0.0
    %2944 = vmatprep.subr.mxu0 0.0
    %2945 = vmatpush1.msra.mxu0 0.0
    %2946 = vmatprep.subr.mxu0 0.0
    %2947 = vmatpush1.msra.mxu0 0.0
    %2948 = vmatprep.subr.mxu0 0.0
    %2949 = vmatpush1.msra.mxu0 0.0
    %2950 = vmatprep.subr.mxu0 0.0
    %2951 = vmatpush1.msra.mxu0 0.0
    %2952 = vmatprep.subr.mxu0 0.0
    %2953 = vmatpush1.msra.mxu0 0.0
    %2954 = vmatprep.subr.mxu0 0.0
    %2955 = vmatpush1.msra.mxu0 0.0
    %2956 = vmatprep.subr.mxu0 0.0
    %2957 = vmatpush1.msra.mxu0 0.0
    %2958 = vmatprep.subr.mxu0 0.0
    %2959 = vmatpush1.msra.mxu0 0.0
    %2960 = vmatprep.subr.mxu0 0.0
    %2961 = vmatpush1.msra.mxu0 0.0
    %2962 = vmatprep.subr.mxu0 0.0
    %2963 = vmatpush1.msra.mxu0 0.0
    %2964 = vmatprep.subr.mxu0 0.0
    %2965 = vmatpush1.msra.mxu0 0.0
    %2966 = vmatprep.subr.mxu0 0.0
    %2967 = vmatpush1.msra.mxu0 0.0
    %2968 = vmatprep.subr.mxu0 0.0
    %2969 = vmatpush1.msra.mxu0 0.0
    %2970 = vmatprep.mubr.f32.mxu0 0.0
    %2971 = vmatmul.mubr.f32.gmra.mrb[0].mxu0 %v2901
    %v2972 = vpop.f32.mrb[0].mxu0
    %v2973 = vadd.f32 %v2897, %v2972
    %v2974 = vpop.f32.mrb[0].mxu0
    %2975 = vdwg.mxu0
    %v2976 = vld [vmem:[#allocation16] sm:$0xff]
    %v2977 = vld [vmem:[#allocation16 + $0x8] sm:$0xff]
    %v2978 = vld [vmem:[#allocation16 + $0x10] sm:$0xff]
    %v2979 = vld [vmem:[#allocation16 + $0x18] sm:$0xff]
    %v2981 = vsel %vm479, %v2819, 0
    %2983 = vmatprep.subr.mxu0 0.0
    %2984 = vmatpush1.msra.mxu0 %v2976
    %2985 = vmatprep.subr.mxu0 0.0
    %2986 = vmatpush1.msra.mxu0 %v2977
    %2987 = vmatprep.subr.mxu0 0.0
    %2988 = vmatpush1.msra.mxu0 %v2978
    %2989 = vmatprep.subr.mxu0 0.0
    %2990 = vmatpush1.msra.mxu0 %v2979
    %2991 = vmatprep.subr.mxu0 0.0
    %2992 = vmatpush1.msra.mxu0 0.0
    %2993 = vmatprep.subr.mxu0 0.0
    %2994 = vmatpush1.msra.mxu0 0.0
    %2995 = vmatprep.subr.mxu0 0.0
    %2996 = vmatpush1.msra.mxu0 0.0
    %2997 = vmatprep.subr.mxu0 0.0
    %2998 = vmatpush1.msra.mxu0 0.0
    %2999 = vmatprep.subr.mxu0 0.0
    %3000 = vmatpush1.msra.mxu0 0.0
    %3001 = vmatprep.subr.mxu0 0.0
    %3002 = vmatpush1.msra.mxu0 0.0
    %3003 = vmatprep.subr.mxu0 0.0
    %3004 = vmatpush1.msra.mxu0 0.0
    %3005 = vmatprep.subr.mxu0 0.0
    %3006 = vmatpush1.msra.mxu0 0.0
    %3007 = vmatprep.subr.mxu0 0.0
    %3008 = vmatpush1.msra.mxu0 0.0
    %3009 = vmatprep.subr.mxu0 0.0
    %3010 = vmatpush1.msra.mxu0 0.0
    %3011 = vmatprep.subr.mxu0 0.0
    %3012 = vmatpush1.msra.mxu0 0.0
    %3013 = vmatprep.subr.mxu0 0.0
    %3014 = vmatpush1.msra.mxu0 0.0
    %3015 = vmatprep.subr.mxu0 0.0
    %3016 = vmatpush1.msra.mxu0 0.0
    %3017 = vmatprep.subr.mxu0 0.0
    %3018 = vmatpush1.msra.mxu0 0.0
    %3019 = vmatprep.subr.mxu0 0.0
    %3020 = vmatpush1.msra.mxu0 0.0
    %3021 = vmatprep.subr.mxu0 0.0
    %3022 = vmatpush1.msra.mxu0 0.0
    %3023 = vmatprep.subr.mxu0 0.0
    %3024 = vmatpush1.msra.mxu0 0.0
    %3025 = vmatprep.subr.mxu0 0.0
    %3026 = vmatpush1.msra.mxu0 0.0
    %3027 = vmatprep.subr.mxu0 0.0
    %3028 = vmatpush1.msra.mxu0 0.0
    %3029 = vmatprep.subr.mxu0 0.0
    %3030 = vmatpush1.msra.mxu0 0.0
    %3031 = vmatprep.subr.mxu0 0.0
    %3032 = vmatpush1.msra.mxu0 0.0
    %3033 = vmatprep.subr.mxu0 0.0
    %3034 = vmatpush1.msra.mxu0 0.0
    %3035 = vmatprep.subr.mxu0 0.0
    %3036 = vmatpush1.msra.mxu0 0.0
    %3037 = vmatprep.subr.mxu0 0.0
    %3038 = vmatpush1.msra.mxu0 0.0
    %3039 = vmatprep.subr.mxu0 0.0
    %3040 = vmatpush1.msra.mxu0 0.0
    %3041 = vmatprep.subr.mxu0 0.0
    %3042 = vmatpush1.msra.mxu0 0.0
    %3043 = vmatprep.subr.mxu0 0.0
    %3044 = vmatpush1.msra.mxu0 0.0
    %3045 = vmatprep.subr.mxu0 0.0
    %3046 = vmatpush1.msra.mxu0 0.0
    %3047 = vmatprep.mubr.f32.mxu0 0.0
    %3048 = vmatmul.mubr.f32.gmra.mrb[0].mxu0 %v2981
    %v3049 = vpop.f32.mrb[0].mxu0
    %v3050 = vadd.f32 0.0, %v3049
    %v3051 = vpop.f32.mrb[0].mxu0
    %3052 = vdwg.mxu0
    %v3053 = vadd.f32 %v2973, %v3050
    %v3054 = vld [vmem:[%s23] sm:$0x1]
    %v3056 = vlaneseq
    %v3057 = vshrl.u32 %v3056, 7
    %v3058 = vsub.s32 0, %v3057
    %v3059 = vrot.slane %v3054, %v3058
    %v3061 = vadd.f32 %v3053, %v3059
    %v3062 = vmax.f32 %v3061, 0.0
    %3063 = vst [vmem:[#allocation17] sm:$0xff] %v3062
    // Predicated region
    $region134: #{tpu_custom_call.1} parent=1 // pred_check
      _
    $region135: #{tpu_custom_call.1} parent=1 // pred_check_branch
      %3065 = sbr.rel (0) target = $region137
    $region136: #{tpu_custom_call.1} parent=1 // pred_region
      %s3067 = ssub.s32 128, 128
      %3068 = vsyncadd [#allocation4], %s3067
      %s3070 = sshll.u32 [#allocation17], 4
      %s3071 = int_to_ptr.vmem [resolvable:$true] %s3070
      %3073 = dma.vmem_to_hbm [thread:$0]  %s3071, 128, %s24, [#allocation4]
    $region137: #{tpu_custom_call.1} parent=1 // pred_fallthru
      _
    // Predicated region
    $region138: #{tpu_custom_call.1} parent=1 // pred_check
      _
    $region139: #{tpu_custom_call.1} parent=1 // pred_check_branch
      %3075 = sbr.rel (0) target = $region141
    $region140: #{tpu_custom_call.1} parent=1 // pred_region
      %3076 = dma.done [#allocation4], 128
    $region141: #{tpu_custom_call.1} parent=1 // pred_fallthru
      _
    %3077 = vsyncpa [#allocation3], 1
    %3078 = vsyncpa [#allocation6], 1
    %3079 = vsyncpa [#allocation9], 1
    %3080 = vsyncpa [#allocation12], 1
    %3081 = vsyncpa [#allocation15], 1
    %3082 = vsyncpa [#allocation4], 1

</llo_original>
